<compile_context>
chip_gen: v7x
topology: tpu7x:2x2x1
jax: 0.10.0
libtpu: 0.0.40
codegen_flags: <defaults>
</compile_context>

<pallas_src>
import functools

import jax
import jax.numpy as jnp
from jax.experimental import pallas as pl
from jax.experimental.pallas import tpu as pltpu


def _round_up(a, b):
    return (a + b - 1) // b * b


# ----------------------------------------------------------------------------
# In-kernel: one KANLinear layer on a resident (in, bt) activation tile
# ----------------------------------------------------------------------------
def _kan_layer(x, grid_ref, recip_ref, w_ref, G, K):
    """x:         (in, bt)  f32 — features on sublanes, batch tile on lanes.
       grid_ref:  (in, G+2K+1)               per-feature B-spline knots.
       recip_ref: (in, sum_k 2*(G+2K-k))     reciprocal denominators (signed).
       w_ref:     (out_rows, (G+K+1)*in)     fused [base | spline] weight, f32.
       returns:   (out_rows, bt) f32.
    """
    n_knots = G + 2 * K + 1

    def gcol(j):                       # (in, 1) knot column, broadcast on lanes
        return grid_ref[:, j:j + 1]

    # Order-0 bases: 1[g[j] <= x < g[j+1]]  (comparisons recomputed inline; the
    # only large live values are the basis arrays themselves).
    bases = [
        jnp.logical_and(x >= gcol(j), x < gcol(j + 1)).astype(jnp.float32)
        for j in range(n_knots - 1)
    ]

    # Cox-de Boor recursion.  recip_ref column layout per level k (at `off`):
    #   cols [off     : off+n ] =  1/(g[j+k]   - g[j]  )
    #   cols [off + n : off+2n] = -1/(g[j+k+1] - g[j+1])   (sign folded in)
    # so  new[j] = (x-g[j])*rA[j]*old[j] + (x-g[j+k+1])*rBneg[j]*old[j+1]
    off = 0
    for k in range(1, K + 1):
        n = G + 2 * K - k
        new_bases = []
        for j in range(n):
            rA = recip_ref[:, off + j:off + j + 1]
            rB = recip_ref[:, off + n + j:off + n + j + 1]
            new_bases.append((x - gcol(j)) * rA * bases[j]
                             + (x - gcol(j + k + 1)) * rB * bases[j + 1])
        bases = new_bases
        off += 2 * n
    # len(bases) == G + K, each (in, bt)

    silu = x * jax.nn.sigmoid(x)                  # SiLU base activation

    # Sublane-aligned concat (in % 8 == 0) -> ((G+K+1)*in, bt); one f32 MXU
    # matmul over the whole contraction (MXU is idle -> f32 is free + exact).
    phi = jnp.concatenate([silu] + bases, axis=0)
    return jnp.dot(w_ref[...], phi, preferred_element_type=jnp.float32)


def kan_fused_kernel(*refs, num_layers, grid_size, spline_order):
    """refs = (x_ref, [grid_ref, recip_ref, w_ref] * num_layers, out_ref)."""
    x_ref, out_ref = refs[0], refs[-1]
    x = x_ref[...].astype(jnp.float32)            # upcast in-kernel if needed
    for l in range(num_layers):
        g_ref, r_ref, w_ref = refs[1 + 3 * l:4 + 3 * l]
        x = _kan_layer(x, g_ref, r_ref, w_ref, grid_size, spline_order)
    out_ref[...] = x.astype(out_ref.dtype)


# ----------------------------------------------------------------------------
# Host-side weight / knot preprocessing (pure JAX, outside the kernel)
# ----------------------------------------------------------------------------
def _prepare_layer(p, grid_size, spline_order, out_rows_pad):
    G, K = grid_size, spline_order
    grid = p["grid"].astype(jnp.float32)                        # (in, G+2K+1)
    out_f, in_f = p["base_weight"].shape

    sel = p["selector"]
    w_base_eff = sel * p["base_weight"]                         # (out, in)
    scaled_sw = p["spline_weight"] * (sel * p["spline_scaler"])[:, :, None]
    # columns ordered k-major / feature-minor, matching phi row order.
    w_spline_eff = jnp.transpose(scaled_sw, (0, 2, 1)).reshape(out_f,
                                                               (G + K) * in_f)
    w_fused = jnp.concatenate([w_base_eff, w_spline_eff], axis=1)
    if out_rows_pad > out_f:                    # sublane pad for the last layer
        w_fused = jnp.pad(w_fused, ((0, out_rows_pad - out_f), (0, 0)))
    w_fused = w_fused.astype(jnp.float32)

    # Reciprocal Cox-de Boor denominators (x-independent -> hoisted out of the
    # kernel).  Assumes strictly distinct knots (true for uniform grids here).
    cols = []
    for k in range(1, K + 1):
        n = G + 2 * K - k
        den_a = grid[:, k:k + n] - grid[:, 0:n]                 # g[j+k]   - g[j]
        den_b = grid[:, k + 1:k + 1 + n] - grid[:, 1:1 + n]     # g[j+k+1] - g[j+1]
        cols.append(1.0 / den_a)
        cols.append(-1.0 / den_b)                               # sign folded in
    recips = jnp.concatenate(cols, axis=1)                      # (in, sum 2n)
    return grid, recips, w_fused


def kan_forward_pallas(x, params, grid_size, spline_order, *, block_batch=512):
    L = len(params)
    B, in0 = x.shape
    out_last = params[-1]["base_weight"].shape[0]
    out_pad = _round_up(out_last, 8)            # sublane-aligned writeback only

    # Batch tile: lanes axis after the transpose -> multiple of 128; larger
    # tiles for big B amortize per-grid-step overhead, clamp down for small B.
    block_batch = max(128, min(_round_up(block_batch, 128), _round_up(B, 128)))
    B_pad = _round_up(B, block_batch)

    layer_args = []
    in_specs = [pl.BlockSpec((in0, block_batch), lambda i: (0, i))]
    for li, p in enumerate(params):
        out_rows = out_pad if li == L - 1 else p["base_weight"].shape[0]
        grid_t, recips, w_fused = _prepare_layer(p, grid_size, spline_order,
                                                 out_rows)
        layer_args += [grid_t, recips, w_fused]
        in_specs += [pl.BlockSpec(grid_t.shape, lambda i: (0, 0)),
                     pl.BlockSpec(recips.shape, lambda i: (0, 0)),
                     pl.BlockSpec(w_fused.shape, lambda i: (0, 0))]

    # Features on sublanes, batch on lanes; pad batch to the tile size.
    x_t = x.T
    if B_pad != B:
        x_t = jnp.pad(x_t, ((0, 0), (0, B_pad - B)))

    kernel = functools.partial(kan_fused_kernel, num_layers=L,
                               grid_size=grid_size, spline_order=spline_order)
    out = pl.pallas_call(
        kernel,
        out_shape=jax.ShapeDtypeStruct((out_pad, B_pad), jnp.float32),
        grid=(B_pad // block_batch,),
        in_specs=in_specs,
        out_specs=pl.BlockSpec((out_pad, block_batch), lambda i: (0, i)),
        compiler_params=pltpu.CompilerParams(
            dimension_semantics=("parallel",)),
    )(x_t, *layer_args)
    # Undo the resident-layout transpose and strip padding.
    return out[:out_last, :B].T


# ----------------------------------------------------------------------------
# Pure-JAX reference mirroring the PyTorch KANLinear.forward (quantize=False)
# ----------------------------------------------------------------------------
def kan_linear_ref(x, grid, base_weight, spline_weight, spline_scaler, selector,
                   grid_size, spline_order):
    K = spline_order
    xb = x[:, :, None]                                           # (B, in, 1)
    bases = jnp.logical_and(xb >= grid[:, :-1], xb < grid[:, 1:]).astype(x.dtype)
    for k in range(1, K + 1):
        bases = ((xb - grid[:, :-(k + 1)])
                 / (grid[:, k:-1] - grid[:, :-(k + 1)]) * bases[:, :, :-1]
                 + (grid[:, k + 1:] - xb)
                 / (grid[:, k + 1:] - grid[:, 1:-k]) * bases[:, :, 1:])
    silu = x * jax.nn.sigmoid(x)
    base_output = silu[:, :, None] * base_weight.T[None, :, :]   # (B, in, out)
    scaled_sw = spline_weight * spline_scaler[:, :, None]        # (out, in, GK)
    spline_out = base_output + jnp.sum(
        bases[:, :, None, :] * jnp.transpose(scaled_sw, (1, 0, 2))[None, :, :, :],
        axis=-1)                                                 # (B, in, out)
    spline_out = jnp.transpose(spline_out, (0, 2, 1))            # (B, out, in)
    spline_out = selector[None, :, :] * spline_out
    return jnp.sum(spline_out, axis=-1)                          # (B, out)


def kan_forward_ref(x, params, grid_size, spline_order):
    y = x
    for p in params:
        y = kan_linear_ref(y, p["grid"], p["base_weight"], p["spline_weight"],
                           p["spline_scaler"], p["selector"],
                           grid_size, spline_order)
    return y


# ----------------------------------------------------------------------------
# Deterministic parameter construction (shapes follow KANLinear.__init__)
# ----------------------------------------------------------------------------
def make_kan_params(key, layers_hidden, grid_size, spline_order,
                    grid_range=(-1.0, 1.0)):
    G, K = grid_size, spline_order
    h = (grid_range[1] - grid_range[0]) / G
    grid_row = jnp.arange(-K, G + K + 1, dtype=jnp.float32) * h + grid_range[0]
    params = []
    for in_f, out_f in zip(layers_hidden[:-1], layers_hidden[1:]):
        key, k1, k2, k3 = jax.random.split(key, 4)
        bound = 1.0 / jnp.sqrt(in_f)
        params.append(dict(
            grid=jnp.tile(grid_row[None, :], (in_f, 1)),            # (in, G+2K+1)
            base_weight=jax.random.uniform(k1, (out_f, in_f), jnp.float32,
                                           -bound, bound),
            spline_weight=0.1 * jax.random.uniform(k2, (out_f, in_f, G + K),
                                                   jnp.float32, -0.5, 0.5),
            spline_scaler=jax.random.uniform(k3, (out_f, in_f), jnp.float32,
                                             -bound, bound),
            selector=jnp.ones((out_f, in_f), jnp.float32),
        ))
    return params


if __name__ == "__main__":
    key = jax.random.PRNGKey(0)
    layers_hidden = [32, 16, 8]
    grid_size, spline_order = 5, 3
    batch = 16

    key, xk, pk = jax.random.split(key, 3)
    x = jax.random.uniform(xk, (batch, layers_hidden[0]), jnp.float32,
                           minval=-1.0, maxval=1.0)
    params = make_kan_params(pk, layers_hidden, grid_size, spline_order)

    y = kan_forward_pallas(x, params, grid_size, spline_order)
    y = jax.block_until_ready(y)

    y_ref = kan_forward_ref(x, params, grid_size, spline_order)
    assert y.shape == (batch, layers_hidden[-1])
    max_err = float(jnp.max(jnp.abs(y - y_ref)))
    # f32 everywhere (basis math, MXU accumulation) -> tight tolerance.
    assert jnp.allclose(y, y_ref, atol=1e-4, rtol=1e-4), max_err

    print("KERNEL_OK")
</pallas_src>

<mosaic_0001>
module attributes {stable_mosaic.version = 11 : i64} {
  func.func @kan_fused_kernel(%arg0: i32, %arg1: memref<32x128xf32, #tpu.memory_space<vmem>>, %arg2: memref<32x12xf32, #tpu.memory_space<vmem>>, %arg3: memref<32x54xf32, #tpu.memory_space<vmem>>, %arg4: memref<16x288xf32, #tpu.memory_space<vmem>>, %arg5: memref<16x12xf32, #tpu.memory_space<vmem>>, %arg6: memref<16x54xf32, #tpu.memory_space<vmem>>, %arg7: memref<8x144xf32, #tpu.memory_space<vmem>>, %arg8: memref<8x128xf32, #tpu.memory_space<vmem>>) attributes {dimension_semantics = [#tpu.dimension_semantics<parallel>], iteration_bounds = array<i64: 1>, scalar_prefetch = 0 : i64, scratch_operands = 0 : i64, tpu.core_type = #tpu.core_type<tc>, window_params = [{transform_indices = @transform_0, window_bounds = array<i64: 32, 128>}, {pipeline_mode = #tpu.pipeline_mode<synchronous>, transform_indices = @transform_1, window_bounds = array<i64: 32, 12>}, {pipeline_mode = #tpu.pipeline_mode<synchronous>, transform_indices = @transform_2, window_bounds = array<i64: 32, 54>}, {pipeline_mode = #tpu.pipeline_mode<synchronous>, transform_indices = @transform_3, window_bounds = array<i64: 16, 288>}, {pipeline_mode = #tpu.pipeline_mode<synchronous>, transform_indices = @transform_4, window_bounds = array<i64: 16, 12>}, {pipeline_mode = #tpu.pipeline_mode<synchronous>, transform_indices = @transform_5, window_bounds = array<i64: 16, 54>}, {pipeline_mode = #tpu.pipeline_mode<synchronous>, transform_indices = @transform_6, window_bounds = array<i64: 8, 144>}, {transform_indices = @transform_7, window_bounds = array<i64: 8, 128>}]} {
    %c0 = arith.constant 0 : index
    %c0_0 = arith.constant 0 : index
    %0 = vector.load %arg1[%c0, %c0_0] : memref<32x128xf32, #tpu.memory_space<vmem>>, vector<32x128xf32>
    %c0_1 = arith.constant 0 : index
    %c0_2 = arith.constant 0 : index
    %1 = vector.load %arg2[%c0_1, %c0_2] : memref<32x12xf32, #tpu.memory_space<vmem>>, vector<32x1xf32>
    %2 = vector.broadcast %1 : vector<32x1xf32> to vector<32x128xf32>
    %3 = arith.cmpf oge, %0, %2 : vector<32x128xf32>
    %c0_3 = arith.constant 0 : index
    %c1 = arith.constant 1 : index
    %4 = vector.load %arg2[%c0_3, %c1] : memref<32x12xf32, #tpu.memory_space<vmem>>, vector<32x1xf32>
    %5 = vector.broadcast %4 : vector<32x1xf32> to vector<32x128xf32>
    %6 = arith.cmpf olt, %0, %5 : vector<32x128xf32>
    %7 = arith.andi %3, %6 : vector<32x128xi1>
    %8 = arith.extui %7 : vector<32x128xi1> to vector<32x128xi32>
    %9 = arith.sitofp %8 : vector<32x128xi32> to vector<32x128xf32>
    %c0_4 = arith.constant 0 : index
    %c1_5 = arith.constant 1 : index
    %10 = vector.load %arg2[%c0_4, %c1_5] : memref<32x12xf32, #tpu.memory_space<vmem>>, vector<32x1xf32>
    %11 = vector.broadcast %10 : vector<32x1xf32> to vector<32x128xf32>
    %12 = arith.cmpf oge, %0, %11 : vector<32x128xf32>
    %c0_6 = arith.constant 0 : index
    %c2 = arith.constant 2 : index
    %13 = vector.load %arg2[%c0_6, %c2] : memref<32x12xf32, #tpu.memory_space<vmem>>, vector<32x1xf32>
    %14 = vector.broadcast %13 : vector<32x1xf32> to vector<32x128xf32>
    %15 = arith.cmpf olt, %0, %14 : vector<32x128xf32>
    %16 = arith.andi %12, %15 : vector<32x128xi1>
    %17 = arith.extui %16 : vector<32x128xi1> to vector<32x128xi32>
    %18 = arith.sitofp %17 : vector<32x128xi32> to vector<32x128xf32>
    %c0_7 = arith.constant 0 : index
    %c2_8 = arith.constant 2 : index
    %19 = vector.load %arg2[%c0_7, %c2_8] : memref<32x12xf32, #tpu.memory_space<vmem>>, vector<32x1xf32>
    %20 = vector.broadcast %19 : vector<32x1xf32> to vector<32x128xf32>
    %21 = arith.cmpf oge, %0, %20 : vector<32x128xf32>
    %c0_9 = arith.constant 0 : index
    %c3 = arith.constant 3 : index
    %22 = vector.load %arg2[%c0_9, %c3] : memref<32x12xf32, #tpu.memory_space<vmem>>, vector<32x1xf32>
    %23 = vector.broadcast %22 : vector<32x1xf32> to vector<32x128xf32>
    %24 = arith.cmpf olt, %0, %23 : vector<32x128xf32>
    %25 = arith.andi %21, %24 : vector<32x128xi1>
    %26 = arith.extui %25 : vector<32x128xi1> to vector<32x128xi32>
    %27 = arith.sitofp %26 : vector<32x128xi32> to vector<32x128xf32>
    %c0_10 = arith.constant 0 : index
    %c3_11 = arith.constant 3 : index
    %28 = vector.load %arg2[%c0_10, %c3_11] : memref<32x12xf32, #tpu.memory_space<vmem>>, vector<32x1xf32>
    %29 = vector.broadcast %28 : vector<32x1xf32> to vector<32x128xf32>
    %30 = arith.cmpf oge, %0, %29 : vector<32x128xf32>
    %c0_12 = arith.constant 0 : index
    %c4 = arith.constant 4 : index
    %31 = vector.load %arg2[%c0_12, %c4] : memref<32x12xf32, #tpu.memory_space<vmem>>, vector<32x1xf32>
    %32 = vector.broadcast %31 : vector<32x1xf32> to vector<32x128xf32>
    %33 = arith.cmpf olt, %0, %32 : vector<32x128xf32>
    %34 = arith.andi %30, %33 : vector<32x128xi1>
    %35 = arith.extui %34 : vector<32x128xi1> to vector<32x128xi32>
    %36 = arith.sitofp %35 : vector<32x128xi32> to vector<32x128xf32>
    %c0_13 = arith.constant 0 : index
    %c4_14 = arith.constant 4 : index
    %37 = vector.load %arg2[%c0_13, %c4_14] : memref<32x12xf32, #tpu.memory_space<vmem>>, vector<32x1xf32>
    %38 = vector.broadcast %37 : vector<32x1xf32> to vector<32x128xf32>
    %39 = arith.cmpf oge, %0, %38 : vector<32x128xf32>
    %c0_15 = arith.constant 0 : index
    %c5 = arith.constant 5 : index
    %40 = vector.load %arg2[%c0_15, %c5] : memref<32x12xf32, #tpu.memory_space<vmem>>, vector<32x1xf32>
    %41 = vector.broadcast %40 : vector<32x1xf32> to vector<32x128xf32>
    %42 = arith.cmpf olt, %0, %41 : vector<32x128xf32>
    %43 = arith.andi %39, %42 : vector<32x128xi1>
    %44 = arith.extui %43 : vector<32x128xi1> to vector<32x128xi32>
    %45 = arith.sitofp %44 : vector<32x128xi32> to vector<32x128xf32>
    %c0_16 = arith.constant 0 : index
    %c5_17 = arith.constant 5 : index
    %46 = vector.load %arg2[%c0_16, %c5_17] : memref<32x12xf32, #tpu.memory_space<vmem>>, vector<32x1xf32>
    %47 = vector.broadcast %46 : vector<32x1xf32> to vector<32x128xf32>
    %48 = arith.cmpf oge, %0, %47 : vector<32x128xf32>
    %c0_18 = arith.constant 0 : index
    %c6 = arith.constant 6 : index
    %49 = vector.load %arg2[%c0_18, %c6] : memref<32x12xf32, #tpu.memory_space<vmem>>, vector<32x1xf32>
    %50 = vector.broadcast %49 : vector<32x1xf32> to vector<32x128xf32>
    %51 = arith.cmpf olt, %0, %50 : vector<32x128xf32>
    %52 = arith.andi %48, %51 : vector<32x128xi1>
    %53 = arith.extui %52 : vector<32x128xi1> to vector<32x128xi32>
    %54 = arith.sitofp %53 : vector<32x128xi32> to vector<32x128xf32>
    %c0_19 = arith.constant 0 : index
    %c6_20 = arith.constant 6 : index
    %55 = vector.load %arg2[%c0_19, %c6_20] : memref<32x12xf32, #tpu.memory_space<vmem>>, vector<32x1xf32>
    %56 = vector.broadcast %55 : vector<32x1xf32> to vector<32x128xf32>
    %57 = arith.cmpf oge, %0, %56 : vector<32x128xf32>
    %c0_21 = arith.constant 0 : index
    %c7 = arith.constant 7 : index
    %58 = vector.load %arg2[%c0_21, %c7] : memref<32x12xf32, #tpu.memory_space<vmem>>, vector<32x1xf32>
    %59 = vector.broadcast %58 : vector<32x1xf32> to vector<32x128xf32>
    %60 = arith.cmpf olt, %0, %59 : vector<32x128xf32>
    %61 = arith.andi %57, %60 : vector<32x128xi1>
    %62 = arith.extui %61 : vector<32x128xi1> to vector<32x128xi32>
    %63 = arith.sitofp %62 : vector<32x128xi32> to vector<32x128xf32>
    %c0_22 = arith.constant 0 : index
    %c7_23 = arith.constant 7 : index
    %64 = vector.load %arg2[%c0_22, %c7_23] : memref<32x12xf32, #tpu.memory_space<vmem>>, vector<32x1xf32>
    %65 = vector.broadcast %64 : vector<32x1xf32> to vector<32x128xf32>
    %66 = arith.cmpf oge, %0, %65 : vector<32x128xf32>
    %c0_24 = arith.constant 0 : index
    %c8 = arith.constant 8 : index
    %67 = vector.load %arg2[%c0_24, %c8] : memref<32x12xf32, #tpu.memory_space<vmem>>, vector<32x1xf32>
    %68 = vector.broadcast %67 : vector<32x1xf32> to vector<32x128xf32>
    %69 = arith.cmpf olt, %0, %68 : vector<32x128xf32>
    %70 = arith.andi %66, %69 : vector<32x128xi1>
    %71 = arith.extui %70 : vector<32x128xi1> to vector<32x128xi32>
    %72 = arith.sitofp %71 : vector<32x128xi32> to vector<32x128xf32>
    %c0_25 = arith.constant 0 : index
    %c8_26 = arith.constant 8 : index
    %73 = vector.load %arg2[%c0_25, %c8_26] : memref<32x12xf32, #tpu.memory_space<vmem>>, vector<32x1xf32>
    %74 = vector.broadcast %73 : vector<32x1xf32> to vector<32x128xf32>
    %75 = arith.cmpf oge, %0, %74 : vector<32x128xf32>
    %c0_27 = arith.constant 0 : index
    %c9 = arith.constant 9 : index
    %76 = vector.load %arg2[%c0_27, %c9] : memref<32x12xf32, #tpu.memory_space<vmem>>, vector<32x1xf32>
    %77 = vector.broadcast %76 : vector<32x1xf32> to vector<32x128xf32>
    %78 = arith.cmpf olt, %0, %77 : vector<32x128xf32>
    %79 = arith.andi %75, %78 : vector<32x128xi1>
    %80 = arith.extui %79 : vector<32x128xi1> to vector<32x128xi32>
    %81 = arith.sitofp %80 : vector<32x128xi32> to vector<32x128xf32>
    %c0_28 = arith.constant 0 : index
    %c9_29 = arith.constant 9 : index
    %82 = vector.load %arg2[%c0_28, %c9_29] : memref<32x12xf32, #tpu.memory_space<vmem>>, vector<32x1xf32>
    %83 = vector.broadcast %82 : vector<32x1xf32> to vector<32x128xf32>
    %84 = arith.cmpf oge, %0, %83 : vector<32x128xf32>
    %c0_30 = arith.constant 0 : index
    %c10 = arith.constant 10 : index
    %85 = vector.load %arg2[%c0_30, %c10] : memref<32x12xf32, #tpu.memory_space<vmem>>, vector<32x1xf32>
    %86 = vector.broadcast %85 : vector<32x1xf32> to vector<32x128xf32>
    %87 = arith.cmpf olt, %0, %86 : vector<32x128xf32>
    %88 = arith.andi %84, %87 : vector<32x128xi1>
    %89 = arith.extui %88 : vector<32x128xi1> to vector<32x128xi32>
    %90 = arith.sitofp %89 : vector<32x128xi32> to vector<32x128xf32>
    %c0_31 = arith.constant 0 : index
    %c10_32 = arith.constant 10 : index
    %91 = vector.load %arg2[%c0_31, %c10_32] : memref<32x12xf32, #tpu.memory_space<vmem>>, vector<32x1xf32>
    %92 = vector.broadcast %91 : vector<32x1xf32> to vector<32x128xf32>
    %93 = arith.cmpf oge, %0, %92 : vector<32x128xf32>
    %c0_33 = arith.constant 0 : index
    %c11 = arith.constant 11 : index
    %94 = vector.load %arg2[%c0_33, %c11] : memref<32x12xf32, #tpu.memory_space<vmem>>, vector<32x1xf32>
    %95 = vector.broadcast %94 : vector<32x1xf32> to vector<32x128xf32>
    %96 = arith.cmpf olt, %0, %95 : vector<32x128xf32>
    %97 = arith.andi %93, %96 : vector<32x128xi1>
    %98 = arith.extui %97 : vector<32x128xi1> to vector<32x128xi32>
    %99 = arith.sitofp %98 : vector<32x128xi32> to vector<32x128xf32>
    %c0_34 = arith.constant 0 : index
    %c0_35 = arith.constant 0 : index
    %100 = vector.load %arg3[%c0_34, %c0_35] : memref<32x54xf32, #tpu.memory_space<vmem>>, vector<32x1xf32>
    %c0_36 = arith.constant 0 : index
    %c10_37 = arith.constant 10 : index
    %101 = vector.load %arg3[%c0_36, %c10_37] : memref<32x54xf32, #tpu.memory_space<vmem>>, vector<32x1xf32>
    %c0_38 = arith.constant 0 : index
    %c0_39 = arith.constant 0 : index
    %102 = vector.load %arg2[%c0_38, %c0_39] : memref<32x12xf32, #tpu.memory_space<vmem>>, vector<32x1xf32>
    %103 = vector.broadcast %102 : vector<32x1xf32> to vector<32x128xf32>
    %104 = arith.subf %0, %103 : vector<32x128xf32>
    %105 = vector.broadcast %100 : vector<32x1xf32> to vector<32x128xf32>
    %106 = arith.mulf %104, %105 : vector<32x128xf32>
    %107 = arith.mulf %106, %9 : vector<32x128xf32>
    %c0_40 = arith.constant 0 : index
    %c2_41 = arith.constant 2 : index
    %108 = vector.load %arg2[%c0_40, %c2_41] : memref<32x12xf32, #tpu.memory_space<vmem>>, vector<32x1xf32>
    %109 = vector.broadcast %108 : vector<32x1xf32> to vector<32x128xf32>
    %110 = arith.subf %0, %109 : vector<32x128xf32>
    %111 = vector.broadcast %101 : vector<32x1xf32> to vector<32x128xf32>
    %112 = arith.mulf %110, %111 : vector<32x128xf32>
    %113 = arith.mulf %112, %18 : vector<32x128xf32>
    %114 = arith.addf %107, %113 : vector<32x128xf32>
    %c0_42 = arith.constant 0 : index
    %c1_43 = arith.constant 1 : index
    %115 = vector.load %arg3[%c0_42, %c1_43] : memref<32x54xf32, #tpu.memory_space<vmem>>, vector<32x1xf32>
    %c0_44 = arith.constant 0 : index
    %c11_45 = arith.constant 11 : index
    %116 = vector.load %arg3[%c0_44, %c11_45] : memref<32x54xf32, #tpu.memory_space<vmem>>, vector<32x1xf32>
    %c0_46 = arith.constant 0 : index
    %c1_47 = arith.constant 1 : index
    %117 = vector.load %arg2[%c0_46, %c1_47] : memref<32x12xf32, #tpu.memory_space<vmem>>, vector<32x1xf32>
    %118 = vector.broadcast %117 : vector<32x1xf32> to vector<32x128xf32>
    %119 = arith.subf %0, %118 : vector<32x128xf32>
    %120 = vector.broadcast %115 : vector<32x1xf32> to vector<32x128xf32>
    %121 = arith.mulf %119, %120 : vector<32x128xf32>
    %122 = arith.mulf %121, %18 : vector<32x128xf32>
    %c0_48 = arith.constant 0 : index
    %c3_49 = arith.constant 3 : index
    %123 = vector.load %arg2[%c0_48, %c3_49] : memref<32x12xf32, #tpu.memory_space<vmem>>, vector<32x1xf32>
    %124 = vector.broadcast %123 : vector<32x1xf32> to vector<32x128xf32>
    %125 = arith.subf %0, %124 : vector<32x128xf32>
    %126 = vector.broadcast %116 : vector<32x1xf32> to vector<32x128xf32>
    %127 = arith.mulf %125, %126 : vector<32x128xf32>
    %128 = arith.mulf %127, %27 : vector<32x128xf32>
    %129 = arith.addf %122, %128 : vector<32x128xf32>
    %c0_50 = arith.constant 0 : index
    %c2_51 = arith.constant 2 : index
    %130 = vector.load %arg3[%c0_50, %c2_51] : memref<32x54xf32, #tpu.memory_space<vmem>>, vector<32x1xf32>
    %c0_52 = arith.constant 0 : index
    %c12 = arith.constant 12 : index
    %131 = vector.load %arg3[%c0_52, %c12] : memref<32x54xf32, #tpu.memory_space<vmem>>, vector<32x1xf32>
    %c0_53 = arith.constant 0 : index
    %c2_54 = arith.constant 2 : index
    %132 = vector.load %arg2[%c0_53, %c2_54] : memref<32x12xf32, #tpu.memory_space<vmem>>, vector<32x1xf32>
    %133 = vector.broadcast %132 : vector<32x1xf32> to vector<32x128xf32>
    %134 = arith.subf %0, %133 : vector<32x128xf32>
    %135 = vector.broadcast %130 : vector<32x1xf32> to vector<32x128xf32>
    %136 = arith.mulf %134, %135 : vector<32x128xf32>
    %137 = arith.mulf %136, %27 : vector<32x128xf32>
    %c0_55 = arith.constant 0 : index
    %c4_56 = arith.constant 4 : index
    %138 = vector.load %arg2[%c0_55, %c4_56] : memref<32x12xf32, #tpu.memory_space<vmem>>, vector<32x1xf32>
    %139 = vector.broadcast %138 : vector<32x1xf32> to vector<32x128xf32>
    %140 = arith.subf %0, %139 : vector<32x128xf32>
    %141 = vector.broadcast %131 : vector<32x1xf32> to vector<32x128xf32>
    %142 = arith.mulf %140, %141 : vector<32x128xf32>
    %143 = arith.mulf %142, %36 : vector<32x128xf32>
    %144 = arith.addf %137, %143 : vector<32x128xf32>
    %c0_57 = arith.constant 0 : index
    %c3_58 = arith.constant 3 : index
    %145 = vector.load %arg3[%c0_57, %c3_58] : memref<32x54xf32, #tpu.memory_space<vmem>>, vector<32x1xf32>
    %c0_59 = arith.constant 0 : index
    %c13 = arith.constant 13 : index
    %146 = vector.load %arg3[%c0_59, %c13] : memref<32x54xf32, #tpu.memory_space<vmem>>, vector<32x1xf32>
    %c0_60 = arith.constant 0 : index
    %c3_61 = arith.constant 3 : index
    %147 = vector.load %arg2[%c0_60, %c3_61] : memref<32x12xf32, #tpu.memory_space<vmem>>, vector<32x1xf32>
    %148 = vector.broadcast %147 : vector<32x1xf32> to vector<32x128xf32>
    %149 = arith.subf %0, %148 : vector<32x128xf32>
    %150 = vector.broadcast %145 : vector<32x1xf32> to vector<32x128xf32>
    %151 = arith.mulf %149, %150 : vector<32x128xf32>
    %152 = arith.mulf %151, %36 : vector<32x128xf32>
    %c0_62 = arith.constant 0 : index
    %c5_63 = arith.constant 5 : index
    %153 = vector.load %arg2[%c0_62, %c5_63] : memref<32x12xf32, #tpu.memory_space<vmem>>, vector<32x1xf32>
    %154 = vector.broadcast %153 : vector<32x1xf32> to vector<32x128xf32>
    %155 = arith.subf %0, %154 : vector<32x128xf32>
    %156 = vector.broadcast %146 : vector<32x1xf32> to vector<32x128xf32>
    %157 = arith.mulf %155, %156 : vector<32x128xf32>
    %158 = arith.mulf %157, %45 : vector<32x128xf32>
    %159 = arith.addf %152, %158 : vector<32x128xf32>
    %c0_64 = arith.constant 0 : index
    %c4_65 = arith.constant 4 : index
    %160 = vector.load %arg3[%c0_64, %c4_65] : memref<32x54xf32, #tpu.memory_space<vmem>>, vector<32x1xf32>
    %c0_66 = arith.constant 0 : index
    %c14 = arith.constant 14 : index
    %161 = vector.load %arg3[%c0_66, %c14] : memref<32x54xf32, #tpu.memory_space<vmem>>, vector<32x1xf32>
    %c0_67 = arith.constant 0 : index
    %c4_68 = arith.constant 4 : index
    %162 = vector.load %arg2[%c0_67, %c4_68] : memref<32x12xf32, #tpu.memory_space<vmem>>, vector<32x1xf32>
    %163 = vector.broadcast %162 : vector<32x1xf32> to vector<32x128xf32>
    %164 = arith.subf %0, %163 : vector<32x128xf32>
    %165 = vector.broadcast %160 : vector<32x1xf32> to vector<32x128xf32>
    %166 = arith.mulf %164, %165 : vector<32x128xf32>
    %167 = arith.mulf %166, %45 : vector<32x128xf32>
    %c0_69 = arith.constant 0 : index
    %c6_70 = arith.constant 6 : index
    %168 = vector.load %arg2[%c0_69, %c6_70] : memref<32x12xf32, #tpu.memory_space<vmem>>, vector<32x1xf32>
    %169 = vector.broadcast %168 : vector<32x1xf32> to vector<32x128xf32>
    %170 = arith.subf %0, %169 : vector<32x128xf32>
    %171 = vector.broadcast %161 : vector<32x1xf32> to vector<32x128xf32>
    %172 = arith.mulf %170, %171 : vector<32x128xf32>
    %173 = arith.mulf %172, %54 : vector<32x128xf32>
    %174 = arith.addf %167, %173 : vector<32x128xf32>
    %c0_71 = arith.constant 0 : index
    %c5_72 = arith.constant 5 : index
    %175 = vector.load %arg3[%c0_71, %c5_72] : memref<32x54xf32, #tpu.memory_space<vmem>>, vector<32x1xf32>
    %c0_73 = arith.constant 0 : index
    %c15 = arith.constant 15 : index
    %176 = vector.load %arg3[%c0_73, %c15] : memref<32x54xf32, #tpu.memory_space<vmem>>, vector<32x1xf32>
    %c0_74 = arith.constant 0 : index
    %c5_75 = arith.constant 5 : index
    %177 = vector.load %arg2[%c0_74, %c5_75] : memref<32x12xf32, #tpu.memory_space<vmem>>, vector<32x1xf32>
    %178 = vector.broadcast %177 : vector<32x1xf32> to vector<32x128xf32>
    %179 = arith.subf %0, %178 : vector<32x128xf32>
    %180 = vector.broadcast %175 : vector<32x1xf32> to vector<32x128xf32>
    %181 = arith.mulf %179, %180 : vector<32x128xf32>
    %182 = arith.mulf %181, %54 : vector<32x128xf32>
    %c0_76 = arith.constant 0 : index
    %c7_77 = arith.constant 7 : index
    %183 = vector.load %arg2[%c0_76, %c7_77] : memref<32x12xf32, #tpu.memory_space<vmem>>, vector<32x1xf32>
    %184 = vector.broadcast %183 : vector<32x1xf32> to vector<32x128xf32>
    %185 = arith.subf %0, %184 : vector<32x128xf32>
    %186 = vector.broadcast %176 : vector<32x1xf32> to vector<32x128xf32>
    %187 = arith.mulf %185, %186 : vector<32x128xf32>
    %188 = arith.mulf %187, %63 : vector<32x128xf32>
    %189 = arith.addf %182, %188 : vector<32x128xf32>
    %c0_78 = arith.constant 0 : index
    %c6_79 = arith.constant 6 : index
    %190 = vector.load %arg3[%c0_78, %c6_79] : memref<32x54xf32, #tpu.memory_space<vmem>>, vector<32x1xf32>
    %c0_80 = arith.constant 0 : index
    %c16 = arith.constant 16 : index
    %191 = vector.load %arg3[%c0_80, %c16] : memref<32x54xf32, #tpu.memory_space<vmem>>, vector<32x1xf32>
    %c0_81 = arith.constant 0 : index
    %c6_82 = arith.constant 6 : index
    %192 = vector.load %arg2[%c0_81, %c6_82] : memref<32x12xf32, #tpu.memory_space<vmem>>, vector<32x1xf32>
    %193 = vector.broadcast %192 : vector<32x1xf32> to vector<32x128xf32>
    %194 = arith.subf %0, %193 : vector<32x128xf32>
    %195 = vector.broadcast %190 : vector<32x1xf32> to vector<32x128xf32>
    %196 = arith.mulf %194, %195 : vector<32x128xf32>
    %197 = arith.mulf %196, %63 : vector<32x128xf32>
    %c0_83 = arith.constant 0 : index
    %c8_84 = arith.constant 8 : index
    %198 = vector.load %arg2[%c0_83, %c8_84] : memref<32x12xf32, #tpu.memory_space<vmem>>, vector<32x1xf32>
    %199 = vector.broadcast %198 : vector<32x1xf32> to vector<32x128xf32>
    %200 = arith.subf %0, %199 : vector<32x128xf32>
    %201 = vector.broadcast %191 : vector<32x1xf32> to vector<32x128xf32>
    %202 = arith.mulf %200, %201 : vector<32x128xf32>
    %203 = arith.mulf %202, %72 : vector<32x128xf32>
    %204 = arith.addf %197, %203 : vector<32x128xf32>
    %c0_85 = arith.constant 0 : index
    %c7_86 = arith.constant 7 : index
    %205 = vector.load %arg3[%c0_85, %c7_86] : memref<32x54xf32, #tpu.memory_space<vmem>>, vector<32x1xf32>
    %c0_87 = arith.constant 0 : index
    %c17 = arith.constant 17 : index
    %206 = vector.load %arg3[%c0_87, %c17] : memref<32x54xf32, #tpu.memory_space<vmem>>, vector<32x1xf32>
    %c0_88 = arith.constant 0 : index
    %c7_89 = arith.constant 7 : index
    %207 = vector.load %arg2[%c0_88, %c7_89] : memref<32x12xf32, #tpu.memory_space<vmem>>, vector<32x1xf32>
    %208 = vector.broadcast %207 : vector<32x1xf32> to vector<32x128xf32>
    %209 = arith.subf %0, %208 : vector<32x128xf32>
    %210 = vector.broadcast %205 : vector<32x1xf32> to vector<32x128xf32>
    %211 = arith.mulf %209, %210 : vector<32x128xf32>
    %212 = arith.mulf %211, %72 : vector<32x128xf32>
    %c0_90 = arith.constant 0 : index
    %c9_91 = arith.constant 9 : index
    %213 = vector.load %arg2[%c0_90, %c9_91] : memref<32x12xf32, #tpu.memory_space<vmem>>, vector<32x1xf32>
    %214 = vector.broadcast %213 : vector<32x1xf32> to vector<32x128xf32>
    %215 = arith.subf %0, %214 : vector<32x128xf32>
    %216 = vector.broadcast %206 : vector<32x1xf32> to vector<32x128xf32>
    %217 = arith.mulf %215, %216 : vector<32x128xf32>
    %218 = arith.mulf %217, %81 : vector<32x128xf32>
    %219 = arith.addf %212, %218 : vector<32x128xf32>
    %c0_92 = arith.constant 0 : index
    %c8_93 = arith.constant 8 : index
    %220 = vector.load %arg3[%c0_92, %c8_93] : memref<32x54xf32, #tpu.memory_space<vmem>>, vector<32x1xf32>
    %c0_94 = arith.constant 0 : index
    %c18 = arith.constant 18 : index
    %221 = vector.load %arg3[%c0_94, %c18] : memref<32x54xf32, #tpu.memory_space<vmem>>, vector<32x1xf32>
    %c0_95 = arith.constant 0 : index
    %c8_96 = arith.constant 8 : index
    %222 = vector.load %arg2[%c0_95, %c8_96] : memref<32x12xf32, #tpu.memory_space<vmem>>, vector<32x1xf32>
    %223 = vector.broadcast %222 : vector<32x1xf32> to vector<32x128xf32>
    %224 = arith.subf %0, %223 : vector<32x128xf32>
    %225 = vector.broadcast %220 : vector<32x1xf32> to vector<32x128xf32>
    %226 = arith.mulf %224, %225 : vector<32x128xf32>
    %227 = arith.mulf %226, %81 : vector<32x128xf32>
    %c0_97 = arith.constant 0 : index
    %c10_98 = arith.constant 10 : index
    %228 = vector.load %arg2[%c0_97, %c10_98] : memref<32x12xf32, #tpu.memory_space<vmem>>, vector<32x1xf32>
    %229 = vector.broadcast %228 : vector<32x1xf32> to vector<32x128xf32>
    %230 = arith.subf %0, %229 : vector<32x128xf32>
    %231 = vector.broadcast %221 : vector<32x1xf32> to vector<32x128xf32>
    %232 = arith.mulf %230, %231 : vector<32x128xf32>
    %233 = arith.mulf %232, %90 : vector<32x128xf32>
    %234 = arith.addf %227, %233 : vector<32x128xf32>
    %c0_99 = arith.constant 0 : index
    %c9_100 = arith.constant 9 : index
    %235 = vector.load %arg3[%c0_99, %c9_100] : memref<32x54xf32, #tpu.memory_space<vmem>>, vector<32x1xf32>
    %c0_101 = arith.constant 0 : index
    %c19 = arith.constant 19 : index
    %236 = vector.load %arg3[%c0_101, %c19] : memref<32x54xf32, #tpu.memory_space<vmem>>, vector<32x1xf32>
    %c0_102 = arith.constant 0 : index
    %c9_103 = arith.constant 9 : index
    %237 = vector.load %arg2[%c0_102, %c9_103] : memref<32x12xf32, #tpu.memory_space<vmem>>, vector<32x1xf32>
    %238 = vector.broadcast %237 : vector<32x1xf32> to vector<32x128xf32>
    %239 = arith.subf %0, %238 : vector<32x128xf32>
    %240 = vector.broadcast %235 : vector<32x1xf32> to vector<32x128xf32>
    %241 = arith.mulf %239, %240 : vector<32x128xf32>
    %242 = arith.mulf %241, %90 : vector<32x128xf32>
    %c0_104 = arith.constant 0 : index
    %c11_105 = arith.constant 11 : index
    %243 = vector.load %arg2[%c0_104, %c11_105] : memref<32x12xf32, #tpu.memory_space<vmem>>, vector<32x1xf32>
    %244 = vector.broadcast %243 : vector<32x1xf32> to vector<32x128xf32>
    %245 = arith.subf %0, %244 : vector<32x128xf32>
    %246 = vector.broadcast %236 : vector<32x1xf32> to vector<32x128xf32>
    %247 = arith.mulf %245, %246 : vector<32x128xf32>
    %248 = arith.mulf %247, %99 : vector<32x128xf32>
    %249 = arith.addf %242, %248 : vector<32x128xf32>
    %c0_106 = arith.constant 0 : index
    %c20 = arith.constant 20 : index
    %250 = vector.load %arg3[%c0_106, %c20] : memref<32x54xf32, #tpu.memory_space<vmem>>, vector<32x1xf32>
    %c0_107 = arith.constant 0 : index
    %c29 = arith.constant 29 : index
    %251 = vector.load %arg3[%c0_107, %c29] : memref<32x54xf32, #tpu.memory_space<vmem>>, vector<32x1xf32>
    %c0_108 = arith.constant 0 : index
    %c0_109 = arith.constant 0 : index
    %252 = vector.load %arg2[%c0_108, %c0_109] : memref<32x12xf32, #tpu.memory_space<vmem>>, vector<32x1xf32>
    %253 = vector.broadcast %252 : vector<32x1xf32> to vector<32x128xf32>
    %254 = arith.subf %0, %253 : vector<32x128xf32>
    %255 = vector.broadcast %250 : vector<32x1xf32> to vector<32x128xf32>
    %256 = arith.mulf %254, %255 : vector<32x128xf32>
    %257 = arith.mulf %256, %114 : vector<32x128xf32>
    %c0_110 = arith.constant 0 : index
    %c3_111 = arith.constant 3 : index
    %258 = vector.load %arg2[%c0_110, %c3_111] : memref<32x12xf32, #tpu.memory_space<vmem>>, vector<32x1xf32>
    %259 = vector.broadcast %258 : vector<32x1xf32> to vector<32x128xf32>
    %260 = arith.subf %0, %259 : vector<32x128xf32>
    %261 = vector.broadcast %251 : vector<32x1xf32> to vector<32x128xf32>
    %262 = arith.mulf %260, %261 : vector<32x128xf32>
    %263 = arith.mulf %262, %129 : vector<32x128xf32>
    %264 = arith.addf %257, %263 : vector<32x128xf32>
    %c0_112 = arith.constant 0 : index
    %c21 = arith.constant 21 : index
    %265 = vector.load %arg3[%c0_112, %c21] : memref<32x54xf32, #tpu.memory_space<vmem>>, vector<32x1xf32>
    %c0_113 = arith.constant 0 : index
    %c30 = arith.constant 30 : index
    %266 = vector.load %arg3[%c0_113, %c30] : memref<32x54xf32, #tpu.memory_space<vmem>>, vector<32x1xf32>
    %c0_114 = arith.constant 0 : index
    %c1_115 = arith.constant 1 : index
    %267 = vector.load %arg2[%c0_114, %c1_115] : memref<32x12xf32, #tpu.memory_space<vmem>>, vector<32x1xf32>
    %268 = vector.broadcast %267 : vector<32x1xf32> to vector<32x128xf32>
    %269 = arith.subf %0, %268 : vector<32x128xf32>
    %270 = vector.broadcast %265 : vector<32x1xf32> to vector<32x128xf32>
    %271 = arith.mulf %269, %270 : vector<32x128xf32>
    %272 = arith.mulf %271, %129 : vector<32x128xf32>
    %c0_116 = arith.constant 0 : index
    %c4_117 = arith.constant 4 : index
    %273 = vector.load %arg2[%c0_116, %c4_117] : memref<32x12xf32, #tpu.memory_space<vmem>>, vector<32x1xf32>
    %274 = vector.broadcast %273 : vector<32x1xf32> to vector<32x128xf32>
    %275 = arith.subf %0, %274 : vector<32x128xf32>
    %276 = vector.broadcast %266 : vector<32x1xf32> to vector<32x128xf32>
    %277 = arith.mulf %275, %276 : vector<32x128xf32>
    %278 = arith.mulf %277, %144 : vector<32x128xf32>
    %279 = arith.addf %272, %278 : vector<32x128xf32>
    %c0_118 = arith.constant 0 : index
    %c22 = arith.constant 22 : index
    %280 = vector.load %arg3[%c0_118, %c22] : memref<32x54xf32, #tpu.memory_space<vmem>>, vector<32x1xf32>
    %c0_119 = arith.constant 0 : index
    %c31 = arith.constant 31 : index
    %281 = vector.load %arg3[%c0_119, %c31] : memref<32x54xf32, #tpu.memory_space<vmem>>, vector<32x1xf32>
    %c0_120 = arith.constant 0 : index
    %c2_121 = arith.constant 2 : index
    %282 = vector.load %arg2[%c0_120, %c2_121] : memref<32x12xf32, #tpu.memory_space<vmem>>, vector<32x1xf32>
    %283 = vector.broadcast %282 : vector<32x1xf32> to vector<32x128xf32>
    %284 = arith.subf %0, %283 : vector<32x128xf32>
    %285 = vector.broadcast %280 : vector<32x1xf32> to vector<32x128xf32>
    %286 = arith.mulf %284, %285 : vector<32x128xf32>
    %287 = arith.mulf %286, %144 : vector<32x128xf32>
    %c0_122 = arith.constant 0 : index
    %c5_123 = arith.constant 5 : index
    %288 = vector.load %arg2[%c0_122, %c5_123] : memref<32x12xf32, #tpu.memory_space<vmem>>, vector<32x1xf32>
    %289 = vector.broadcast %288 : vector<32x1xf32> to vector<32x128xf32>
    %290 = arith.subf %0, %289 : vector<32x128xf32>
    %291 = vector.broadcast %281 : vector<32x1xf32> to vector<32x128xf32>
    %292 = arith.mulf %290, %291 : vector<32x128xf32>
    %293 = arith.mulf %292, %159 : vector<32x128xf32>
    %294 = arith.addf %287, %293 : vector<32x128xf32>
    %c0_124 = arith.constant 0 : index
    %c23 = arith.constant 23 : index
    %295 = vector.load %arg3[%c0_124, %c23] : memref<32x54xf32, #tpu.memory_space<vmem>>, vector<32x1xf32>
    %c0_125 = arith.constant 0 : index
    %c32 = arith.constant 32 : index
    %296 = vector.load %arg3[%c0_125, %c32] : memref<32x54xf32, #tpu.memory_space<vmem>>, vector<32x1xf32>
    %c0_126 = arith.constant 0 : index
    %c3_127 = arith.constant 3 : index
    %297 = vector.load %arg2[%c0_126, %c3_127] : memref<32x12xf32, #tpu.memory_space<vmem>>, vector<32x1xf32>
    %298 = vector.broadcast %297 : vector<32x1xf32> to vector<32x128xf32>
    %299 = arith.subf %0, %298 : vector<32x128xf32>
    %300 = vector.broadcast %295 : vector<32x1xf32> to vector<32x128xf32>
    %301 = arith.mulf %299, %300 : vector<32x128xf32>
    %302 = arith.mulf %301, %159 : vector<32x128xf32>
    %c0_128 = arith.constant 0 : index
    %c6_129 = arith.constant 6 : index
    %303 = vector.load %arg2[%c0_128, %c6_129] : memref<32x12xf32, #tpu.memory_space<vmem>>, vector<32x1xf32>
    %304 = vector.broadcast %303 : vector<32x1xf32> to vector<32x128xf32>
    %305 = arith.subf %0, %304 : vector<32x128xf32>
    %306 = vector.broadcast %296 : vector<32x1xf32> to vector<32x128xf32>
    %307 = arith.mulf %305, %306 : vector<32x128xf32>
    %308 = arith.mulf %307, %174 : vector<32x128xf32>
    %309 = arith.addf %302, %308 : vector<32x128xf32>
    %c0_130 = arith.constant 0 : index
    %c24 = arith.constant 24 : index
    %310 = vector.load %arg3[%c0_130, %c24] : memref<32x54xf32, #tpu.memory_space<vmem>>, vector<32x1xf32>
    %c0_131 = arith.constant 0 : index
    %c33 = arith.constant 33 : index
    %311 = vector.load %arg3[%c0_131, %c33] : memref<32x54xf32, #tpu.memory_space<vmem>>, vector<32x1xf32>
    %c0_132 = arith.constant 0 : index
    %c4_133 = arith.constant 4 : index
    %312 = vector.load %arg2[%c0_132, %c4_133] : memref<32x12xf32, #tpu.memory_space<vmem>>, vector<32x1xf32>
    %313 = vector.broadcast %312 : vector<32x1xf32> to vector<32x128xf32>
    %314 = arith.subf %0, %313 : vector<32x128xf32>
    %315 = vector.broadcast %310 : vector<32x1xf32> to vector<32x128xf32>
    %316 = arith.mulf %314, %315 : vector<32x128xf32>
    %317 = arith.mulf %316, %174 : vector<32x128xf32>
    %c0_134 = arith.constant 0 : index
    %c7_135 = arith.constant 7 : index
    %318 = vector.load %arg2[%c0_134, %c7_135] : memref<32x12xf32, #tpu.memory_space<vmem>>, vector<32x1xf32>
    %319 = vector.broadcast %318 : vector<32x1xf32> to vector<32x128xf32>
    %320 = arith.subf %0, %319 : vector<32x128xf32>
    %321 = vector.broadcast %311 : vector<32x1xf32> to vector<32x128xf32>
    %322 = arith.mulf %320, %321 : vector<32x128xf32>
    %323 = arith.mulf %322, %189 : vector<32x128xf32>
    %324 = arith.addf %317, %323 : vector<32x128xf32>
    %c0_136 = arith.constant 0 : index
    %c25 = arith.constant 25 : index
    %325 = vector.load %arg3[%c0_136, %c25] : memref<32x54xf32, #tpu.memory_space<vmem>>, vector<32x1xf32>
    %c0_137 = arith.constant 0 : index
    %c34 = arith.constant 34 : index
    %326 = vector.load %arg3[%c0_137, %c34] : memref<32x54xf32, #tpu.memory_space<vmem>>, vector<32x1xf32>
    %c0_138 = arith.constant 0 : index
    %c5_139 = arith.constant 5 : index
    %327 = vector.load %arg2[%c0_138, %c5_139] : memref<32x12xf32, #tpu.memory_space<vmem>>, vector<32x1xf32>
    %328 = vector.broadcast %327 : vector<32x1xf32> to vector<32x128xf32>
    %329 = arith.subf %0, %328 : vector<32x128xf32>
    %330 = vector.broadcast %325 : vector<32x1xf32> to vector<32x128xf32>
    %331 = arith.mulf %329, %330 : vector<32x128xf32>
    %332 = arith.mulf %331, %189 : vector<32x128xf32>
    %c0_140 = arith.constant 0 : index
    %c8_141 = arith.constant 8 : index
    %333 = vector.load %arg2[%c0_140, %c8_141] : memref<32x12xf32, #tpu.memory_space<vmem>>, vector<32x1xf32>
    %334 = vector.broadcast %333 : vector<32x1xf32> to vector<32x128xf32>
    %335 = arith.subf %0, %334 : vector<32x128xf32>
    %336 = vector.broadcast %326 : vector<32x1xf32> to vector<32x128xf32>
    %337 = arith.mulf %335, %336 : vector<32x128xf32>
    %338 = arith.mulf %337, %204 : vector<32x128xf32>
    %339 = arith.addf %332, %338 : vector<32x128xf32>
    %c0_142 = arith.constant 0 : index
    %c26 = arith.constant 26 : index
    %340 = vector.load %arg3[%c0_142, %c26] : memref<32x54xf32, #tpu.memory_space<vmem>>, vector<32x1xf32>
    %c0_143 = arith.constant 0 : index
    %c35 = arith.constant 35 : index
    %341 = vector.load %arg3[%c0_143, %c35] : memref<32x54xf32, #tpu.memory_space<vmem>>, vector<32x1xf32>
    %c0_144 = arith.constant 0 : index
    %c6_145 = arith.constant 6 : index
    %342 = vector.load %arg2[%c0_144, %c6_145] : memref<32x12xf32, #tpu.memory_space<vmem>>, vector<32x1xf32>
    %343 = vector.broadcast %342 : vector<32x1xf32> to vector<32x128xf32>
    %344 = arith.subf %0, %343 : vector<32x128xf32>
    %345 = vector.broadcast %340 : vector<32x1xf32> to vector<32x128xf32>
    %346 = arith.mulf %344, %345 : vector<32x128xf32>
    %347 = arith.mulf %346, %204 : vector<32x128xf32>
    %c0_146 = arith.constant 0 : index
    %c9_147 = arith.constant 9 : index
    %348 = vector.load %arg2[%c0_146, %c9_147] : memref<32x12xf32, #tpu.memory_space<vmem>>, vector<32x1xf32>
    %349 = vector.broadcast %348 : vector<32x1xf32> to vector<32x128xf32>
    %350 = arith.subf %0, %349 : vector<32x128xf32>
    %351 = vector.broadcast %341 : vector<32x1xf32> to vector<32x128xf32>
    %352 = arith.mulf %350, %351 : vector<32x128xf32>
    %353 = arith.mulf %352, %219 : vector<32x128xf32>
    %354 = arith.addf %347, %353 : vector<32x128xf32>
    %c0_148 = arith.constant 0 : index
    %c27 = arith.constant 27 : index
    %355 = vector.load %arg3[%c0_148, %c27] : memref<32x54xf32, #tpu.memory_space<vmem>>, vector<32x1xf32>
    %c0_149 = arith.constant 0 : index
    %c36 = arith.constant 36 : index
    %356 = vector.load %arg3[%c0_149, %c36] : memref<32x54xf32, #tpu.memory_space<vmem>>, vector<32x1xf32>
    %c0_150 = arith.constant 0 : index
    %c7_151 = arith.constant 7 : index
    %357 = vector.load %arg2[%c0_150, %c7_151] : memref<32x12xf32, #tpu.memory_space<vmem>>, vector<32x1xf32>
    %358 = vector.broadcast %357 : vector<32x1xf32> to vector<32x128xf32>
    %359 = arith.subf %0, %358 : vector<32x128xf32>
    %360 = vector.broadcast %355 : vector<32x1xf32> to vector<32x128xf32>
    %361 = arith.mulf %359, %360 : vector<32x128xf32>
    %362 = arith.mulf %361, %219 : vector<32x128xf32>
    %c0_152 = arith.constant 0 : index
    %c10_153 = arith.constant 10 : index
    %363 = vector.load %arg2[%c0_152, %c10_153] : memref<32x12xf32, #tpu.memory_space<vmem>>, vector<32x1xf32>
    %364 = vector.broadcast %363 : vector<32x1xf32> to vector<32x128xf32>
    %365 = arith.subf %0, %364 : vector<32x128xf32>
    %366 = vector.broadcast %356 : vector<32x1xf32> to vector<32x128xf32>
    %367 = arith.mulf %365, %366 : vector<32x128xf32>
    %368 = arith.mulf %367, %234 : vector<32x128xf32>
    %369 = arith.addf %362, %368 : vector<32x128xf32>
    %c0_154 = arith.constant 0 : index
    %c28 = arith.constant 28 : index
    %370 = vector.load %arg3[%c0_154, %c28] : memref<32x54xf32, #tpu.memory_space<vmem>>, vector<32x1xf32>
    %c0_155 = arith.constant 0 : index
    %c37 = arith.constant 37 : index
    %371 = vector.load %arg3[%c0_155, %c37] : memref<32x54xf32, #tpu.memory_space<vmem>>, vector<32x1xf32>
    %c0_156 = arith.constant 0 : index
    %c8_157 = arith.constant 8 : index
    %372 = vector.load %arg2[%c0_156, %c8_157] : memref<32x12xf32, #tpu.memory_space<vmem>>, vector<32x1xf32>
    %373 = vector.broadcast %372 : vector<32x1xf32> to vector<32x128xf32>
    %374 = arith.subf %0, %373 : vector<32x128xf32>
    %375 = vector.broadcast %370 : vector<32x1xf32> to vector<32x128xf32>
    %376 = arith.mulf %374, %375 : vector<32x128xf32>
    %377 = arith.mulf %376, %234 : vector<32x128xf32>
    %c0_158 = arith.constant 0 : index
    %c11_159 = arith.constant 11 : index
    %378 = vector.load %arg2[%c0_158, %c11_159] : memref<32x12xf32, #tpu.memory_space<vmem>>, vector<32x1xf32>
    %379 = vector.broadcast %378 : vector<32x1xf32> to vector<32x128xf32>
    %380 = arith.subf %0, %379 : vector<32x128xf32>
    %381 = vector.broadcast %371 : vector<32x1xf32> to vector<32x128xf32>
    %382 = arith.mulf %380, %381 : vector<32x128xf32>
    %383 = arith.mulf %382, %249 : vector<32x128xf32>
    %384 = arith.addf %377, %383 : vector<32x128xf32>
    %c0_160 = arith.constant 0 : index
    %c38 = arith.constant 38 : index
    %385 = vector.load %arg3[%c0_160, %c38] : memref<32x54xf32, #tpu.memory_space<vmem>>, vector<32x1xf32>
    %c0_161 = arith.constant 0 : index
    %c46 = arith.constant 46 : index
    %386 = vector.load %arg3[%c0_161, %c46] : memref<32x54xf32, #tpu.memory_space<vmem>>, vector<32x1xf32>
    %c0_162 = arith.constant 0 : index
    %c0_163 = arith.constant 0 : index
    %387 = vector.load %arg2[%c0_162, %c0_163] : memref<32x12xf32, #tpu.memory_space<vmem>>, vector<32x1xf32>
    %388 = vector.broadcast %387 : vector<32x1xf32> to vector<32x128xf32>
    %389 = arith.subf %0, %388 : vector<32x128xf32>
    %390 = vector.broadcast %385 : vector<32x1xf32> to vector<32x128xf32>
    %391 = arith.mulf %389, %390 : vector<32x128xf32>
    %392 = arith.mulf %391, %264 : vector<32x128xf32>
    %c0_164 = arith.constant 0 : index
    %c4_165 = arith.constant 4 : index
    %393 = vector.load %arg2[%c0_164, %c4_165] : memref<32x12xf32, #tpu.memory_space<vmem>>, vector<32x1xf32>
    %394 = vector.broadcast %393 : vector<32x1xf32> to vector<32x128xf32>
    %395 = arith.subf %0, %394 : vector<32x128xf32>
    %396 = vector.broadcast %386 : vector<32x1xf32> to vector<32x128xf32>
    %397 = arith.mulf %395, %396 : vector<32x128xf32>
    %398 = arith.mulf %397, %279 : vector<32x128xf32>
    %399 = arith.addf %392, %398 : vector<32x128xf32>
    %c0_166 = arith.constant 0 : index
    %c39 = arith.constant 39 : index
    %400 = vector.load %arg3[%c0_166, %c39] : memref<32x54xf32, #tpu.memory_space<vmem>>, vector<32x1xf32>
    %c0_167 = arith.constant 0 : index
    %c47 = arith.constant 47 : index
    %401 = vector.load %arg3[%c0_167, %c47] : memref<32x54xf32, #tpu.memory_space<vmem>>, vector<32x1xf32>
    %c0_168 = arith.constant 0 : index
    %c1_169 = arith.constant 1 : index
    %402 = vector.load %arg2[%c0_168, %c1_169] : memref<32x12xf32, #tpu.memory_space<vmem>>, vector<32x1xf32>
    %403 = vector.broadcast %402 : vector<32x1xf32> to vector<32x128xf32>
    %404 = arith.subf %0, %403 : vector<32x128xf32>
    %405 = vector.broadcast %400 : vector<32x1xf32> to vector<32x128xf32>
    %406 = arith.mulf %404, %405 : vector<32x128xf32>
    %407 = arith.mulf %406, %279 : vector<32x128xf32>
    %c0_170 = arith.constant 0 : index
    %c5_171 = arith.constant 5 : index
    %408 = vector.load %arg2[%c0_170, %c5_171] : memref<32x12xf32, #tpu.memory_space<vmem>>, vector<32x1xf32>
    %409 = vector.broadcast %408 : vector<32x1xf32> to vector<32x128xf32>
    %410 = arith.subf %0, %409 : vector<32x128xf32>
    %411 = vector.broadcast %401 : vector<32x1xf32> to vector<32x128xf32>
    %412 = arith.mulf %410, %411 : vector<32x128xf32>
    %413 = arith.mulf %412, %294 : vector<32x128xf32>
    %414 = arith.addf %407, %413 : vector<32x128xf32>
    %c0_172 = arith.constant 0 : index
    %c40 = arith.constant 40 : index
    %415 = vector.load %arg3[%c0_172, %c40] : memref<32x54xf32, #tpu.memory_space<vmem>>, vector<32x1xf32>
    %c0_173 = arith.constant 0 : index
    %c48 = arith.constant 48 : index
    %416 = vector.load %arg3[%c0_173, %c48] : memref<32x54xf32, #tpu.memory_space<vmem>>, vector<32x1xf32>
    %c0_174 = arith.constant 0 : index
    %c2_175 = arith.constant 2 : index
    %417 = vector.load %arg2[%c0_174, %c2_175] : memref<32x12xf32, #tpu.memory_space<vmem>>, vector<32x1xf32>
    %418 = vector.broadcast %417 : vector<32x1xf32> to vector<32x128xf32>
    %419 = arith.subf %0, %418 : vector<32x128xf32>
    %420 = vector.broadcast %415 : vector<32x1xf32> to vector<32x128xf32>
    %421 = arith.mulf %419, %420 : vector<32x128xf32>
    %422 = arith.mulf %421, %294 : vector<32x128xf32>
    %c0_176 = arith.constant 0 : index
    %c6_177 = arith.constant 6 : index
    %423 = vector.load %arg2[%c0_176, %c6_177] : memref<32x12xf32, #tpu.memory_space<vmem>>, vector<32x1xf32>
    %424 = vector.broadcast %423 : vector<32x1xf32> to vector<32x128xf32>
    %425 = arith.subf %0, %424 : vector<32x128xf32>
    %426 = vector.broadcast %416 : vector<32x1xf32> to vector<32x128xf32>
    %427 = arith.mulf %425, %426 : vector<32x128xf32>
    %428 = arith.mulf %427, %309 : vector<32x128xf32>
    %429 = arith.addf %422, %428 : vector<32x128xf32>
    %c0_178 = arith.constant 0 : index
    %c41 = arith.constant 41 : index
    %430 = vector.load %arg3[%c0_178, %c41] : memref<32x54xf32, #tpu.memory_space<vmem>>, vector<32x1xf32>
    %c0_179 = arith.constant 0 : index
    %c49 = arith.constant 49 : index
    %431 = vector.load %arg3[%c0_179, %c49] : memref<32x54xf32, #tpu.memory_space<vmem>>, vector<32x1xf32>
    %c0_180 = arith.constant 0 : index
    %c3_181 = arith.constant 3 : index
    %432 = vector.load %arg2[%c0_180, %c3_181] : memref<32x12xf32, #tpu.memory_space<vmem>>, vector<32x1xf32>
    %433 = vector.broadcast %432 : vector<32x1xf32> to vector<32x128xf32>
    %434 = arith.subf %0, %433 : vector<32x128xf32>
    %435 = vector.broadcast %430 : vector<32x1xf32> to vector<32x128xf32>
    %436 = arith.mulf %434, %435 : vector<32x128xf32>
    %437 = arith.mulf %436, %309 : vector<32x128xf32>
    %c0_182 = arith.constant 0 : index
    %c7_183 = arith.constant 7 : index
    %438 = vector.load %arg2[%c0_182, %c7_183] : memref<32x12xf32, #tpu.memory_space<vmem>>, vector<32x1xf32>
    %439 = vector.broadcast %438 : vector<32x1xf32> to vector<32x128xf32>
    %440 = arith.subf %0, %439 : vector<32x128xf32>
    %441 = vector.broadcast %431 : vector<32x1xf32> to vector<32x128xf32>
    %442 = arith.mulf %440, %441 : vector<32x128xf32>
    %443 = arith.mulf %442, %324 : vector<32x128xf32>
    %444 = arith.addf %437, %443 : vector<32x128xf32>
    %c0_184 = arith.constant 0 : index
    %c42 = arith.constant 42 : index
    %445 = vector.load %arg3[%c0_184, %c42] : memref<32x54xf32, #tpu.memory_space<vmem>>, vector<32x1xf32>
    %c0_185 = arith.constant 0 : index
    %c50 = arith.constant 50 : index
    %446 = vector.load %arg3[%c0_185, %c50] : memref<32x54xf32, #tpu.memory_space<vmem>>, vector<32x1xf32>
    %c0_186 = arith.constant 0 : index
    %c4_187 = arith.constant 4 : index
    %447 = vector.load %arg2[%c0_186, %c4_187] : memref<32x12xf32, #tpu.memory_space<vmem>>, vector<32x1xf32>
    %448 = vector.broadcast %447 : vector<32x1xf32> to vector<32x128xf32>
    %449 = arith.subf %0, %448 : vector<32x128xf32>
    %450 = vector.broadcast %445 : vector<32x1xf32> to vector<32x128xf32>
    %451 = arith.mulf %449, %450 : vector<32x128xf32>
    %452 = arith.mulf %451, %324 : vector<32x128xf32>
    %c0_188 = arith.constant 0 : index
    %c8_189 = arith.constant 8 : index
    %453 = vector.load %arg2[%c0_188, %c8_189] : memref<32x12xf32, #tpu.memory_space<vmem>>, vector<32x1xf32>
    %454 = vector.broadcast %453 : vector<32x1xf32> to vector<32x128xf32>
    %455 = arith.subf %0, %454 : vector<32x128xf32>
    %456 = vector.broadcast %446 : vector<32x1xf32> to vector<32x128xf32>
    %457 = arith.mulf %455, %456 : vector<32x128xf32>
    %458 = arith.mulf %457, %339 : vector<32x128xf32>
    %459 = arith.addf %452, %458 : vector<32x128xf32>
    %c0_190 = arith.constant 0 : index
    %c43 = arith.constant 43 : index
    %460 = vector.load %arg3[%c0_190, %c43] : memref<32x54xf32, #tpu.memory_space<vmem>>, vector<32x1xf32>
    %c0_191 = arith.constant 0 : index
    %c51 = arith.constant 51 : index
    %461 = vector.load %arg3[%c0_191, %c51] : memref<32x54xf32, #tpu.memory_space<vmem>>, vector<32x1xf32>
    %c0_192 = arith.constant 0 : index
    %c5_193 = arith.constant 5 : index
    %462 = vector.load %arg2[%c0_192, %c5_193] : memref<32x12xf32, #tpu.memory_space<vmem>>, vector<32x1xf32>
    %463 = vector.broadcast %462 : vector<32x1xf32> to vector<32x128xf32>
    %464 = arith.subf %0, %463 : vector<32x128xf32>
    %465 = vector.broadcast %460 : vector<32x1xf32> to vector<32x128xf32>
    %466 = arith.mulf %464, %465 : vector<32x128xf32>
    %467 = arith.mulf %466, %339 : vector<32x128xf32>
    %c0_194 = arith.constant 0 : index
    %c9_195 = arith.constant 9 : index
    %468 = vector.load %arg2[%c0_194, %c9_195] : memref<32x12xf32, #tpu.memory_space<vmem>>, vector<32x1xf32>
    %469 = vector.broadcast %468 : vector<32x1xf32> to vector<32x128xf32>
    %470 = arith.subf %0, %469 : vector<32x128xf32>
    %471 = vector.broadcast %461 : vector<32x1xf32> to vector<32x128xf32>
    %472 = arith.mulf %470, %471 : vector<32x128xf32>
    %473 = arith.mulf %472, %354 : vector<32x128xf32>
    %474 = arith.addf %467, %473 : vector<32x128xf32>
    %c0_196 = arith.constant 0 : index
    %c44 = arith.constant 44 : index
    %475 = vector.load %arg3[%c0_196, %c44] : memref<32x54xf32, #tpu.memory_space<vmem>>, vector<32x1xf32>
    %c0_197 = arith.constant 0 : index
    %c52 = arith.constant 52 : index
    %476 = vector.load %arg3[%c0_197, %c52] : memref<32x54xf32, #tpu.memory_space<vmem>>, vector<32x1xf32>
    %c0_198 = arith.constant 0 : index
    %c6_199 = arith.constant 6 : index
    %477 = vector.load %arg2[%c0_198, %c6_199] : memref<32x12xf32, #tpu.memory_space<vmem>>, vector<32x1xf32>
    %478 = vector.broadcast %477 : vector<32x1xf32> to vector<32x128xf32>
    %479 = arith.subf %0, %478 : vector<32x128xf32>
    %480 = vector.broadcast %475 : vector<32x1xf32> to vector<32x128xf32>
    %481 = arith.mulf %479, %480 : vector<32x128xf32>
    %482 = arith.mulf %481, %354 : vector<32x128xf32>
    %c0_200 = arith.constant 0 : index
    %c10_201 = arith.constant 10 : index
    %483 = vector.load %arg2[%c0_200, %c10_201] : memref<32x12xf32, #tpu.memory_space<vmem>>, vector<32x1xf32>
    %484 = vector.broadcast %483 : vector<32x1xf32> to vector<32x128xf32>
    %485 = arith.subf %0, %484 : vector<32x128xf32>
    %486 = vector.broadcast %476 : vector<32x1xf32> to vector<32x128xf32>
    %487 = arith.mulf %485, %486 : vector<32x128xf32>
    %488 = arith.mulf %487, %369 : vector<32x128xf32>
    %489 = arith.addf %482, %488 : vector<32x128xf32>
    %c0_202 = arith.constant 0 : index
    %c45 = arith.constant 45 : index
    %490 = vector.load %arg3[%c0_202, %c45] : memref<32x54xf32, #tpu.memory_space<vmem>>, vector<32x1xf32>
    %c0_203 = arith.constant 0 : index
    %c53 = arith.constant 53 : index
    %491 = vector.load %arg3[%c0_203, %c53] : memref<32x54xf32, #tpu.memory_space<vmem>>, vector<32x1xf32>
    %c0_204 = arith.constant 0 : index
    %c7_205 = arith.constant 7 : index
    %492 = vector.load %arg2[%c0_204, %c7_205] : memref<32x12xf32, #tpu.memory_space<vmem>>, vector<32x1xf32>
    %493 = vector.broadcast %492 : vector<32x1xf32> to vector<32x128xf32>
    %494 = arith.subf %0, %493 : vector<32x128xf32>
    %495 = vector.broadcast %490 : vector<32x1xf32> to vector<32x128xf32>
    %496 = arith.mulf %494, %495 : vector<32x128xf32>
    %497 = arith.mulf %496, %369 : vector<32x128xf32>
    %c0_206 = arith.constant 0 : index
    %c11_207 = arith.constant 11 : index
    %498 = vector.load %arg2[%c0_206, %c11_207] : memref<32x12xf32, #tpu.memory_space<vmem>>, vector<32x1xf32>
    %499 = vector.broadcast %498 : vector<32x1xf32> to vector<32x128xf32>
    %500 = arith.subf %0, %499 : vector<32x128xf32>
    %501 = vector.broadcast %491 : vector<32x1xf32> to vector<32x128xf32>
    %502 = arith.mulf %500, %501 : vector<32x128xf32>
    %503 = arith.mulf %502, %384 : vector<32x128xf32>
    %504 = arith.addf %497, %503 : vector<32x128xf32>
    %505 = arith.negf %0 : vector<32x128xf32>
    %506 = math.exp %505 : vector<32x128xf32>
    %cst = arith.constant 1.000000e+00 : f32
    %507 = vector.broadcast %cst : f32 to vector<32x128xf32>
    %508 = arith.addf %507, %506 : vector<32x128xf32>
    %509 = arith.divf %507, %508 : vector<32x128xf32>
    %510 = arith.mulf %0, %509 : vector<32x128xf32>
    %511 = tpu.concatenate %510, %399, %414, %429, %444, %459, %474, %489, %504 in 0 : vector<32x128xf32>, vector<32x128xf32>, vector<32x128xf32>, vector<32x128xf32>, vector<32x128xf32>, vector<32x128xf32>, vector<32x128xf32>, vector<32x128xf32>, vector<32x128xf32> -> vector<288x128xf32>
    %c0_208 = arith.constant 0 : index
    %c0_209 = arith.constant 0 : index
    %512 = vector.load %arg4[%c0_208, %c0_209] : memref<16x288xf32, #tpu.memory_space<vmem>>, vector<16x288xf32>
    %cst_210 = arith.constant dense<0.000000e+00> : vector<16x128xf32>
    %513 = tpu.matmul %512, %511, %cst_210 {dimension_numbers = #tpu.dot_dimension_numbers<[1], [0], [0], [1], [0, 0, 1, 1], [], []>} : vector<16x288xf32>, vector<288x128xf32>, vector<16x128xf32> -> vector<16x128xf32>
    %c0_211 = arith.constant 0 : index
    %c0_212 = arith.constant 0 : index
    %514 = vector.load %arg5[%c0_211, %c0_212] : memref<16x12xf32, #tpu.memory_space<vmem>>, vector<16x1xf32>
    %515 = vector.broadcast %514 : vector<16x1xf32> to vector<16x128xf32>
    %516 = arith.cmpf oge, %513, %515 : vector<16x128xf32>
    %c0_213 = arith.constant 0 : index
    %c1_214 = arith.constant 1 : index
    %517 = vector.load %arg5[%c0_213, %c1_214] : memref<16x12xf32, #tpu.memory_space<vmem>>, vector<16x1xf32>
    %518 = vector.broadcast %517 : vector<16x1xf32> to vector<16x128xf32>
    %519 = arith.cmpf olt, %513, %518 : vector<16x128xf32>
    %520 = arith.andi %516, %519 : vector<16x128xi1>
    %521 = arith.extui %520 : vector<16x128xi1> to vector<16x128xi32>
    %522 = arith.sitofp %521 : vector<16x128xi32> to vector<16x128xf32>
    %c0_215 = arith.constant 0 : index
    %c1_216 = arith.constant 1 : index
    %523 = vector.load %arg5[%c0_215, %c1_216] : memref<16x12xf32, #tpu.memory_space<vmem>>, vector<16x1xf32>
    %524 = vector.broadcast %523 : vector<16x1xf32> to vector<16x128xf32>
    %525 = arith.cmpf oge, %513, %524 : vector<16x128xf32>
    %c0_217 = arith.constant 0 : index
    %c2_218 = arith.constant 2 : index
    %526 = vector.load %arg5[%c0_217, %c2_218] : memref<16x12xf32, #tpu.memory_space<vmem>>, vector<16x1xf32>
    %527 = vector.broadcast %526 : vector<16x1xf32> to vector<16x128xf32>
    %528 = arith.cmpf olt, %513, %527 : vector<16x128xf32>
    %529 = arith.andi %525, %528 : vector<16x128xi1>
    %530 = arith.extui %529 : vector<16x128xi1> to vector<16x128xi32>
    %531 = arith.sitofp %530 : vector<16x128xi32> to vector<16x128xf32>
    %c0_219 = arith.constant 0 : index
    %c2_220 = arith.constant 2 : index
    %532 = vector.load %arg5[%c0_219, %c2_220] : memref<16x12xf32, #tpu.memory_space<vmem>>, vector<16x1xf32>
    %533 = vector.broadcast %532 : vector<16x1xf32> to vector<16x128xf32>
    %534 = arith.cmpf oge, %513, %533 : vector<16x128xf32>
    %c0_221 = arith.constant 0 : index
    %c3_222 = arith.constant 3 : index
    %535 = vector.load %arg5[%c0_221, %c3_222] : memref<16x12xf32, #tpu.memory_space<vmem>>, vector<16x1xf32>
    %536 = vector.broadcast %535 : vector<16x1xf32> to vector<16x128xf32>
    %537 = arith.cmpf olt, %513, %536 : vector<16x128xf32>
    %538 = arith.andi %534, %537 : vector<16x128xi1>
    %539 = arith.extui %538 : vector<16x128xi1> to vector<16x128xi32>
    %540 = arith.sitofp %539 : vector<16x128xi32> to vector<16x128xf32>
    %c0_223 = arith.constant 0 : index
    %c3_224 = arith.constant 3 : index
    %541 = vector.load %arg5[%c0_223, %c3_224] : memref<16x12xf32, #tpu.memory_space<vmem>>, vector<16x1xf32>
    %542 = vector.broadcast %541 : vector<16x1xf32> to vector<16x128xf32>
    %543 = arith.cmpf oge, %513, %542 : vector<16x128xf32>
    %c0_225 = arith.constant 0 : index
    %c4_226 = arith.constant 4 : index
    %544 = vector.load %arg5[%c0_225, %c4_226] : memref<16x12xf32, #tpu.memory_space<vmem>>, vector<16x1xf32>
    %545 = vector.broadcast %544 : vector<16x1xf32> to vector<16x128xf32>
    %546 = arith.cmpf olt, %513, %545 : vector<16x128xf32>
    %547 = arith.andi %543, %546 : vector<16x128xi1>
    %548 = arith.extui %547 : vector<16x128xi1> to vector<16x128xi32>
    %549 = arith.sitofp %548 : vector<16x128xi32> to vector<16x128xf32>
    %c0_227 = arith.constant 0 : index
    %c4_228 = arith.constant 4 : index
    %550 = vector.load %arg5[%c0_227, %c4_228] : memref<16x12xf32, #tpu.memory_space<vmem>>, vector<16x1xf32>
    %551 = vector.broadcast %550 : vector<16x1xf32> to vector<16x128xf32>
    %552 = arith.cmpf oge, %513, %551 : vector<16x128xf32>
    %c0_229 = arith.constant 0 : index
    %c5_230 = arith.constant 5 : index
    %553 = vector.load %arg5[%c0_229, %c5_230] : memref<16x12xf32, #tpu.memory_space<vmem>>, vector<16x1xf32>
    %554 = vector.broadcast %553 : vector<16x1xf32> to vector<16x128xf32>
    %555 = arith.cmpf olt, %513, %554 : vector<16x128xf32>
    %556 = arith.andi %552, %555 : vector<16x128xi1>
    %557 = arith.extui %556 : vector<16x128xi1> to vector<16x128xi32>
    %558 = arith.sitofp %557 : vector<16x128xi32> to vector<16x128xf32>
    %c0_231 = arith.constant 0 : index
    %c5_232 = arith.constant 5 : index
    %559 = vector.load %arg5[%c0_231, %c5_232] : memref<16x12xf32, #tpu.memory_space<vmem>>, vector<16x1xf32>
    %560 = vector.broadcast %559 : vector<16x1xf32> to vector<16x128xf32>
    %561 = arith.cmpf oge, %513, %560 : vector<16x128xf32>
    %c0_233 = arith.constant 0 : index
    %c6_234 = arith.constant 6 : index
    %562 = vector.load %arg5[%c0_233, %c6_234] : memref<16x12xf32, #tpu.memory_space<vmem>>, vector<16x1xf32>
    %563 = vector.broadcast %562 : vector<16x1xf32> to vector<16x128xf32>
    %564 = arith.cmpf olt, %513, %563 : vector<16x128xf32>
    %565 = arith.andi %561, %564 : vector<16x128xi1>
    %566 = arith.extui %565 : vector<16x128xi1> to vector<16x128xi32>
    %567 = arith.sitofp %566 : vector<16x128xi32> to vector<16x128xf32>
    %c0_235 = arith.constant 0 : index
    %c6_236 = arith.constant 6 : index
    %568 = vector.load %arg5[%c0_235, %c6_236] : memref<16x12xf32, #tpu.memory_space<vmem>>, vector<16x1xf32>
    %569 = vector.broadcast %568 : vector<16x1xf32> to vector<16x128xf32>
    %570 = arith.cmpf oge, %513, %569 : vector<16x128xf32>
    %c0_237 = arith.constant 0 : index
    %c7_238 = arith.constant 7 : index
    %571 = vector.load %arg5[%c0_237, %c7_238] : memref<16x12xf32, #tpu.memory_space<vmem>>, vector<16x1xf32>
    %572 = vector.broadcast %571 : vector<16x1xf32> to vector<16x128xf32>
    %573 = arith.cmpf olt, %513, %572 : vector<16x128xf32>
    %574 = arith.andi %570, %573 : vector<16x128xi1>
    %575 = arith.extui %574 : vector<16x128xi1> to vector<16x128xi32>
    %576 = arith.sitofp %575 : vector<16x128xi32> to vector<16x128xf32>
    %c0_239 = arith.constant 0 : index
    %c7_240 = arith.constant 7 : index
    %577 = vector.load %arg5[%c0_239, %c7_240] : memref<16x12xf32, #tpu.memory_space<vmem>>, vector<16x1xf32>
    %578 = vector.broadcast %577 : vector<16x1xf32> to vector<16x128xf32>
    %579 = arith.cmpf oge, %513, %578 : vector<16x128xf32>
    %c0_241 = arith.constant 0 : index
    %c8_242 = arith.constant 8 : index
    %580 = vector.load %arg5[%c0_241, %c8_242] : memref<16x12xf32, #tpu.memory_space<vmem>>, vector<16x1xf32>
    %581 = vector.broadcast %580 : vector<16x1xf32> to vector<16x128xf32>
    %582 = arith.cmpf olt, %513, %581 : vector<16x128xf32>
    %583 = arith.andi %579, %582 : vector<16x128xi1>
    %584 = arith.extui %583 : vector<16x128xi1> to vector<16x128xi32>
    %585 = arith.sitofp %584 : vector<16x128xi32> to vector<16x128xf32>
    %c0_243 = arith.constant 0 : index
    %c8_244 = arith.constant 8 : index
    %586 = vector.load %arg5[%c0_243, %c8_244] : memref<16x12xf32, #tpu.memory_space<vmem>>, vector<16x1xf32>
    %587 = vector.broadcast %586 : vector<16x1xf32> to vector<16x128xf32>
    %588 = arith.cmpf oge, %513, %587 : vector<16x128xf32>
    %c0_245 = arith.constant 0 : index
    %c9_246 = arith.constant 9 : index
    %589 = vector.load %arg5[%c0_245, %c9_246] : memref<16x12xf32, #tpu.memory_space<vmem>>, vector<16x1xf32>
    %590 = vector.broadcast %589 : vector<16x1xf32> to vector<16x128xf32>
    %591 = arith.cmpf olt, %513, %590 : vector<16x128xf32>
    %592 = arith.andi %588, %591 : vector<16x128xi1>
    %593 = arith.extui %592 : vector<16x128xi1> to vector<16x128xi32>
    %594 = arith.sitofp %593 : vector<16x128xi32> to vector<16x128xf32>
    %c0_247 = arith.constant 0 : index
    %c9_248 = arith.constant 9 : index
    %595 = vector.load %arg5[%c0_247, %c9_248] : memref<16x12xf32, #tpu.memory_space<vmem>>, vector<16x1xf32>
    %596 = vector.broadcast %595 : vector<16x1xf32> to vector<16x128xf32>
    %597 = arith.cmpf oge, %513, %596 : vector<16x128xf32>
    %c0_249 = arith.constant 0 : index
    %c10_250 = arith.constant 10 : index
    %598 = vector.load %arg5[%c0_249, %c10_250] : memref<16x12xf32, #tpu.memory_space<vmem>>, vector<16x1xf32>
    %599 = vector.broadcast %598 : vector<16x1xf32> to vector<16x128xf32>
    %600 = arith.cmpf olt, %513, %599 : vector<16x128xf32>
    %601 = arith.andi %597, %600 : vector<16x128xi1>
    %602 = arith.extui %601 : vector<16x128xi1> to vector<16x128xi32>
    %603 = arith.sitofp %602 : vector<16x128xi32> to vector<16x128xf32>
    %c0_251 = arith.constant 0 : index
    %c10_252 = arith.constant 10 : index
    %604 = vector.load %arg5[%c0_251, %c10_252] : memref<16x12xf32, #tpu.memory_space<vmem>>, vector<16x1xf32>
    %605 = vector.broadcast %604 : vector<16x1xf32> to vector<16x128xf32>
    %606 = arith.cmpf oge, %513, %605 : vector<16x128xf32>
    %c0_253 = arith.constant 0 : index
    %c11_254 = arith.constant 11 : index
    %607 = vector.load %arg5[%c0_253, %c11_254] : memref<16x12xf32, #tpu.memory_space<vmem>>, vector<16x1xf32>
    %608 = vector.broadcast %607 : vector<16x1xf32> to vector<16x128xf32>
    %609 = arith.cmpf olt, %513, %608 : vector<16x128xf32>
    %610 = arith.andi %606, %609 : vector<16x128xi1>
    %611 = arith.extui %610 : vector<16x128xi1> to vector<16x128xi32>
    %612 = arith.sitofp %611 : vector<16x128xi32> to vector<16x128xf32>
    %c0_255 = arith.constant 0 : index
    %c0_256 = arith.constant 0 : index
    %613 = vector.load %arg6[%c0_255, %c0_256] : memref<16x54xf32, #tpu.memory_space<vmem>>, vector<16x1xf32>
    %c0_257 = arith.constant 0 : index
    %c10_258 = arith.constant 10 : index
    %614 = vector.load %arg6[%c0_257, %c10_258] : memref<16x54xf32, #tpu.memory_space<vmem>>, vector<16x1xf32>
    %c0_259 = arith.constant 0 : index
    %c0_260 = arith.constant 0 : index
    %615 = vector.load %arg5[%c0_259, %c0_260] : memref<16x12xf32, #tpu.memory_space<vmem>>, vector<16x1xf32>
    %616 = vector.broadcast %615 : vector<16x1xf32> to vector<16x128xf32>
    %617 = arith.subf %513, %616 : vector<16x128xf32>
    %618 = vector.broadcast %613 : vector<16x1xf32> to vector<16x128xf32>
    %619 = arith.mulf %617, %618 : vector<16x128xf32>
    %620 = arith.mulf %619, %522 : vector<16x128xf32>
    %c0_261 = arith.constant 0 : index
    %c2_262 = arith.constant 2 : index
    %621 = vector.load %arg5[%c0_261, %c2_262] : memref<16x12xf32, #tpu.memory_space<vmem>>, vector<16x1xf32>
    %622 = vector.broadcast %621 : vector<16x1xf32> to vector<16x128xf32>
    %623 = arith.subf %513, %622 : vector<16x128xf32>
    %624 = vector.broadcast %614 : vector<16x1xf32> to vector<16x128xf32>
    %625 = arith.mulf %623, %624 : vector<16x128xf32>
    %626 = arith.mulf %625, %531 : vector<16x128xf32>
    %627 = arith.addf %620, %626 : vector<16x128xf32>
    %c0_263 = arith.constant 0 : index
    %c1_264 = arith.constant 1 : index
    %628 = vector.load %arg6[%c0_263, %c1_264] : memref<16x54xf32, #tpu.memory_space<vmem>>, vector<16x1xf32>
    %c0_265 = arith.constant 0 : index
    %c11_266 = arith.constant 11 : index
    %629 = vector.load %arg6[%c0_265, %c11_266] : memref<16x54xf32, #tpu.memory_space<vmem>>, vector<16x1xf32>
    %c0_267 = arith.constant 0 : index
    %c1_268 = arith.constant 1 : index
    %630 = vector.load %arg5[%c0_267, %c1_268] : memref<16x12xf32, #tpu.memory_space<vmem>>, vector<16x1xf32>
    %631 = vector.broadcast %630 : vector<16x1xf32> to vector<16x128xf32>
    %632 = arith.subf %513, %631 : vector<16x128xf32>
    %633 = vector.broadcast %628 : vector<16x1xf32> to vector<16x128xf32>
    %634 = arith.mulf %632, %633 : vector<16x128xf32>
    %635 = arith.mulf %634, %531 : vector<16x128xf32>
    %c0_269 = arith.constant 0 : index
    %c3_270 = arith.constant 3 : index
    %636 = vector.load %arg5[%c0_269, %c3_270] : memref<16x12xf32, #tpu.memory_space<vmem>>, vector<16x1xf32>
    %637 = vector.broadcast %636 : vector<16x1xf32> to vector<16x128xf32>
    %638 = arith.subf %513, %637 : vector<16x128xf32>
    %639 = vector.broadcast %629 : vector<16x1xf32> to vector<16x128xf32>
    %640 = arith.mulf %638, %639 : vector<16x128xf32>
    %641 = arith.mulf %640, %540 : vector<16x128xf32>
    %642 = arith.addf %635, %641 : vector<16x128xf32>
    %c0_271 = arith.constant 0 : index
    %c2_272 = arith.constant 2 : index
    %643 = vector.load %arg6[%c0_271, %c2_272] : memref<16x54xf32, #tpu.memory_space<vmem>>, vector<16x1xf32>
    %c0_273 = arith.constant 0 : index
    %c12_274 = arith.constant 12 : index
    %644 = vector.load %arg6[%c0_273, %c12_274] : memref<16x54xf32, #tpu.memory_space<vmem>>, vector<16x1xf32>
    %c0_275 = arith.constant 0 : index
    %c2_276 = arith.constant 2 : index
    %645 = vector.load %arg5[%c0_275, %c2_276] : memref<16x12xf32, #tpu.memory_space<vmem>>, vector<16x1xf32>
    %646 = vector.broadcast %645 : vector<16x1xf32> to vector<16x128xf32>
    %647 = arith.subf %513, %646 : vector<16x128xf32>
    %648 = vector.broadcast %643 : vector<16x1xf32> to vector<16x128xf32>
    %649 = arith.mulf %647, %648 : vector<16x128xf32>
    %650 = arith.mulf %649, %540 : vector<16x128xf32>
    %c0_277 = arith.constant 0 : index
    %c4_278 = arith.constant 4 : index
    %651 = vector.load %arg5[%c0_277, %c4_278] : memref<16x12xf32, #tpu.memory_space<vmem>>, vector<16x1xf32>
    %652 = vector.broadcast %651 : vector<16x1xf32> to vector<16x128xf32>
    %653 = arith.subf %513, %652 : vector<16x128xf32>
    %654 = vector.broadcast %644 : vector<16x1xf32> to vector<16x128xf32>
    %655 = arith.mulf %653, %654 : vector<16x128xf32>
    %656 = arith.mulf %655, %549 : vector<16x128xf32>
    %657 = arith.addf %650, %656 : vector<16x128xf32>
    %c0_279 = arith.constant 0 : index
    %c3_280 = arith.constant 3 : index
    %658 = vector.load %arg6[%c0_279, %c3_280] : memref<16x54xf32, #tpu.memory_space<vmem>>, vector<16x1xf32>
    %c0_281 = arith.constant 0 : index
    %c13_282 = arith.constant 13 : index
    %659 = vector.load %arg6[%c0_281, %c13_282] : memref<16x54xf32, #tpu.memory_space<vmem>>, vector<16x1xf32>
    %c0_283 = arith.constant 0 : index
    %c3_284 = arith.constant 3 : index
    %660 = vector.load %arg5[%c0_283, %c3_284] : memref<16x12xf32, #tpu.memory_space<vmem>>, vector<16x1xf32>
    %661 = vector.broadcast %660 : vector<16x1xf32> to vector<16x128xf32>
    %662 = arith.subf %513, %661 : vector<16x128xf32>
    %663 = vector.broadcast %658 : vector<16x1xf32> to vector<16x128xf32>
    %664 = arith.mulf %662, %663 : vector<16x128xf32>
    %665 = arith.mulf %664, %549 : vector<16x128xf32>
    %c0_285 = arith.constant 0 : index
    %c5_286 = arith.constant 5 : index
    %666 = vector.load %arg5[%c0_285, %c5_286] : memref<16x12xf32, #tpu.memory_space<vmem>>, vector<16x1xf32>
    %667 = vector.broadcast %666 : vector<16x1xf32> to vector<16x128xf32>
    %668 = arith.subf %513, %667 : vector<16x128xf32>
    %669 = vector.broadcast %659 : vector<16x1xf32> to vector<16x128xf32>
    %670 = arith.mulf %668, %669 : vector<16x128xf32>
    %671 = arith.mulf %670, %558 : vector<16x128xf32>
    %672 = arith.addf %665, %671 : vector<16x128xf32>
    %c0_287 = arith.constant 0 : index
    %c4_288 = arith.constant 4 : index
    %673 = vector.load %arg6[%c0_287, %c4_288] : memref<16x54xf32, #tpu.memory_space<vmem>>, vector<16x1xf32>
    %c0_289 = arith.constant 0 : index
    %c14_290 = arith.constant 14 : index
    %674 = vector.load %arg6[%c0_289, %c14_290] : memref<16x54xf32, #tpu.memory_space<vmem>>, vector<16x1xf32>
    %c0_291 = arith.constant 0 : index
    %c4_292 = arith.constant 4 : index
    %675 = vector.load %arg5[%c0_291, %c4_292] : memref<16x12xf32, #tpu.memory_space<vmem>>, vector<16x1xf32>
    %676 = vector.broadcast %675 : vector<16x1xf32> to vector<16x128xf32>
    %677 = arith.subf %513, %676 : vector<16x128xf32>
    %678 = vector.broadcast %673 : vector<16x1xf32> to vector<16x128xf32>
    %679 = arith.mulf %677, %678 : vector<16x128xf32>
    %680 = arith.mulf %679, %558 : vector<16x128xf32>
    %c0_293 = arith.constant 0 : index
    %c6_294 = arith.constant 6 : index
    %681 = vector.load %arg5[%c0_293, %c6_294] : memref<16x12xf32, #tpu.memory_space<vmem>>, vector<16x1xf32>
    %682 = vector.broadcast %681 : vector<16x1xf32> to vector<16x128xf32>
    %683 = arith.subf %513, %682 : vector<16x128xf32>
    %684 = vector.broadcast %674 : vector<16x1xf32> to vector<16x128xf32>
    %685 = arith.mulf %683, %684 : vector<16x128xf32>
    %686 = arith.mulf %685, %567 : vector<16x128xf32>
    %687 = arith.addf %680, %686 : vector<16x128xf32>
    %c0_295 = arith.constant 0 : index
    %c5_296 = arith.constant 5 : index
    %688 = vector.load %arg6[%c0_295, %c5_296] : memref<16x54xf32, #tpu.memory_space<vmem>>, vector<16x1xf32>
    %c0_297 = arith.constant 0 : index
    %c15_298 = arith.constant 15 : index
    %689 = vector.load %arg6[%c0_297, %c15_298] : memref<16x54xf32, #tpu.memory_space<vmem>>, vector<16x1xf32>
    %c0_299 = arith.constant 0 : index
    %c5_300 = arith.constant 5 : index
    %690 = vector.load %arg5[%c0_299, %c5_300] : memref<16x12xf32, #tpu.memory_space<vmem>>, vector<16x1xf32>
    %691 = vector.broadcast %690 : vector<16x1xf32> to vector<16x128xf32>
    %692 = arith.subf %513, %691 : vector<16x128xf32>
    %693 = vector.broadcast %688 : vector<16x1xf32> to vector<16x128xf32>
    %694 = arith.mulf %692, %693 : vector<16x128xf32>
    %695 = arith.mulf %694, %567 : vector<16x128xf32>
    %c0_301 = arith.constant 0 : index
    %c7_302 = arith.constant 7 : index
    %696 = vector.load %arg5[%c0_301, %c7_302] : memref<16x12xf32, #tpu.memory_space<vmem>>, vector<16x1xf32>
    %697 = vector.broadcast %696 : vector<16x1xf32> to vector<16x128xf32>
    %698 = arith.subf %513, %697 : vector<16x128xf32>
    %699 = vector.broadcast %689 : vector<16x1xf32> to vector<16x128xf32>
    %700 = arith.mulf %698, %699 : vector<16x128xf32>
    %701 = arith.mulf %700, %576 : vector<16x128xf32>
    %702 = arith.addf %695, %701 : vector<16x128xf32>
    %c0_303 = arith.constant 0 : index
    %c6_304 = arith.constant 6 : index
    %703 = vector.load %arg6[%c0_303, %c6_304] : memref<16x54xf32, #tpu.memory_space<vmem>>, vector<16x1xf32>
    %c0_305 = arith.constant 0 : index
    %c16_306 = arith.constant 16 : index
    %704 = vector.load %arg6[%c0_305, %c16_306] : memref<16x54xf32, #tpu.memory_space<vmem>>, vector<16x1xf32>
    %c0_307 = arith.constant 0 : index
    %c6_308 = arith.constant 6 : index
    %705 = vector.load %arg5[%c0_307, %c6_308] : memref<16x12xf32, #tpu.memory_space<vmem>>, vector<16x1xf32>
    %706 = vector.broadcast %705 : vector<16x1xf32> to vector<16x128xf32>
    %707 = arith.subf %513, %706 : vector<16x128xf32>
    %708 = vector.broadcast %703 : vector<16x1xf32> to vector<16x128xf32>
    %709 = arith.mulf %707, %708 : vector<16x128xf32>
    %710 = arith.mulf %709, %576 : vector<16x128xf32>
    %c0_309 = arith.constant 0 : index
    %c8_310 = arith.constant 8 : index
    %711 = vector.load %arg5[%c0_309, %c8_310] : memref<16x12xf32, #tpu.memory_space<vmem>>, vector<16x1xf32>
    %712 = vector.broadcast %711 : vector<16x1xf32> to vector<16x128xf32>
    %713 = arith.subf %513, %712 : vector<16x128xf32>
    %714 = vector.broadcast %704 : vector<16x1xf32> to vector<16x128xf32>
    %715 = arith.mulf %713, %714 : vector<16x128xf32>
    %716 = arith.mulf %715, %585 : vector<16x128xf32>
    %717 = arith.addf %710, %716 : vector<16x128xf32>
    %c0_311 = arith.constant 0 : index
    %c7_312 = arith.constant 7 : index
    %718 = vector.load %arg6[%c0_311, %c7_312] : memref<16x54xf32, #tpu.memory_space<vmem>>, vector<16x1xf32>
    %c0_313 = arith.constant 0 : index
    %c17_314 = arith.constant 17 : index
    %719 = vector.load %arg6[%c0_313, %c17_314] : memref<16x54xf32, #tpu.memory_space<vmem>>, vector<16x1xf32>
    %c0_315 = arith.constant 0 : index
    %c7_316 = arith.constant 7 : index
    %720 = vector.load %arg5[%c0_315, %c7_316] : memref<16x12xf32, #tpu.memory_space<vmem>>, vector<16x1xf32>
    %721 = vector.broadcast %720 : vector<16x1xf32> to vector<16x128xf32>
    %722 = arith.subf %513, %721 : vector<16x128xf32>
    %723 = vector.broadcast %718 : vector<16x1xf32> to vector<16x128xf32>
    %724 = arith.mulf %722, %723 : vector<16x128xf32>
    %725 = arith.mulf %724, %585 : vector<16x128xf32>
    %c0_317 = arith.constant 0 : index
    %c9_318 = arith.constant 9 : index
    %726 = vector.load %arg5[%c0_317, %c9_318] : memref<16x12xf32, #tpu.memory_space<vmem>>, vector<16x1xf32>
    %727 = vector.broadcast %726 : vector<16x1xf32> to vector<16x128xf32>
    %728 = arith.subf %513, %727 : vector<16x128xf32>
    %729 = vector.broadcast %719 : vector<16x1xf32> to vector<16x128xf32>
    %730 = arith.mulf %728, %729 : vector<16x128xf32>
    %731 = arith.mulf %730, %594 : vector<16x128xf32>
    %732 = arith.addf %725, %731 : vector<16x128xf32>
    %c0_319 = arith.constant 0 : index
    %c8_320 = arith.constant 8 : index
    %733 = vector.load %arg6[%c0_319, %c8_320] : memref<16x54xf32, #tpu.memory_space<vmem>>, vector<16x1xf32>
    %c0_321 = arith.constant 0 : index
    %c18_322 = arith.constant 18 : index
    %734 = vector.load %arg6[%c0_321, %c18_322] : memref<16x54xf32, #tpu.memory_space<vmem>>, vector<16x1xf32>
    %c0_323 = arith.constant 0 : index
    %c8_324 = arith.constant 8 : index
    %735 = vector.load %arg5[%c0_323, %c8_324] : memref<16x12xf32, #tpu.memory_space<vmem>>, vector<16x1xf32>
    %736 = vector.broadcast %735 : vector<16x1xf32> to vector<16x128xf32>
    %737 = arith.subf %513, %736 : vector<16x128xf32>
    %738 = vector.broadcast %733 : vector<16x1xf32> to vector<16x128xf32>
    %739 = arith.mulf %737, %738 : vector<16x128xf32>
    %740 = arith.mulf %739, %594 : vector<16x128xf32>
    %c0_325 = arith.constant 0 : index
    %c10_326 = arith.constant 10 : index
    %741 = vector.load %arg5[%c0_325, %c10_326] : memref<16x12xf32, #tpu.memory_space<vmem>>, vector<16x1xf32>
    %742 = vector.broadcast %741 : vector<16x1xf32> to vector<16x128xf32>
    %743 = arith.subf %513, %742 : vector<16x128xf32>
    %744 = vector.broadcast %734 : vector<16x1xf32> to vector<16x128xf32>
    %745 = arith.mulf %743, %744 : vector<16x128xf32>
    %746 = arith.mulf %745, %603 : vector<16x128xf32>
    %747 = arith.addf %740, %746 : vector<16x128xf32>
    %c0_327 = arith.constant 0 : index
    %c9_328 = arith.constant 9 : index
    %748 = vector.load %arg6[%c0_327, %c9_328] : memref<16x54xf32, #tpu.memory_space<vmem>>, vector<16x1xf32>
    %c0_329 = arith.constant 0 : index
    %c19_330 = arith.constant 19 : index
    %749 = vector.load %arg6[%c0_329, %c19_330] : memref<16x54xf32, #tpu.memory_space<vmem>>, vector<16x1xf32>
    %c0_331 = arith.constant 0 : index
    %c9_332 = arith.constant 9 : index
    %750 = vector.load %arg5[%c0_331, %c9_332] : memref<16x12xf32, #tpu.memory_space<vmem>>, vector<16x1xf32>
    %751 = vector.broadcast %750 : vector<16x1xf32> to vector<16x128xf32>
    %752 = arith.subf %513, %751 : vector<16x128xf32>
    %753 = vector.broadcast %748 : vector<16x1xf32> to vector<16x128xf32>
    %754 = arith.mulf %752, %753 : vector<16x128xf32>
    %755 = arith.mulf %754, %603 : vector<16x128xf32>
    %c0_333 = arith.constant 0 : index
    %c11_334 = arith.constant 11 : index
    %756 = vector.load %arg5[%c0_333, %c11_334] : memref<16x12xf32, #tpu.memory_space<vmem>>, vector<16x1xf32>
    %757 = vector.broadcast %756 : vector<16x1xf32> to vector<16x128xf32>
    %758 = arith.subf %513, %757 : vector<16x128xf32>
    %759 = vector.broadcast %749 : vector<16x1xf32> to vector<16x128xf32>
    %760 = arith.mulf %758, %759 : vector<16x128xf32>
    %761 = arith.mulf %760, %612 : vector<16x128xf32>
    %762 = arith.addf %755, %761 : vector<16x128xf32>
    %c0_335 = arith.constant 0 : index
    %c20_336 = arith.constant 20 : index
    %763 = vector.load %arg6[%c0_335, %c20_336] : memref<16x54xf32, #tpu.memory_space<vmem>>, vector<16x1xf32>
    %c0_337 = arith.constant 0 : index
    %c29_338 = arith.constant 29 : index
    %764 = vector.load %arg6[%c0_337, %c29_338] : memref<16x54xf32, #tpu.memory_space<vmem>>, vector<16x1xf32>
    %c0_339 = arith.constant 0 : index
    %c0_340 = arith.constant 0 : index
    %765 = vector.load %arg5[%c0_339, %c0_340] : memref<16x12xf32, #tpu.memory_space<vmem>>, vector<16x1xf32>
    %766 = vector.broadcast %765 : vector<16x1xf32> to vector<16x128xf32>
    %767 = arith.subf %513, %766 : vector<16x128xf32>
    %768 = vector.broadcast %763 : vector<16x1xf32> to vector<16x128xf32>
    %769 = arith.mulf %767, %768 : vector<16x128xf32>
    %770 = arith.mulf %769, %627 : vector<16x128xf32>
    %c0_341 = arith.constant 0 : index
    %c3_342 = arith.constant 3 : index
    %771 = vector.load %arg5[%c0_341, %c3_342] : memref<16x12xf32, #tpu.memory_space<vmem>>, vector<16x1xf32>
    %772 = vector.broadcast %771 : vector<16x1xf32> to vector<16x128xf32>
    %773 = arith.subf %513, %772 : vector<16x128xf32>
    %774 = vector.broadcast %764 : vector<16x1xf32> to vector<16x128xf32>
    %775 = arith.mulf %773, %774 : vector<16x128xf32>
    %776 = arith.mulf %775, %642 : vector<16x128xf32>
    %777 = arith.addf %770, %776 : vector<16x128xf32>
    %c0_343 = arith.constant 0 : index
    %c21_344 = arith.constant 21 : index
    %778 = vector.load %arg6[%c0_343, %c21_344] : memref<16x54xf32, #tpu.memory_space<vmem>>, vector<16x1xf32>
    %c0_345 = arith.constant 0 : index
    %c30_346 = arith.constant 30 : index
    %779 = vector.load %arg6[%c0_345, %c30_346] : memref<16x54xf32, #tpu.memory_space<vmem>>, vector<16x1xf32>
    %c0_347 = arith.constant 0 : index
    %c1_348 = arith.constant 1 : index
    %780 = vector.load %arg5[%c0_347, %c1_348] : memref<16x12xf32, #tpu.memory_space<vmem>>, vector<16x1xf32>
    %781 = vector.broadcast %780 : vector<16x1xf32> to vector<16x128xf32>
    %782 = arith.subf %513, %781 : vector<16x128xf32>
    %783 = vector.broadcast %778 : vector<16x1xf32> to vector<16x128xf32>
    %784 = arith.mulf %782, %783 : vector<16x128xf32>
    %785 = arith.mulf %784, %642 : vector<16x128xf32>
    %c0_349 = arith.constant 0 : index
    %c4_350 = arith.constant 4 : index
    %786 = vector.load %arg5[%c0_349, %c4_350] : memref<16x12xf32, #tpu.memory_space<vmem>>, vector<16x1xf32>
    %787 = vector.broadcast %786 : vector<16x1xf32> to vector<16x128xf32>
    %788 = arith.subf %513, %787 : vector<16x128xf32>
    %789 = vector.broadcast %779 : vector<16x1xf32> to vector<16x128xf32>
    %790 = arith.mulf %788, %789 : vector<16x128xf32>
    %791 = arith.mulf %790, %657 : vector<16x128xf32>
    %792 = arith.addf %785, %791 : vector<16x128xf32>
    %c0_351 = arith.constant 0 : index
    %c22_352 = arith.constant 22 : index
    %793 = vector.load %arg6[%c0_351, %c22_352] : memref<16x54xf32, #tpu.memory_space<vmem>>, vector<16x1xf32>
    %c0_353 = arith.constant 0 : index
    %c31_354 = arith.constant 31 : index
    %794 = vector.load %arg6[%c0_353, %c31_354] : memref<16x54xf32, #tpu.memory_space<vmem>>, vector<16x1xf32>
    %c0_355 = arith.constant 0 : index
    %c2_356 = arith.constant 2 : index
    %795 = vector.load %arg5[%c0_355, %c2_356] : memref<16x12xf32, #tpu.memory_space<vmem>>, vector<16x1xf32>
    %796 = vector.broadcast %795 : vector<16x1xf32> to vector<16x128xf32>
    %797 = arith.subf %513, %796 : vector<16x128xf32>
    %798 = vector.broadcast %793 : vector<16x1xf32> to vector<16x128xf32>
    %799 = arith.mulf %797, %798 : vector<16x128xf32>
    %800 = arith.mulf %799, %657 : vector<16x128xf32>
    %c0_357 = arith.constant 0 : index
    %c5_358 = arith.constant 5 : index
    %801 = vector.load %arg5[%c0_357, %c5_358] : memref<16x12xf32, #tpu.memory_space<vmem>>, vector<16x1xf32>
    %802 = vector.broadcast %801 : vector<16x1xf32> to vector<16x128xf32>
    %803 = arith.subf %513, %802 : vector<16x128xf32>
    %804 = vector.broadcast %794 : vector<16x1xf32> to vector<16x128xf32>
    %805 = arith.mulf %803, %804 : vector<16x128xf32>
    %806 = arith.mulf %805, %672 : vector<16x128xf32>
    %807 = arith.addf %800, %806 : vector<16x128xf32>
    %c0_359 = arith.constant 0 : index
    %c23_360 = arith.constant 23 : index
    %808 = vector.load %arg6[%c0_359, %c23_360] : memref<16x54xf32, #tpu.memory_space<vmem>>, vector<16x1xf32>
    %c0_361 = arith.constant 0 : index
    %c32_362 = arith.constant 32 : index
    %809 = vector.load %arg6[%c0_361, %c32_362] : memref<16x54xf32, #tpu.memory_space<vmem>>, vector<16x1xf32>
    %c0_363 = arith.constant 0 : index
    %c3_364 = arith.constant 3 : index
    %810 = vector.load %arg5[%c0_363, %c3_364] : memref<16x12xf32, #tpu.memory_space<vmem>>, vector<16x1xf32>
    %811 = vector.broadcast %810 : vector<16x1xf32> to vector<16x128xf32>
    %812 = arith.subf %513, %811 : vector<16x128xf32>
    %813 = vector.broadcast %808 : vector<16x1xf32> to vector<16x128xf32>
    %814 = arith.mulf %812, %813 : vector<16x128xf32>
    %815 = arith.mulf %814, %672 : vector<16x128xf32>
    %c0_365 = arith.constant 0 : index
    %c6_366 = arith.constant 6 : index
    %816 = vector.load %arg5[%c0_365, %c6_366] : memref<16x12xf32, #tpu.memory_space<vmem>>, vector<16x1xf32>
    %817 = vector.broadcast %816 : vector<16x1xf32> to vector<16x128xf32>
    %818 = arith.subf %513, %817 : vector<16x128xf32>
    %819 = vector.broadcast %809 : vector<16x1xf32> to vector<16x128xf32>
    %820 = arith.mulf %818, %819 : vector<16x128xf32>
    %821 = arith.mulf %820, %687 : vector<16x128xf32>
    %822 = arith.addf %815, %821 : vector<16x128xf32>
    %c0_367 = arith.constant 0 : index
    %c24_368 = arith.constant 24 : index
    %823 = vector.load %arg6[%c0_367, %c24_368] : memref<16x54xf32, #tpu.memory_space<vmem>>, vector<16x1xf32>
    %c0_369 = arith.constant 0 : index
    %c33_370 = arith.constant 33 : index
    %824 = vector.load %arg6[%c0_369, %c33_370] : memref<16x54xf32, #tpu.memory_space<vmem>>, vector<16x1xf32>
    %c0_371 = arith.constant 0 : index
    %c4_372 = arith.constant 4 : index
    %825 = vector.load %arg5[%c0_371, %c4_372] : memref<16x12xf32, #tpu.memory_space<vmem>>, vector<16x1xf32>
    %826 = vector.broadcast %825 : vector<16x1xf32> to vector<16x128xf32>
    %827 = arith.subf %513, %826 : vector<16x128xf32>
    %828 = vector.broadcast %823 : vector<16x1xf32> to vector<16x128xf32>
    %829 = arith.mulf %827, %828 : vector<16x128xf32>
    %830 = arith.mulf %829, %687 : vector<16x128xf32>
    %c0_373 = arith.constant 0 : index
    %c7_374 = arith.constant 7 : index
    %831 = vector.load %arg5[%c0_373, %c7_374] : memref<16x12xf32, #tpu.memory_space<vmem>>, vector<16x1xf32>
    %832 = vector.broadcast %831 : vector<16x1xf32> to vector<16x128xf32>
    %833 = arith.subf %513, %832 : vector<16x128xf32>
    %834 = vector.broadcast %824 : vector<16x1xf32> to vector<16x128xf32>
    %835 = arith.mulf %833, %834 : vector<16x128xf32>
    %836 = arith.mulf %835, %702 : vector<16x128xf32>
    %837 = arith.addf %830, %836 : vector<16x128xf32>
    %c0_375 = arith.constant 0 : index
    %c25_376 = arith.constant 25 : index
    %838 = vector.load %arg6[%c0_375, %c25_376] : memref<16x54xf32, #tpu.memory_space<vmem>>, vector<16x1xf32>
    %c0_377 = arith.constant 0 : index
    %c34_378 = arith.constant 34 : index
    %839 = vector.load %arg6[%c0_377, %c34_378] : memref<16x54xf32, #tpu.memory_space<vmem>>, vector<16x1xf32>
    %c0_379 = arith.constant 0 : index
    %c5_380 = arith.constant 5 : index
    %840 = vector.load %arg5[%c0_379, %c5_380] : memref<16x12xf32, #tpu.memory_space<vmem>>, vector<16x1xf32>
    %841 = vector.broadcast %840 : vector<16x1xf32> to vector<16x128xf32>
    %842 = arith.subf %513, %841 : vector<16x128xf32>
    %843 = vector.broadcast %838 : vector<16x1xf32> to vector<16x128xf32>
    %844 = arith.mulf %842, %843 : vector<16x128xf32>
    %845 = arith.mulf %844, %702 : vector<16x128xf32>
    %c0_381 = arith.constant 0 : index
    %c8_382 = arith.constant 8 : index
    %846 = vector.load %arg5[%c0_381, %c8_382] : memref<16x12xf32, #tpu.memory_space<vmem>>, vector<16x1xf32>
    %847 = vector.broadcast %846 : vector<16x1xf32> to vector<16x128xf32>
    %848 = arith.subf %513, %847 : vector<16x128xf32>
    %849 = vector.broadcast %839 : vector<16x1xf32> to vector<16x128xf32>
    %850 = arith.mulf %848, %849 : vector<16x128xf32>
    %851 = arith.mulf %850, %717 : vector<16x128xf32>
    %852 = arith.addf %845, %851 : vector<16x128xf32>
    %c0_383 = arith.constant 0 : index
    %c26_384 = arith.constant 26 : index
    %853 = vector.load %arg6[%c0_383, %c26_384] : memref<16x54xf32, #tpu.memory_space<vmem>>, vector<16x1xf32>
    %c0_385 = arith.constant 0 : index
    %c35_386 = arith.constant 35 : index
    %854 = vector.load %arg6[%c0_385, %c35_386] : memref<16x54xf32, #tpu.memory_space<vmem>>, vector<16x1xf32>
    %c0_387 = arith.constant 0 : index
    %c6_388 = arith.constant 6 : index
    %855 = vector.load %arg5[%c0_387, %c6_388] : memref<16x12xf32, #tpu.memory_space<vmem>>, vector<16x1xf32>
    %856 = vector.broadcast %855 : vector<16x1xf32> to vector<16x128xf32>
    %857 = arith.subf %513, %856 : vector<16x128xf32>
    %858 = vector.broadcast %853 : vector<16x1xf32> to vector<16x128xf32>
    %859 = arith.mulf %857, %858 : vector<16x128xf32>
    %860 = arith.mulf %859, %717 : vector<16x128xf32>
    %c0_389 = arith.constant 0 : index
    %c9_390 = arith.constant 9 : index
    %861 = vector.load %arg5[%c0_389, %c9_390] : memref<16x12xf32, #tpu.memory_space<vmem>>, vector<16x1xf32>
    %862 = vector.broadcast %861 : vector<16x1xf32> to vector<16x128xf32>
    %863 = arith.subf %513, %862 : vector<16x128xf32>
    %864 = vector.broadcast %854 : vector<16x1xf32> to vector<16x128xf32>
    %865 = arith.mulf %863, %864 : vector<16x128xf32>
    %866 = arith.mulf %865, %732 : vector<16x128xf32>
    %867 = arith.addf %860, %866 : vector<16x128xf32>
    %c0_391 = arith.constant 0 : index
    %c27_392 = arith.constant 27 : index
    %868 = vector.load %arg6[%c0_391, %c27_392] : memref<16x54xf32, #tpu.memory_space<vmem>>, vector<16x1xf32>
    %c0_393 = arith.constant 0 : index
    %c36_394 = arith.constant 36 : index
    %869 = vector.load %arg6[%c0_393, %c36_394] : memref<16x54xf32, #tpu.memory_space<vmem>>, vector<16x1xf32>
    %c0_395 = arith.constant 0 : index
    %c7_396 = arith.constant 7 : index
    %870 = vector.load %arg5[%c0_395, %c7_396] : memref<16x12xf32, #tpu.memory_space<vmem>>, vector<16x1xf32>
    %871 = vector.broadcast %870 : vector<16x1xf32> to vector<16x128xf32>
    %872 = arith.subf %513, %871 : vector<16x128xf32>
    %873 = vector.broadcast %868 : vector<16x1xf32> to vector<16x128xf32>
    %874 = arith.mulf %872, %873 : vector<16x128xf32>
    %875 = arith.mulf %874, %732 : vector<16x128xf32>
    %c0_397 = arith.constant 0 : index
    %c10_398 = arith.constant 10 : index
    %876 = vector.load %arg5[%c0_397, %c10_398] : memref<16x12xf32, #tpu.memory_space<vmem>>, vector<16x1xf32>
    %877 = vector.broadcast %876 : vector<16x1xf32> to vector<16x128xf32>
    %878 = arith.subf %513, %877 : vector<16x128xf32>
    %879 = vector.broadcast %869 : vector<16x1xf32> to vector<16x128xf32>
    %880 = arith.mulf %878, %879 : vector<16x128xf32>
    %881 = arith.mulf %880, %747 : vector<16x128xf32>
    %882 = arith.addf %875, %881 : vector<16x128xf32>
    %c0_399 = arith.constant 0 : index
    %c28_400 = arith.constant 28 : index
    %883 = vector.load %arg6[%c0_399, %c28_400] : memref<16x54xf32, #tpu.memory_space<vmem>>, vector<16x1xf32>
    %c0_401 = arith.constant 0 : index
    %c37_402 = arith.constant 37 : index
    %884 = vector.load %arg6[%c0_401, %c37_402] : memref<16x54xf32, #tpu.memory_space<vmem>>, vector<16x1xf32>
    %c0_403 = arith.constant 0 : index
    %c8_404 = arith.constant 8 : index
    %885 = vector.load %arg5[%c0_403, %c8_404] : memref<16x12xf32, #tpu.memory_space<vmem>>, vector<16x1xf32>
    %886 = vector.broadcast %885 : vector<16x1xf32> to vector<16x128xf32>
    %887 = arith.subf %513, %886 : vector<16x128xf32>
    %888 = vector.broadcast %883 : vector<16x1xf32> to vector<16x128xf32>
    %889 = arith.mulf %887, %888 : vector<16x128xf32>
    %890 = arith.mulf %889, %747 : vector<16x128xf32>
    %c0_405 = arith.constant 0 : index
    %c11_406 = arith.constant 11 : index
    %891 = vector.load %arg5[%c0_405, %c11_406] : memref<16x12xf32, #tpu.memory_space<vmem>>, vector<16x1xf32>
    %892 = vector.broadcast %891 : vector<16x1xf32> to vector<16x128xf32>
    %893 = arith.subf %513, %892 : vector<16x128xf32>
    %894 = vector.broadcast %884 : vector<16x1xf32> to vector<16x128xf32>
    %895 = arith.mulf %893, %894 : vector<16x128xf32>
    %896 = arith.mulf %895, %762 : vector<16x128xf32>
    %897 = arith.addf %890, %896 : vector<16x128xf32>
    %c0_407 = arith.constant 0 : index
    %c38_408 = arith.constant 38 : index
    %898 = vector.load %arg6[%c0_407, %c38_408] : memref<16x54xf32, #tpu.memory_space<vmem>>, vector<16x1xf32>
    %c0_409 = arith.constant 0 : index
    %c46_410 = arith.constant 46 : index
    %899 = vector.load %arg6[%c0_409, %c46_410] : memref<16x54xf32, #tpu.memory_space<vmem>>, vector<16x1xf32>
    %c0_411 = arith.constant 0 : index
    %c0_412 = arith.constant 0 : index
    %900 = vector.load %arg5[%c0_411, %c0_412] : memref<16x12xf32, #tpu.memory_space<vmem>>, vector<16x1xf32>
    %901 = vector.broadcast %900 : vector<16x1xf32> to vector<16x128xf32>
    %902 = arith.subf %513, %901 : vector<16x128xf32>
    %903 = vector.broadcast %898 : vector<16x1xf32> to vector<16x128xf32>
    %904 = arith.mulf %902, %903 : vector<16x128xf32>
    %905 = arith.mulf %904, %777 : vector<16x128xf32>
    %c0_413 = arith.constant 0 : index
    %c4_414 = arith.constant 4 : index
    %906 = vector.load %arg5[%c0_413, %c4_414] : memref<16x12xf32, #tpu.memory_space<vmem>>, vector<16x1xf32>
    %907 = vector.broadcast %906 : vector<16x1xf32> to vector<16x128xf32>
    %908 = arith.subf %513, %907 : vector<16x128xf32>
    %909 = vector.broadcast %899 : vector<16x1xf32> to vector<16x128xf32>
    %910 = arith.mulf %908, %909 : vector<16x128xf32>
    %911 = arith.mulf %910, %792 : vector<16x128xf32>
    %912 = arith.addf %905, %911 : vector<16x128xf32>
    %c0_415 = arith.constant 0 : index
    %c39_416 = arith.constant 39 : index
    %913 = vector.load %arg6[%c0_415, %c39_416] : memref<16x54xf32, #tpu.memory_space<vmem>>, vector<16x1xf32>
    %c0_417 = arith.constant 0 : index
    %c47_418 = arith.constant 47 : index
    %914 = vector.load %arg6[%c0_417, %c47_418] : memref<16x54xf32, #tpu.memory_space<vmem>>, vector<16x1xf32>
    %c0_419 = arith.constant 0 : index
    %c1_420 = arith.constant 1 : index
    %915 = vector.load %arg5[%c0_419, %c1_420] : memref<16x12xf32, #tpu.memory_space<vmem>>, vector<16x1xf32>
    %916 = vector.broadcast %915 : vector<16x1xf32> to vector<16x128xf32>
    %917 = arith.subf %513, %916 : vector<16x128xf32>
    %918 = vector.broadcast %913 : vector<16x1xf32> to vector<16x128xf32>
    %919 = arith.mulf %917, %918 : vector<16x128xf32>
    %920 = arith.mulf %919, %792 : vector<16x128xf32>
    %c0_421 = arith.constant 0 : index
    %c5_422 = arith.constant 5 : index
    %921 = vector.load %arg5[%c0_421, %c5_422] : memref<16x12xf32, #tpu.memory_space<vmem>>, vector<16x1xf32>
    %922 = vector.broadcast %921 : vector<16x1xf32> to vector<16x128xf32>
    %923 = arith.subf %513, %922 : vector<16x128xf32>
    %924 = vector.broadcast %914 : vector<16x1xf32> to vector<16x128xf32>
    %925 = arith.mulf %923, %924 : vector<16x128xf32>
    %926 = arith.mulf %925, %807 : vector<16x128xf32>
    %927 = arith.addf %920, %926 : vector<16x128xf32>
    %c0_423 = arith.constant 0 : index
    %c40_424 = arith.constant 40 : index
    %928 = vector.load %arg6[%c0_423, %c40_424] : memref<16x54xf32, #tpu.memory_space<vmem>>, vector<16x1xf32>
    %c0_425 = arith.constant 0 : index
    %c48_426 = arith.constant 48 : index
    %929 = vector.load %arg6[%c0_425, %c48_426] : memref<16x54xf32, #tpu.memory_space<vmem>>, vector<16x1xf32>
    %c0_427 = arith.constant 0 : index
    %c2_428 = arith.constant 2 : index
    %930 = vector.load %arg5[%c0_427, %c2_428] : memref<16x12xf32, #tpu.memory_space<vmem>>, vector<16x1xf32>
    %931 = vector.broadcast %930 : vector<16x1xf32> to vector<16x128xf32>
    %932 = arith.subf %513, %931 : vector<16x128xf32>
    %933 = vector.broadcast %928 : vector<16x1xf32> to vector<16x128xf32>
    %934 = arith.mulf %932, %933 : vector<16x128xf32>
    %935 = arith.mulf %934, %807 : vector<16x128xf32>
    %c0_429 = arith.constant 0 : index
    %c6_430 = arith.constant 6 : index
    %936 = vector.load %arg5[%c0_429, %c6_430] : memref<16x12xf32, #tpu.memory_space<vmem>>, vector<16x1xf32>
    %937 = vector.broadcast %936 : vector<16x1xf32> to vector<16x128xf32>
    %938 = arith.subf %513, %937 : vector<16x128xf32>
    %939 = vector.broadcast %929 : vector<16x1xf32> to vector<16x128xf32>
    %940 = arith.mulf %938, %939 : vector<16x128xf32>
    %941 = arith.mulf %940, %822 : vector<16x128xf32>
    %942 = arith.addf %935, %941 : vector<16x128xf32>
    %c0_431 = arith.constant 0 : index
    %c41_432 = arith.constant 41 : index
    %943 = vector.load %arg6[%c0_431, %c41_432] : memref<16x54xf32, #tpu.memory_space<vmem>>, vector<16x1xf32>
    %c0_433 = arith.constant 0 : index
    %c49_434 = arith.constant 49 : index
    %944 = vector.load %arg6[%c0_433, %c49_434] : memref<16x54xf32, #tpu.memory_space<vmem>>, vector<16x1xf32>
    %c0_435 = arith.constant 0 : index
    %c3_436 = arith.constant 3 : index
    %945 = vector.load %arg5[%c0_435, %c3_436] : memref<16x12xf32, #tpu.memory_space<vmem>>, vector<16x1xf32>
    %946 = vector.broadcast %945 : vector<16x1xf32> to vector<16x128xf32>
    %947 = arith.subf %513, %946 : vector<16x128xf32>
    %948 = vector.broadcast %943 : vector<16x1xf32> to vector<16x128xf32>
    %949 = arith.mulf %947, %948 : vector<16x128xf32>
    %950 = arith.mulf %949, %822 : vector<16x128xf32>
    %c0_437 = arith.constant 0 : index
    %c7_438 = arith.constant 7 : index
    %951 = vector.load %arg5[%c0_437, %c7_438] : memref<16x12xf32, #tpu.memory_space<vmem>>, vector<16x1xf32>
    %952 = vector.broadcast %951 : vector<16x1xf32> to vector<16x128xf32>
    %953 = arith.subf %513, %952 : vector<16x128xf32>
    %954 = vector.broadcast %944 : vector<16x1xf32> to vector<16x128xf32>
    %955 = arith.mulf %953, %954 : vector<16x128xf32>
    %956 = arith.mulf %955, %837 : vector<16x128xf32>
    %957 = arith.addf %950, %956 : vector<16x128xf32>
    %c0_439 = arith.constant 0 : index
    %c42_440 = arith.constant 42 : index
    %958 = vector.load %arg6[%c0_439, %c42_440] : memref<16x54xf32, #tpu.memory_space<vmem>>, vector<16x1xf32>
    %c0_441 = arith.constant 0 : index
    %c50_442 = arith.constant 50 : index
    %959 = vector.load %arg6[%c0_441, %c50_442] : memref<16x54xf32, #tpu.memory_space<vmem>>, vector<16x1xf32>
    %c0_443 = arith.constant 0 : index
    %c4_444 = arith.constant 4 : index
    %960 = vector.load %arg5[%c0_443, %c4_444] : memref<16x12xf32, #tpu.memory_space<vmem>>, vector<16x1xf32>
    %961 = vector.broadcast %960 : vector<16x1xf32> to vector<16x128xf32>
    %962 = arith.subf %513, %961 : vector<16x128xf32>
    %963 = vector.broadcast %958 : vector<16x1xf32> to vector<16x128xf32>
    %964 = arith.mulf %962, %963 : vector<16x128xf32>
    %965 = arith.mulf %964, %837 : vector<16x128xf32>
    %c0_445 = arith.constant 0 : index
    %c8_446 = arith.constant 8 : index
    %966 = vector.load %arg5[%c0_445, %c8_446] : memref<16x12xf32, #tpu.memory_space<vmem>>, vector<16x1xf32>
    %967 = vector.broadcast %966 : vector<16x1xf32> to vector<16x128xf32>
    %968 = arith.subf %513, %967 : vector<16x128xf32>
    %969 = vector.broadcast %959 : vector<16x1xf32> to vector<16x128xf32>
    %970 = arith.mulf %968, %969 : vector<16x128xf32>
    %971 = arith.mulf %970, %852 : vector<16x128xf32>
    %972 = arith.addf %965, %971 : vector<16x128xf32>
    %c0_447 = arith.constant 0 : index
    %c43_448 = arith.constant 43 : index
    %973 = vector.load %arg6[%c0_447, %c43_448] : memref<16x54xf32, #tpu.memory_space<vmem>>, vector<16x1xf32>
    %c0_449 = arith.constant 0 : index
    %c51_450 = arith.constant 51 : index
    %974 = vector.load %arg6[%c0_449, %c51_450] : memref<16x54xf32, #tpu.memory_space<vmem>>, vector<16x1xf32>
    %c0_451 = arith.constant 0 : index
    %c5_452 = arith.constant 5 : index
    %975 = vector.load %arg5[%c0_451, %c5_452] : memref<16x12xf32, #tpu.memory_space<vmem>>, vector<16x1xf32>
    %976 = vector.broadcast %975 : vector<16x1xf32> to vector<16x128xf32>
    %977 = arith.subf %513, %976 : vector<16x128xf32>
    %978 = vector.broadcast %973 : vector<16x1xf32> to vector<16x128xf32>
    %979 = arith.mulf %977, %978 : vector<16x128xf32>
    %980 = arith.mulf %979, %852 : vector<16x128xf32>
    %c0_453 = arith.constant 0 : index
    %c9_454 = arith.constant 9 : index
    %981 = vector.load %arg5[%c0_453, %c9_454] : memref<16x12xf32, #tpu.memory_space<vmem>>, vector<16x1xf32>
    %982 = vector.broadcast %981 : vector<16x1xf32> to vector<16x128xf32>
    %983 = arith.subf %513, %982 : vector<16x128xf32>
    %984 = vector.broadcast %974 : vector<16x1xf32> to vector<16x128xf32>
    %985 = arith.mulf %983, %984 : vector<16x128xf32>
    %986 = arith.mulf %985, %867 : vector<16x128xf32>
    %987 = arith.addf %980, %986 : vector<16x128xf32>
    %c0_455 = arith.constant 0 : index
    %c44_456 = arith.constant 44 : index
    %988 = vector.load %arg6[%c0_455, %c44_456] : memref<16x54xf32, #tpu.memory_space<vmem>>, vector<16x1xf32>
    %c0_457 = arith.constant 0 : index
    %c52_458 = arith.constant 52 : index
    %989 = vector.load %arg6[%c0_457, %c52_458] : memref<16x54xf32, #tpu.memory_space<vmem>>, vector<16x1xf32>
    %c0_459 = arith.constant 0 : index
    %c6_460 = arith.constant 6 : index
    %990 = vector.load %arg5[%c0_459, %c6_460] : memref<16x12xf32, #tpu.memory_space<vmem>>, vector<16x1xf32>
    %991 = vector.broadcast %990 : vector<16x1xf32> to vector<16x128xf32>
    %992 = arith.subf %513, %991 : vector<16x128xf32>
    %993 = vector.broadcast %988 : vector<16x1xf32> to vector<16x128xf32>
    %994 = arith.mulf %992, %993 : vector<16x128xf32>
    %995 = arith.mulf %994, %867 : vector<16x128xf32>
    %c0_461 = arith.constant 0 : index
    %c10_462 = arith.constant 10 : index
    %996 = vector.load %arg5[%c0_461, %c10_462] : memref<16x12xf32, #tpu.memory_space<vmem>>, vector<16x1xf32>
    %997 = vector.broadcast %996 : vector<16x1xf32> to vector<16x128xf32>
    %998 = arith.subf %513, %997 : vector<16x128xf32>
    %999 = vector.broadcast %989 : vector<16x1xf32> to vector<16x128xf32>
    %1000 = arith.mulf %998, %999 : vector<16x128xf32>
    %1001 = arith.mulf %1000, %882 : vector<16x128xf32>
    %1002 = arith.addf %995, %1001 : vector<16x128xf32>
    %c0_463 = arith.constant 0 : index
    %c45_464 = arith.constant 45 : index
    %1003 = vector.load %arg6[%c0_463, %c45_464] : memref<16x54xf32, #tpu.memory_space<vmem>>, vector<16x1xf32>
    %c0_465 = arith.constant 0 : index
    %c53_466 = arith.constant 53 : index
    %1004 = vector.load %arg6[%c0_465, %c53_466] : memref<16x54xf32, #tpu.memory_space<vmem>>, vector<16x1xf32>
    %c0_467 = arith.constant 0 : index
    %c7_468 = arith.constant 7 : index
    %1005 = vector.load %arg5[%c0_467, %c7_468] : memref<16x12xf32, #tpu.memory_space<vmem>>, vector<16x1xf32>
    %1006 = vector.broadcast %1005 : vector<16x1xf32> to vector<16x128xf32>
    %1007 = arith.subf %513, %1006 : vector<16x128xf32>
    %1008 = vector.broadcast %1003 : vector<16x1xf32> to vector<16x128xf32>
    %1009 = arith.mulf %1007, %1008 : vector<16x128xf32>
    %1010 = arith.mulf %1009, %882 : vector<16x128xf32>
    %c0_469 = arith.constant 0 : index
    %c11_470 = arith.constant 11 : index
    %1011 = vector.load %arg5[%c0_469, %c11_470] : memref<16x12xf32, #tpu.memory_space<vmem>>, vector<16x1xf32>
    %1012 = vector.broadcast %1011 : vector<16x1xf32> to vector<16x128xf32>
    %1013 = arith.subf %513, %1012 : vector<16x128xf32>
    %1014 = vector.broadcast %1004 : vector<16x1xf32> to vector<16x128xf32>
    %1015 = arith.mulf %1013, %1014 : vector<16x128xf32>
    %1016 = arith.mulf %1015, %897 : vector<16x128xf32>
    %1017 = arith.addf %1010, %1016 : vector<16x128xf32>
    %1018 = arith.negf %513 : vector<16x128xf32>
    %1019 = math.exp %1018 : vector<16x128xf32>
    %cst_471 = arith.constant 1.000000e+00 : f32
    %1020 = vector.broadcast %cst_471 : f32 to vector<16x128xf32>
    %1021 = arith.addf %1020, %1019 : vector<16x128xf32>
    %1022 = arith.divf %1020, %1021 : vector<16x128xf32>
    %1023 = arith.mulf %513, %1022 : vector<16x128xf32>
    %1024 = tpu.concatenate %1023, %912, %927, %942, %957, %972, %987, %1002, %1017 in 0 : vector<16x128xf32>, vector<16x128xf32>, vector<16x128xf32>, vector<16x128xf32>, vector<16x128xf32>, vector<16x128xf32>, vector<16x128xf32>, vector<16x128xf32>, vector<16x128xf32> -> vector<144x128xf32>
    %c0_472 = arith.constant 0 : index
    %c0_473 = arith.constant 0 : index
    %1025 = vector.load %arg7[%c0_472, %c0_473] : memref<8x144xf32, #tpu.memory_space<vmem>>, vector<8x144xf32>
    %cst_474 = arith.constant dense<0.000000e+00> : vector<8x128xf32>
    %1026 = tpu.matmul %1025, %1024, %cst_474 {dimension_numbers = #tpu.dot_dimension_numbers<[1], [0], [0], [1], [0, 0, 1, 1], [], []>} : vector<8x144xf32>, vector<144x128xf32>, vector<8x128xf32> -> vector<8x128xf32>
    %c0_475 = arith.constant 0 : index
    %c0_476 = arith.constant 0 : index
    %1027 = vector.load %arg8[%c0_475, %c0_476] : memref<8x128xf32, #tpu.memory_space<vmem>>, vector<8x128xf32>
    tpu.vector_store %arg8[%c0_475, %c0_476], %1026 {strides = array<i32>} : memref<8x128xf32, #tpu.memory_space<vmem>>, vector<8x128xf32>,
    return
  }
  func.func @transform_0(%arg0: i32) -> (i32, i32) {
    %c0_i32 = arith.constant 0 : i32
    %c0_i32_0 = arith.constant 0 : i32
    return %c0_i32, %arg0 : i32, i32
  }
  func.func @transform_1(%arg0: i32) -> (i32, i32) {
    %c0_i32 = arith.constant 0 : i32
    %c0_i32_0 = arith.constant 0 : i32
    %c0_i32_1 = arith.constant 0 : i32
    return %c0_i32, %c0_i32_0 : i32, i32
  }
  func.func @transform_2(%arg0: i32) -> (i32, i32) {
    %c0_i32 = arith.constant 0 : i32
    %c0_i32_0 = arith.constant 0 : i32
    %c0_i32_1 = arith.constant 0 : i32
    return %c0_i32, %c0_i32_0 : i32, i32
  }
  func.func @transform_3(%arg0: i32) -> (i32, i32) {
    %c0_i32 = arith.constant 0 : i32
    %c0_i32_0 = arith.constant 0 : i32
    %c0_i32_1 = arith.constant 0 : i32
    return %c0_i32, %c0_i32_0 : i32, i32
  }
  func.func @transform_4(%arg0: i32) -> (i32, i32) {
    %c0_i32 = arith.constant 0 : i32
    %c0_i32_0 = arith.constant 0 : i32
    %c0_i32_1 = arith.constant 0 : i32
    return %c0_i32, %c0_i32_0 : i32, i32
  }
  func.func @transform_5(%arg0: i32) -> (i32, i32) {
    %c0_i32 = arith.constant 0 : i32
    %c0_i32_0 = arith.constant 0 : i32
    %c0_i32_1 = arith.constant 0 : i32
    return %c0_i32, %c0_i32_0 : i32, i32
  }
  func.func @transform_6(%arg0: i32) -> (i32, i32) {
    %c0_i32 = arith.constant 0 : i32
    %c0_i32_0 = arith.constant 0 : i32
    %c0_i32_1 = arith.constant 0 : i32
    return %c0_i32, %c0_i32_0 : i32, i32
  }
  func.func @transform_7(%arg0: i32) -> (i32, i32) {
    %c0_i32 = arith.constant 0 : i32
    %c0_i32_0 = arith.constant 0 : i32
    return %c0_i32, %arg0 : i32, i32
  }
}

</mosaic_0001>

<llo_original>
// kernel: tpu_custom_call.1
$region0: #{tpu_custom_call.1}
  #allocation0 [shape = 'u32[]', space=smem, size = 0x4, offset = 0x4, fixed_abs, tag = 'smem constant byte address 0x4 - core index']
  #allocation1 [shape = 'u32[144,128]{1,0:T(1,128)}', space=vmem, size = 0x12000, scoped, tag = 'internal scratch']
  %s0 = inlined_call_operand.hbm [shape: f32[32,128], index: 0, kind: input, shape index: {}]
  %s1 = inlined_call_operand.vmem [shape: f32[32,12], index: 1, kind: input, shape index: {}]
  %s2 = inlined_call_operand.hbm [shape: f32[32,54], index: 2, kind: input, shape index: {}]
  %s3 = inlined_call_operand.vmem [shape: f32[16,288], index: 3, kind: input, shape index: {}]
  %s4 = inlined_call_operand.hbm [shape: f32[16,12], index: 4, kind: input, shape index: {}]
  %s5 = inlined_call_operand.vmem [shape: f32[16,54], index: 5, kind: input, shape index: {}]
  %s6 = inlined_call_operand.hbm [shape: f32[8,144], index: 6, kind: input, shape index: {}]
  %s7 = inlined_call_operand.hbm [shape: f32[8,128], index: 7, kind: output, shape index: {}]
  %s8 = sld [smem:[#allocation0]]
  $region54: #{tpu_custom_call.1} parent=0
    _
  %s10 = ssub.s32 1, %s8
  %s11 = scalar_select 0, %s10, %s8
  $region1: #{tpu_custom_call.1} parent=0
    #allocation2 [shape = 'u8[16384]{0}', space=vmem, size = 0x4000, scoped, tag = 'input window, operand 0, single buffered']
    #allocation3 [shape = 's32[1]{0}', space=sflag, size = 0x4, scoped, tag = 'scoped memory for tpu_custom_call.1']
    #allocation4 [shape = 's32[1]{0}', space=sflag, size = 0x4, scoped, tag = 'scoped memory for tpu_custom_call.1']
    #allocation5 [shape = 'u8[16384]{0}', space=vmem, size = 0x4000, scoped, tag = 'input window, operand 2, single buffered']
    #allocation6 [shape = 's32[1]{0}', space=sflag, size = 0x4, scoped, tag = 'scoped memory for tpu_custom_call.1']
    #allocation7 [shape = 'u8[8192]{0}', space=vmem, size = 0x2000, scoped, tag = 'input window, operand 4, single buffered']
    #allocation8 [shape = 'u8[8192]{0}', space=vmem, size = 0x2000, scoped, tag = 'input window, operand 6, single buffered']
    #allocation9 [shape = 's32[1]{0}', space=sflag, size = 0x4, scoped, tag = 'scoped memory for tpu_custom_call.1']
    #allocation10 [shape = 'u8[4096]{0}', space=vmem, size = 0x1000, scoped, tag = 'output window, operand 0, single buffered']
    %12 = vsyncpa [#allocation3], 0
    %13 = vsyncpa [#allocation6], 0
    %14 = vsyncpa [#allocation9], 0
    %15 = vsyncpa [#allocation4], 0
    // Predicated region
    $region2: #{tpu_custom_call.1} parent=1 // pred_check
      _
    $region3: #{tpu_custom_call.1} parent=1 // pred_check_branch
      %17 = sbr.rel (0) target = $region5
    $region4: #{tpu_custom_call.1} parent=1 // pred_region
      %s19 = ssub.s32 512, 512
      %20 = vsyncadd [#allocation3], %s19
      %s21 = sshll.u32 [#allocation2], 4
      %s22 = int_to_ptr.vmem [resolvable:$true] %s21
      %27 = dma.hbm_to_vmem [thread:$0]  %s0, 512, %s22, [#allocation3], 128, 128, 8
    $region5: #{tpu_custom_call.1} parent=1 // pred_fallthru
      _
    // Predicated region
    $region6: #{tpu_custom_call.1} parent=1 // pred_check
      _
    $region7: #{tpu_custom_call.1} parent=1 // pred_check_branch
      %29 = sbr.rel (0) target = $region9
    $region8: #{tpu_custom_call.1} parent=1 // pred_region
      _
    $region9: #{tpu_custom_call.1} parent=1 // pred_fallthru
      _
    // Predicated region
    $region10: #{tpu_custom_call.1} parent=1 // pred_check
      _
    $region11: #{tpu_custom_call.1} parent=1 // pred_check_branch
      %31 = sbr.rel (0) target = $region13
    $region12: #{tpu_custom_call.1} parent=1 // pred_region
      %s33 = ssub.s32 512, 512
      %34 = vsyncadd [#allocation6], %s33
      %s35 = sshll.u32 [#allocation5], 4
      %s36 = int_to_ptr.vmem [resolvable:$true] %s35
      %41 = dma.hbm_to_vmem [thread:$0]  %s2, 512, %s36, [#allocation6], 128, 128, 8
    $region13: #{tpu_custom_call.1} parent=1 // pred_fallthru
      _
    // Predicated region
    $region14: #{tpu_custom_call.1} parent=1 // pred_check
      _
    $region15: #{tpu_custom_call.1} parent=1 // pred_check_branch
      %43 = sbr.rel (0) target = $region17
    $region16: #{tpu_custom_call.1} parent=1 // pred_region
      _
    $region17: #{tpu_custom_call.1} parent=1 // pred_fallthru
      _
    // Predicated region
    $region18: #{tpu_custom_call.1} parent=1 // pred_check
      _
    $region19: #{tpu_custom_call.1} parent=1 // pred_check_branch
      %45 = sbr.rel (0) target = $region21
    $region20: #{tpu_custom_call.1} parent=1 // pred_region
      %s47 = ssub.s32 256, 256
      %48 = vsyncadd [#allocation6], %s47
      %s49 = sshll.u32 [#allocation7], 4
      %s50 = int_to_ptr.vmem [resolvable:$true] %s49
      %55 = dma.hbm_to_vmem [thread:$0]  %s4, 256, %s50, [#allocation6], 128, 128, 8
    $region21: #{tpu_custom_call.1} parent=1 // pred_fallthru
      _
    // Predicated region
    $region22: #{tpu_custom_call.1} parent=1 // pred_check
      _
    $region23: #{tpu_custom_call.1} parent=1 // pred_check_branch
      %57 = sbr.rel (0) target = $region25
    $region24: #{tpu_custom_call.1} parent=1 // pred_region
      _
    $region25: #{tpu_custom_call.1} parent=1 // pred_fallthru
      _
    // Predicated region
    $region26: #{tpu_custom_call.1} parent=1 // pred_check
      _
    $region27: #{tpu_custom_call.1} parent=1 // pred_check_branch
      %59 = sbr.rel (0) target = $region29
    $region28: #{tpu_custom_call.1} parent=1 // pred_region
      %s61 = ssub.s32 256, 256
      %62 = vsyncadd [#allocation9], %s61
      %s64 = sshll.u32 [#allocation8], 4
      %s65 = int_to_ptr.vmem [resolvable:$true] %s64
      %67 = dma.hbm_to_vmem [thread:$0]  %s6, 256, %s65, [#allocation9]
    $region29: #{tpu_custom_call.1} parent=1 // pred_fallthru
      _
    // Predicated region
    $region30: #{tpu_custom_call.1} parent=1 // pred_check
      _
    $region31: #{tpu_custom_call.1} parent=1 // pred_check_branch
      %69 = sbr.rel (0) target = $region33
    $region32: #{tpu_custom_call.1} parent=1 // pred_region
      %70 = dma.done [#allocation3], 512
    $region33: #{tpu_custom_call.1} parent=1 // pred_fallthru
      _
    // Predicated region
    $region34: #{tpu_custom_call.1} parent=1 // pred_check
      _
    $region35: #{tpu_custom_call.1} parent=1 // pred_check_branch
      %72 = sbr.rel (0) target = $region37
    $region36: #{tpu_custom_call.1} parent=1 // pred_region
      %73 = dma.done [#allocation6], 512
    $region37: #{tpu_custom_call.1} parent=1 // pred_fallthru
      _
    // Predicated region
    $region38: #{tpu_custom_call.1} parent=1 // pred_check
      _
    $region39: #{tpu_custom_call.1} parent=1 // pred_check_branch
      %75 = sbr.rel (0) target = $region41
    $region40: #{tpu_custom_call.1} parent=1 // pred_region
      %76 = dma.done [#allocation6], 256
    $region41: #{tpu_custom_call.1} parent=1 // pred_fallthru
      _
    // Predicated region
    $region42: #{tpu_custom_call.1} parent=1 // pred_check
      _
    $region43: #{tpu_custom_call.1} parent=1 // pred_check_branch
      %78 = sbr.rel (0) target = $region45
    $region44: #{tpu_custom_call.1} parent=1 // pred_region
      %79 = dma.done [#allocation9], 256
    $region45: #{tpu_custom_call.1} parent=1 // pred_fallthru
      _
    %v80 = vld [vmem:[#allocation2] sm:$0xff]
    %v81 = vld [vmem:[#allocation2 + $0x8] sm:$0xff]
    %v82 = vld [vmem:[#allocation2 + $0x10] sm:$0xff]
    %v83 = vld [vmem:[#allocation2 + $0x18] sm:$0xff]
    %v84 = vld [vmem:[%s1] sm:$0xff]
    %v85 = vld [vmem:[%s1 + $0x8] sm:$0xff]
    %v86 = vld [vmem:[%s1 + $0x10] sm:$0xff]
    %v87 = vld [vmem:[%s1 + $0x18] sm:$0xff]
    %89 = vset.pattern.permute.xlu0 0
    %90 = vperm.xlu0 %89, %v84
    %v91 = vpop.permute.xlu0 %90
    %94 = vset.pattern.permute.xlu0 0
    %95 = vperm.xlu0 %94, %v85
    %v96 = vpop.permute.xlu0 %95
    %99 = vset.pattern.permute.xlu0 0
    %100 = vperm.xlu0 %99, %v86
    %v101 = vpop.permute.xlu0 %100
    %104 = vset.pattern.permute.xlu0 0
    %105 = vperm.xlu0 %104, %v87
    %v106 = vpop.permute.xlu0 %105
    %vm108 = vcmp.ge.f32.partialorder %v80, %v91
    %vm109 = vcmp.ge.f32.partialorder %v81, %v96
    %vm110 = vcmp.ge.f32.partialorder %v82, %v101
    %vm111 = vcmp.ge.f32.partialorder %v83, %v106
    %112 = vset.pattern.permute.xlu0 1
    %113 = vperm.xlu0 %112, %v84
    %v114 = vpop.permute.xlu0 %113
    %116 = vset.pattern.permute.xlu0 1
    %117 = vperm.xlu0 %116, %v85
    %v118 = vpop.permute.xlu0 %117
    %120 = vset.pattern.permute.xlu0 1
    %121 = vperm.xlu0 %120, %v86
    %v122 = vpop.permute.xlu0 %121
    %124 = vset.pattern.permute.xlu0 1
    %125 = vperm.xlu0 %124, %v87
    %v126 = vpop.permute.xlu0 %125
    %vm128 = vcmp.lt.f32.partialorder %v80, %v114
    %vm129 = vcmp.lt.f32.partialorder %v81, %v118
    %vm130 = vcmp.lt.f32.partialorder %v82, %v122
    %vm131 = vcmp.lt.f32.partialorder %v83, %v126
    %vm132 = vmand %vm108, %vm128
    %vm133 = vmand %vm109, %vm129
    %vm134 = vmand %vm110, %vm130
    %vm135 = vmand %vm111, %vm131
    %v136 = vsel %vm132, 1, 0
    %v137 = vsel %vm133, 1, 0
    %v138 = vsel %vm134, 1, 0
    %v139 = vsel %vm135, 1, 0
    %v140 = vcvt.s32.f32 %v136
    %v141 = vcvt.s32.f32 %v137
    %v142 = vcvt.s32.f32 %v138
    %v143 = vcvt.s32.f32 %v139
    %vm144 = vcmp.ge.f32.partialorder %v80, %v114
    %vm145 = vcmp.ge.f32.partialorder %v81, %v118
    %vm146 = vcmp.ge.f32.partialorder %v82, %v122
    %vm147 = vcmp.ge.f32.partialorder %v83, %v126
    %148 = vset.pattern.permute.xlu0 2
    %149 = vperm.xlu0 %148, %v84
    %v150 = vpop.permute.xlu0 %149
    %152 = vset.pattern.permute.xlu0 2
    %153 = vperm.xlu0 %152, %v85
    %v154 = vpop.permute.xlu0 %153
    %156 = vset.pattern.permute.xlu0 2
    %157 = vperm.xlu0 %156, %v86
    %v158 = vpop.permute.xlu0 %157
    %160 = vset.pattern.permute.xlu0 2
    %161 = vperm.xlu0 %160, %v87
    %v162 = vpop.permute.xlu0 %161
    %vm164 = vcmp.lt.f32.partialorder %v80, %v150
    %vm165 = vcmp.lt.f32.partialorder %v81, %v154
    %vm166 = vcmp.lt.f32.partialorder %v82, %v158
    %vm167 = vcmp.lt.f32.partialorder %v83, %v162
    %vm168 = vmand %vm144, %vm164
    %vm169 = vmand %vm145, %vm165
    %vm170 = vmand %vm146, %vm166
    %vm171 = vmand %vm147, %vm167
    %v172 = vsel %vm168, 1, 0
    %v173 = vsel %vm169, 1, 0
    %v174 = vsel %vm170, 1, 0
    %v175 = vsel %vm171, 1, 0
    %v176 = vcvt.s32.f32 %v172
    %v177 = vcvt.s32.f32 %v173
    %v178 = vcvt.s32.f32 %v174
    %v179 = vcvt.s32.f32 %v175
    %vm180 = vcmp.ge.f32.partialorder %v80, %v150
    %vm181 = vcmp.ge.f32.partialorder %v81, %v154
    %vm182 = vcmp.ge.f32.partialorder %v82, %v158
    %vm183 = vcmp.ge.f32.partialorder %v83, %v162
    %184 = vset.pattern.permute.xlu0 3
    %185 = vperm.xlu0 %184, %v84
    %v186 = vpop.permute.xlu0 %185
    %188 = vset.pattern.permute.xlu0 3
    %189 = vperm.xlu0 %188, %v85
    %v190 = vpop.permute.xlu0 %189
    %192 = vset.pattern.permute.xlu0 3
    %193 = vperm.xlu0 %192, %v86
    %v194 = vpop.permute.xlu0 %193
    %196 = vset.pattern.permute.xlu0 3
    %197 = vperm.xlu0 %196, %v87
    %v198 = vpop.permute.xlu0 %197
    %vm200 = vcmp.lt.f32.partialorder %v80, %v186
    %vm201 = vcmp.lt.f32.partialorder %v81, %v190
    %vm202 = vcmp.lt.f32.partialorder %v82, %v194
    %vm203 = vcmp.lt.f32.partialorder %v83, %v198
    %vm204 = vmand %vm180, %vm200
    %vm205 = vmand %vm181, %vm201
    %vm206 = vmand %vm182, %vm202
    %vm207 = vmand %vm183, %vm203
    %v208 = vsel %vm204, 1, 0
    %v209 = vsel %vm205, 1, 0
    %v210 = vsel %vm206, 1, 0
    %v211 = vsel %vm207, 1, 0
    %v212 = vcvt.s32.f32 %v208
    %v213 = vcvt.s32.f32 %v209
    %v214 = vcvt.s32.f32 %v210
    %v215 = vcvt.s32.f32 %v211
    %vm216 = vcmp.ge.f32.partialorder %v80, %v186
    %vm217 = vcmp.ge.f32.partialorder %v81, %v190
    %vm218 = vcmp.ge.f32.partialorder %v82, %v194
    %vm219 = vcmp.ge.f32.partialorder %v83, %v198
    %220 = vset.pattern.permute.xlu0 4
    %221 = vperm.xlu0 %220, %v84
    %v222 = vpop.permute.xlu0 %221
    %224 = vset.pattern.permute.xlu0 4
    %225 = vperm.xlu0 %224, %v85
    %v226 = vpop.permute.xlu0 %225
    %228 = vset.pattern.permute.xlu0 4
    %229 = vperm.xlu0 %228, %v86
    %v230 = vpop.permute.xlu0 %229
    %232 = vset.pattern.permute.xlu0 4
    %233 = vperm.xlu0 %232, %v87
    %v234 = vpop.permute.xlu0 %233
    %vm236 = vcmp.lt.f32.partialorder %v80, %v222
    %vm237 = vcmp.lt.f32.partialorder %v81, %v226
    %vm238 = vcmp.lt.f32.partialorder %v82, %v230
    %vm239 = vcmp.lt.f32.partialorder %v83, %v234
    %vm240 = vmand %vm216, %vm236
    %vm241 = vmand %vm217, %vm237
    %vm242 = vmand %vm218, %vm238
    %vm243 = vmand %vm219, %vm239
    %v244 = vsel %vm240, 1, 0
    %v245 = vsel %vm241, 1, 0
    %v246 = vsel %vm242, 1, 0
    %v247 = vsel %vm243, 1, 0
    %v248 = vcvt.s32.f32 %v244
    %v249 = vcvt.s32.f32 %v245
    %v250 = vcvt.s32.f32 %v246
    %v251 = vcvt.s32.f32 %v247
    %vm252 = vcmp.ge.f32.partialorder %v80, %v222
    %vm253 = vcmp.ge.f32.partialorder %v81, %v226
    %vm254 = vcmp.ge.f32.partialorder %v82, %v230
    %vm255 = vcmp.ge.f32.partialorder %v83, %v234
    %256 = vset.pattern.permute.xlu0 5
    %257 = vperm.xlu0 %256, %v84
    %v258 = vpop.permute.xlu0 %257
    %260 = vset.pattern.permute.xlu0 5
    %261 = vperm.xlu0 %260, %v85
    %v262 = vpop.permute.xlu0 %261
    %264 = vset.pattern.permute.xlu0 5
    %265 = vperm.xlu0 %264, %v86
    %v266 = vpop.permute.xlu0 %265
    %268 = vset.pattern.permute.xlu0 5
    %269 = vperm.xlu0 %268, %v87
    %v270 = vpop.permute.xlu0 %269
    %vm272 = vcmp.lt.f32.partialorder %v80, %v258
    %vm273 = vcmp.lt.f32.partialorder %v81, %v262
    %vm274 = vcmp.lt.f32.partialorder %v82, %v266
    %vm275 = vcmp.lt.f32.partialorder %v83, %v270
    %vm276 = vmand %vm252, %vm272
    %vm277 = vmand %vm253, %vm273
    %vm278 = vmand %vm254, %vm274
    %vm279 = vmand %vm255, %vm275
    %v280 = vsel %vm276, 1, 0
    %v281 = vsel %vm277, 1, 0
    %v282 = vsel %vm278, 1, 0
    %v283 = vsel %vm279, 1, 0
    %v284 = vcvt.s32.f32 %v280
    %v285 = vcvt.s32.f32 %v281
    %v286 = vcvt.s32.f32 %v282
    %v287 = vcvt.s32.f32 %v283
    %vm288 = vcmp.ge.f32.partialorder %v80, %v258
    %vm289 = vcmp.ge.f32.partialorder %v81, %v262
    %vm290 = vcmp.ge.f32.partialorder %v82, %v266
    %vm291 = vcmp.ge.f32.partialorder %v83, %v270
    %292 = vset.pattern.permute.xlu0 6
    %293 = vperm.xlu0 %292, %v84
    %v294 = vpop.permute.xlu0 %293
    %296 = vset.pattern.permute.xlu0 6
    %297 = vperm.xlu0 %296, %v85
    %v298 = vpop.permute.xlu0 %297
    %300 = vset.pattern.permute.xlu0 6
    %301 = vperm.xlu0 %300, %v86
    %v302 = vpop.permute.xlu0 %301
    %304 = vset.pattern.permute.xlu0 6
    %305 = vperm.xlu0 %304, %v87
    %v306 = vpop.permute.xlu0 %305
    %vm308 = vcmp.lt.f32.partialorder %v80, %v294
    %vm309 = vcmp.lt.f32.partialorder %v81, %v298
    %vm310 = vcmp.lt.f32.partialorder %v82, %v302
    %vm311 = vcmp.lt.f32.partialorder %v83, %v306
    %vm312 = vmand %vm288, %vm308
    %vm313 = vmand %vm289, %vm309
    %vm314 = vmand %vm290, %vm310
    %vm315 = vmand %vm291, %vm311
    %v316 = vsel %vm312, 1, 0
    %v317 = vsel %vm313, 1, 0
    %v318 = vsel %vm314, 1, 0
    %v319 = vsel %vm315, 1, 0
    %v320 = vcvt.s32.f32 %v316
    %v321 = vcvt.s32.f32 %v317
    %v322 = vcvt.s32.f32 %v318
    %v323 = vcvt.s32.f32 %v319
    %vm324 = vcmp.ge.f32.partialorder %v80, %v294
    %vm325 = vcmp.ge.f32.partialorder %v81, %v298
    %vm326 = vcmp.ge.f32.partialorder %v82, %v302
    %vm327 = vcmp.ge.f32.partialorder %v83, %v306
    %328 = vset.pattern.permute.xlu0 7
    %329 = vperm.xlu0 %328, %v84
    %v330 = vpop.permute.xlu0 %329
    %332 = vset.pattern.permute.xlu0 7
    %333 = vperm.xlu0 %332, %v85
    %v334 = vpop.permute.xlu0 %333
    %336 = vset.pattern.permute.xlu0 7
    %337 = vperm.xlu0 %336, %v86
    %v338 = vpop.permute.xlu0 %337
    %340 = vset.pattern.permute.xlu0 7
    %341 = vperm.xlu0 %340, %v87
    %v342 = vpop.permute.xlu0 %341
    %vm344 = vcmp.lt.f32.partialorder %v80, %v330
    %vm345 = vcmp.lt.f32.partialorder %v81, %v334
    %vm346 = vcmp.lt.f32.partialorder %v82, %v338
    %vm347 = vcmp.lt.f32.partialorder %v83, %v342
    %vm348 = vmand %vm324, %vm344
    %vm349 = vmand %vm325, %vm345
    %vm350 = vmand %vm326, %vm346
    %vm351 = vmand %vm327, %vm347
    %v352 = vsel %vm348, 1, 0
    %v353 = vsel %vm349, 1, 0
    %v354 = vsel %vm350, 1, 0
    %v355 = vsel %vm351, 1, 0
    %v356 = vcvt.s32.f32 %v352
    %v357 = vcvt.s32.f32 %v353
    %v358 = vcvt.s32.f32 %v354
    %v359 = vcvt.s32.f32 %v355
    %vm360 = vcmp.ge.f32.partialorder %v80, %v330
    %vm361 = vcmp.ge.f32.partialorder %v81, %v334
    %vm362 = vcmp.ge.f32.partialorder %v82, %v338
    %vm363 = vcmp.ge.f32.partialorder %v83, %v342
    %364 = vset.pattern.permute.xlu0 8
    %365 = vperm.xlu0 %364, %v84
    %v366 = vpop.permute.xlu0 %365
    %368 = vset.pattern.permute.xlu0 8
    %369 = vperm.xlu0 %368, %v85
    %v370 = vpop.permute.xlu0 %369
    %372 = vset.pattern.permute.xlu0 8
    %373 = vperm.xlu0 %372, %v86
    %v374 = vpop.permute.xlu0 %373
    %376 = vset.pattern.permute.xlu0 8
    %377 = vperm.xlu0 %376, %v87
    %v378 = vpop.permute.xlu0 %377
    %vm380 = vcmp.lt.f32.partialorder %v80, %v366
    %vm381 = vcmp.lt.f32.partialorder %v81, %v370
    %vm382 = vcmp.lt.f32.partialorder %v82, %v374
    %vm383 = vcmp.lt.f32.partialorder %v83, %v378
    %vm384 = vmand %vm360, %vm380
    %vm385 = vmand %vm361, %vm381
    %vm386 = vmand %vm362, %vm382
    %vm387 = vmand %vm363, %vm383
    %v388 = vsel %vm384, 1, 0
    %v389 = vsel %vm385, 1, 0
    %v390 = vsel %vm386, 1, 0
    %v391 = vsel %vm387, 1, 0
    %v392 = vcvt.s32.f32 %v388
    %v393 = vcvt.s32.f32 %v389
    %v394 = vcvt.s32.f32 %v390
    %v395 = vcvt.s32.f32 %v391
    %vm396 = vcmp.ge.f32.partialorder %v80, %v366
    %vm397 = vcmp.ge.f32.partialorder %v81, %v370
    %vm398 = vcmp.ge.f32.partialorder %v82, %v374
    %vm399 = vcmp.ge.f32.partialorder %v83, %v378
    %400 = vset.pattern.permute.xlu0 9
    %401 = vperm.xlu0 %400, %v84
    %v402 = vpop.permute.xlu0 %401
    %404 = vset.pattern.permute.xlu0 9
    %405 = vperm.xlu0 %404, %v85
    %v406 = vpop.permute.xlu0 %405
    %408 = vset.pattern.permute.xlu0 9
    %409 = vperm.xlu0 %408, %v86
    %v410 = vpop.permute.xlu0 %409
    %412 = vset.pattern.permute.xlu0 9
    %413 = vperm.xlu0 %412, %v87
    %v414 = vpop.permute.xlu0 %413
    %vm416 = vcmp.lt.f32.partialorder %v80, %v402
    %vm417 = vcmp.lt.f32.partialorder %v81, %v406
    %vm418 = vcmp.lt.f32.partialorder %v82, %v410
    %vm419 = vcmp.lt.f32.partialorder %v83, %v414
    %vm420 = vmand %vm396, %vm416
    %vm421 = vmand %vm397, %vm417
    %vm422 = vmand %vm398, %vm418
    %vm423 = vmand %vm399, %vm419
    %v424 = vsel %vm420, 1, 0
    %v425 = vsel %vm421, 1, 0
    %v426 = vsel %vm422, 1, 0
    %v427 = vsel %vm423, 1, 0
    %v428 = vcvt.s32.f32 %v424
    %v429 = vcvt.s32.f32 %v425
    %v430 = vcvt.s32.f32 %v426
    %v431 = vcvt.s32.f32 %v427
    %vm432 = vcmp.ge.f32.partialorder %v80, %v402
    %vm433 = vcmp.ge.f32.partialorder %v81, %v406
    %vm434 = vcmp.ge.f32.partialorder %v82, %v410
    %vm435 = vcmp.ge.f32.partialorder %v83, %v414
    %436 = vset.pattern.permute.xlu0 10
    %437 = vperm.xlu0 %436, %v84
    %v438 = vpop.permute.xlu0 %437
    %440 = vset.pattern.permute.xlu0 10
    %441 = vperm.xlu0 %440, %v85
    %v442 = vpop.permute.xlu0 %441
    %444 = vset.pattern.permute.xlu0 10
    %445 = vperm.xlu0 %444, %v86
    %v446 = vpop.permute.xlu0 %445
    %448 = vset.pattern.permute.xlu0 10
    %449 = vperm.xlu0 %448, %v87
    %v450 = vpop.permute.xlu0 %449
    %vm452 = vcmp.lt.f32.partialorder %v80, %v438
    %vm453 = vcmp.lt.f32.partialorder %v81, %v442
    %vm454 = vcmp.lt.f32.partialorder %v82, %v446
    %vm455 = vcmp.lt.f32.partialorder %v83, %v450
    %vm456 = vmand %vm432, %vm452
    %vm457 = vmand %vm433, %vm453
    %vm458 = vmand %vm434, %vm454
    %vm459 = vmand %vm435, %vm455
    %v460 = vsel %vm456, 1, 0
    %v461 = vsel %vm457, 1, 0
    %v462 = vsel %vm458, 1, 0
    %v463 = vsel %vm459, 1, 0
    %v464 = vcvt.s32.f32 %v460
    %v465 = vcvt.s32.f32 %v461
    %v466 = vcvt.s32.f32 %v462
    %v467 = vcvt.s32.f32 %v463
    %vm468 = vcmp.ge.f32.partialorder %v80, %v438
    %vm469 = vcmp.ge.f32.partialorder %v81, %v442
    %vm470 = vcmp.ge.f32.partialorder %v82, %v446
    %vm471 = vcmp.ge.f32.partialorder %v83, %v450
    %472 = vset.pattern.permute.xlu0 11
    %473 = vperm.xlu0 %472, %v84
    %v474 = vpop.permute.xlu0 %473
    %476 = vset.pattern.permute.xlu0 11
    %477 = vperm.xlu0 %476, %v85
    %v478 = vpop.permute.xlu0 %477
    %480 = vset.pattern.permute.xlu0 11
    %481 = vperm.xlu0 %480, %v86
    %v482 = vpop.permute.xlu0 %481
    %484 = vset.pattern.permute.xlu0 11
    %485 = vperm.xlu0 %484, %v87
    %v486 = vpop.permute.xlu0 %485
    %vm488 = vcmp.lt.f32.partialorder %v80, %v474
    %vm489 = vcmp.lt.f32.partialorder %v81, %v478
    %vm490 = vcmp.lt.f32.partialorder %v82, %v482
    %vm491 = vcmp.lt.f32.partialorder %v83, %v486
    %vm492 = vmand %vm468, %vm488
    %vm493 = vmand %vm469, %vm489
    %vm494 = vmand %vm470, %vm490
    %vm495 = vmand %vm471, %vm491
    %v496 = vsel %vm492, 1, 0
    %v497 = vsel %vm493, 1, 0
    %v498 = vsel %vm494, 1, 0
    %v499 = vsel %vm495, 1, 0
    %v500 = vcvt.s32.f32 %v496
    %v501 = vcvt.s32.f32 %v497
    %v502 = vcvt.s32.f32 %v498
    %v503 = vcvt.s32.f32 %v499
    %v504 = vld [vmem:[#allocation5] sm:$0xff]
    %v505 = vld [vmem:[#allocation5 + $0x8] sm:$0xff]
    %v506 = vld [vmem:[#allocation5 + $0x10] sm:$0xff]
    %v507 = vld [vmem:[#allocation5 + $0x18] sm:$0xff]
    %v508 = vsub.f32 %v80, %v91
    %v509 = vsub.f32 %v81, %v96
    %v510 = vsub.f32 %v82, %v101
    %v511 = vsub.f32 %v83, %v106
    %513 = vset.pattern.permute.xlu0 0
    %514 = vperm.xlu0 %513, %v504
    %v515 = vpop.permute.xlu0 %514
    %518 = vset.pattern.permute.xlu0 0
    %519 = vperm.xlu0 %518, %v505
    %v520 = vpop.permute.xlu0 %519
    %523 = vset.pattern.permute.xlu0 0
    %524 = vperm.xlu0 %523, %v506
    %v525 = vpop.permute.xlu0 %524
    %528 = vset.pattern.permute.xlu0 0
    %529 = vperm.xlu0 %528, %v507
    %v530 = vpop.permute.xlu0 %529
    %v532 = vmul.f32 %v508, %v515
    %v533 = vmul.f32 %v509, %v520
    %v534 = vmul.f32 %v510, %v525
    %v535 = vmul.f32 %v511, %v530
    %v536 = vmul.f32 %v532, %v140
    %v537 = vmul.f32 %v533, %v141
    %v538 = vmul.f32 %v534, %v142
    %v539 = vmul.f32 %v535, %v143
    %v540 = vsub.f32 %v80, %v150
    %v541 = vsub.f32 %v81, %v154
    %v542 = vsub.f32 %v82, %v158
    %v543 = vsub.f32 %v83, %v162
    %544 = vset.pattern.permute.xlu0 10
    %545 = vperm.xlu0 %544, %v504
    %v546 = vpop.permute.xlu0 %545
    %548 = vset.pattern.permute.xlu0 10
    %549 = vperm.xlu0 %548, %v505
    %v550 = vpop.permute.xlu0 %549
    %552 = vset.pattern.permute.xlu0 10
    %553 = vperm.xlu0 %552, %v506
    %v554 = vpop.permute.xlu0 %553
    %556 = vset.pattern.permute.xlu0 10
    %557 = vperm.xlu0 %556, %v507
    %v558 = vpop.permute.xlu0 %557
    %v560 = vmul.f32 %v540, %v546
    %v561 = vmul.f32 %v541, %v550
    %v562 = vmul.f32 %v542, %v554
    %v563 = vmul.f32 %v543, %v558
    %v564 = vmul.f32 %v560, %v176
    %v565 = vmul.f32 %v561, %v177
    %v566 = vmul.f32 %v562, %v178
    %v567 = vmul.f32 %v563, %v179
    %v568 = vadd.f32 %v536, %v564
    %v569 = vadd.f32 %v537, %v565
    %v570 = vadd.f32 %v538, %v566
    %v571 = vadd.f32 %v539, %v567
    %v572 = vsub.f32 %v80, %v114
    %v573 = vsub.f32 %v81, %v118
    %v574 = vsub.f32 %v82, %v122
    %v575 = vsub.f32 %v83, %v126
    %576 = vset.pattern.permute.xlu0 1
    %577 = vperm.xlu0 %576, %v504
    %v578 = vpop.permute.xlu0 %577
    %580 = vset.pattern.permute.xlu0 1
    %581 = vperm.xlu0 %580, %v505
    %v582 = vpop.permute.xlu0 %581
    %584 = vset.pattern.permute.xlu0 1
    %585 = vperm.xlu0 %584, %v506
    %v586 = vpop.permute.xlu0 %585
    %588 = vset.pattern.permute.xlu0 1
    %589 = vperm.xlu0 %588, %v507
    %v590 = vpop.permute.xlu0 %589
    %v592 = vmul.f32 %v572, %v578
    %v593 = vmul.f32 %v573, %v582
    %v594 = vmul.f32 %v574, %v586
    %v595 = vmul.f32 %v575, %v590
    %v596 = vmul.f32 %v592, %v176
    %v597 = vmul.f32 %v593, %v177
    %v598 = vmul.f32 %v594, %v178
    %v599 = vmul.f32 %v595, %v179
    %v600 = vsub.f32 %v80, %v186
    %v601 = vsub.f32 %v81, %v190
    %v602 = vsub.f32 %v82, %v194
    %v603 = vsub.f32 %v83, %v198
    %604 = vset.pattern.permute.xlu0 11
    %605 = vperm.xlu0 %604, %v504
    %v606 = vpop.permute.xlu0 %605
    %608 = vset.pattern.permute.xlu0 11
    %609 = vperm.xlu0 %608, %v505
    %v610 = vpop.permute.xlu0 %609
    %612 = vset.pattern.permute.xlu0 11
    %613 = vperm.xlu0 %612, %v506
    %v614 = vpop.permute.xlu0 %613
    %616 = vset.pattern.permute.xlu0 11
    %617 = vperm.xlu0 %616, %v507
    %v618 = vpop.permute.xlu0 %617
    %v620 = vmul.f32 %v600, %v606
    %v621 = vmul.f32 %v601, %v610
    %v622 = vmul.f32 %v602, %v614
    %v623 = vmul.f32 %v603, %v618
    %v624 = vmul.f32 %v620, %v212
    %v625 = vmul.f32 %v621, %v213
    %v626 = vmul.f32 %v622, %v214
    %v627 = vmul.f32 %v623, %v215
    %v628 = vadd.f32 %v596, %v624
    %v629 = vadd.f32 %v597, %v625
    %v630 = vadd.f32 %v598, %v626
    %v631 = vadd.f32 %v599, %v627
    %632 = vset.pattern.permute.xlu0 2
    %633 = vperm.xlu0 %632, %v504
    %v634 = vpop.permute.xlu0 %633
    %636 = vset.pattern.permute.xlu0 2
    %637 = vperm.xlu0 %636, %v505
    %v638 = vpop.permute.xlu0 %637
    %640 = vset.pattern.permute.xlu0 2
    %641 = vperm.xlu0 %640, %v506
    %v642 = vpop.permute.xlu0 %641
    %644 = vset.pattern.permute.xlu0 2
    %645 = vperm.xlu0 %644, %v507
    %v646 = vpop.permute.xlu0 %645
    %v648 = vmul.f32 %v540, %v634
    %v649 = vmul.f32 %v541, %v638
    %v650 = vmul.f32 %v542, %v642
    %v651 = vmul.f32 %v543, %v646
    %v652 = vmul.f32 %v648, %v212
    %v653 = vmul.f32 %v649, %v213
    %v654 = vmul.f32 %v650, %v214
    %v655 = vmul.f32 %v651, %v215
    %v656 = vsub.f32 %v80, %v222
    %v657 = vsub.f32 %v81, %v226
    %v658 = vsub.f32 %v82, %v230
    %v659 = vsub.f32 %v83, %v234
    %660 = vset.pattern.permute.xlu0 12
    %661 = vperm.xlu0 %660, %v504
    %v662 = vpop.permute.xlu0 %661
    %664 = vset.pattern.permute.xlu0 12
    %665 = vperm.xlu0 %664, %v505
    %v666 = vpop.permute.xlu0 %665
    %668 = vset.pattern.permute.xlu0 12
    %669 = vperm.xlu0 %668, %v506
    %v670 = vpop.permute.xlu0 %669
    %672 = vset.pattern.permute.xlu0 12
    %673 = vperm.xlu0 %672, %v507
    %v674 = vpop.permute.xlu0 %673
    %v676 = vmul.f32 %v656, %v662
    %v677 = vmul.f32 %v657, %v666
    %v678 = vmul.f32 %v658, %v670
    %v679 = vmul.f32 %v659, %v674
    %v680 = vmul.f32 %v676, %v248
    %v681 = vmul.f32 %v677, %v249
    %v682 = vmul.f32 %v678, %v250
    %v683 = vmul.f32 %v679, %v251
    %v684 = vadd.f32 %v652, %v680
    %v685 = vadd.f32 %v653, %v681
    %v686 = vadd.f32 %v654, %v682
    %v687 = vadd.f32 %v655, %v683
    %688 = vset.pattern.permute.xlu0 3
    %689 = vperm.xlu0 %688, %v504
    %v690 = vpop.permute.xlu0 %689
    %692 = vset.pattern.permute.xlu0 3
    %693 = vperm.xlu0 %692, %v505
    %v694 = vpop.permute.xlu0 %693
    %696 = vset.pattern.permute.xlu0 3
    %697 = vperm.xlu0 %696, %v506
    %v698 = vpop.permute.xlu0 %697
    %700 = vset.pattern.permute.xlu0 3
    %701 = vperm.xlu0 %700, %v507
    %v702 = vpop.permute.xlu0 %701
    %v704 = vmul.f32 %v600, %v690
    %v705 = vmul.f32 %v601, %v694
    %v706 = vmul.f32 %v602, %v698
    %v707 = vmul.f32 %v603, %v702
    %v708 = vmul.f32 %v704, %v248
    %v709 = vmul.f32 %v705, %v249
    %v710 = vmul.f32 %v706, %v250
    %v711 = vmul.f32 %v707, %v251
    %v712 = vsub.f32 %v80, %v258
    %v713 = vsub.f32 %v81, %v262
    %v714 = vsub.f32 %v82, %v266
    %v715 = vsub.f32 %v83, %v270
    %716 = vset.pattern.permute.xlu0 13
    %717 = vperm.xlu0 %716, %v504
    %v718 = vpop.permute.xlu0 %717
    %720 = vset.pattern.permute.xlu0 13
    %721 = vperm.xlu0 %720, %v505
    %v722 = vpop.permute.xlu0 %721
    %724 = vset.pattern.permute.xlu0 13
    %725 = vperm.xlu0 %724, %v506
    %v726 = vpop.permute.xlu0 %725
    %728 = vset.pattern.permute.xlu0 13
    %729 = vperm.xlu0 %728, %v507
    %v730 = vpop.permute.xlu0 %729
    %v732 = vmul.f32 %v712, %v718
    %v733 = vmul.f32 %v713, %v722
    %v734 = vmul.f32 %v714, %v726
    %v735 = vmul.f32 %v715, %v730
    %v736 = vmul.f32 %v732, %v284
    %v737 = vmul.f32 %v733, %v285
    %v738 = vmul.f32 %v734, %v286
    %v739 = vmul.f32 %v735, %v287
    %v740 = vadd.f32 %v708, %v736
    %v741 = vadd.f32 %v709, %v737
    %v742 = vadd.f32 %v710, %v738
    %v743 = vadd.f32 %v711, %v739
    %744 = vset.pattern.permute.xlu0 4
    %745 = vperm.xlu0 %744, %v504
    %v746 = vpop.permute.xlu0 %745
    %748 = vset.pattern.permute.xlu0 4
    %749 = vperm.xlu0 %748, %v505
    %v750 = vpop.permute.xlu0 %749
    %752 = vset.pattern.permute.xlu0 4
    %753 = vperm.xlu0 %752, %v506
    %v754 = vpop.permute.xlu0 %753
    %756 = vset.pattern.permute.xlu0 4
    %757 = vperm.xlu0 %756, %v507
    %v758 = vpop.permute.xlu0 %757
    %v760 = vmul.f32 %v656, %v746
    %v761 = vmul.f32 %v657, %v750
    %v762 = vmul.f32 %v658, %v754
    %v763 = vmul.f32 %v659, %v758
    %v764 = vmul.f32 %v760, %v284
    %v765 = vmul.f32 %v761, %v285
    %v766 = vmul.f32 %v762, %v286
    %v767 = vmul.f32 %v763, %v287
    %v768 = vsub.f32 %v80, %v294
    %v769 = vsub.f32 %v81, %v298
    %v770 = vsub.f32 %v82, %v302
    %v771 = vsub.f32 %v83, %v306
    %772 = vset.pattern.permute.xlu0 14
    %773 = vperm.xlu0 %772, %v504
    %v774 = vpop.permute.xlu0 %773
    %776 = vset.pattern.permute.xlu0 14
    %777 = vperm.xlu0 %776, %v505
    %v778 = vpop.permute.xlu0 %777
    %780 = vset.pattern.permute.xlu0 14
    %781 = vperm.xlu0 %780, %v506
    %v782 = vpop.permute.xlu0 %781
    %784 = vset.pattern.permute.xlu0 14
    %785 = vperm.xlu0 %784, %v507
    %v786 = vpop.permute.xlu0 %785
    %v788 = vmul.f32 %v768, %v774
    %v789 = vmul.f32 %v769, %v778
    %v790 = vmul.f32 %v770, %v782
    %v791 = vmul.f32 %v771, %v786
    %v792 = vmul.f32 %v788, %v320
    %v793 = vmul.f32 %v789, %v321
    %v794 = vmul.f32 %v790, %v322
    %v795 = vmul.f32 %v791, %v323
    %v796 = vadd.f32 %v764, %v792
    %v797 = vadd.f32 %v765, %v793
    %v798 = vadd.f32 %v766, %v794
    %v799 = vadd.f32 %v767, %v795
    %800 = vset.pattern.permute.xlu0 5
    %801 = vperm.xlu0 %800, %v504
    %v802 = vpop.permute.xlu0 %801
    %804 = vset.pattern.permute.xlu0 5
    %805 = vperm.xlu0 %804, %v505
    %v806 = vpop.permute.xlu0 %805
    %808 = vset.pattern.permute.xlu0 5
    %809 = vperm.xlu0 %808, %v506
    %v810 = vpop.permute.xlu0 %809
    %812 = vset.pattern.permute.xlu0 5
    %813 = vperm.xlu0 %812, %v507
    %v814 = vpop.permute.xlu0 %813
    %v816 = vmul.f32 %v712, %v802
    %v817 = vmul.f32 %v713, %v806
    %v818 = vmul.f32 %v714, %v810
    %v819 = vmul.f32 %v715, %v814
    %v820 = vmul.f32 %v816, %v320
    %v821 = vmul.f32 %v817, %v321
    %v822 = vmul.f32 %v818, %v322
    %v823 = vmul.f32 %v819, %v323
    %v824 = vsub.f32 %v80, %v330
    %v825 = vsub.f32 %v81, %v334
    %v826 = vsub.f32 %v82, %v338
    %v827 = vsub.f32 %v83, %v342
    %828 = vset.pattern.permute.xlu0 15
    %829 = vperm.xlu0 %828, %v504
    %v830 = vpop.permute.xlu0 %829
    %832 = vset.pattern.permute.xlu0 15
    %833 = vperm.xlu0 %832, %v505
    %v834 = vpop.permute.xlu0 %833
    %836 = vset.pattern.permute.xlu0 15
    %837 = vperm.xlu0 %836, %v506
    %v838 = vpop.permute.xlu0 %837
    %840 = vset.pattern.permute.xlu0 15
    %841 = vperm.xlu0 %840, %v507
    %v842 = vpop.permute.xlu0 %841
    %v844 = vmul.f32 %v824, %v830
    %v845 = vmul.f32 %v825, %v834
    %v846 = vmul.f32 %v826, %v838
    %v847 = vmul.f32 %v827, %v842
    %v848 = vmul.f32 %v844, %v356
    %v849 = vmul.f32 %v845, %v357
    %v850 = vmul.f32 %v846, %v358
    %v851 = vmul.f32 %v847, %v359
    %v852 = vadd.f32 %v820, %v848
    %v853 = vadd.f32 %v821, %v849
    %v854 = vadd.f32 %v822, %v850
    %v855 = vadd.f32 %v823, %v851
    %856 = vset.pattern.permute.xlu0 6
    %857 = vperm.xlu0 %856, %v504
    %v858 = vpop.permute.xlu0 %857
    %860 = vset.pattern.permute.xlu0 6
    %861 = vperm.xlu0 %860, %v505
    %v862 = vpop.permute.xlu0 %861
    %864 = vset.pattern.permute.xlu0 6
    %865 = vperm.xlu0 %864, %v506
    %v866 = vpop.permute.xlu0 %865
    %868 = vset.pattern.permute.xlu0 6
    %869 = vperm.xlu0 %868, %v507
    %v870 = vpop.permute.xlu0 %869
    %v872 = vmul.f32 %v768, %v858
    %v873 = vmul.f32 %v769, %v862
    %v874 = vmul.f32 %v770, %v866
    %v875 = vmul.f32 %v771, %v870
    %v876 = vmul.f32 %v872, %v356
    %v877 = vmul.f32 %v873, %v357
    %v878 = vmul.f32 %v874, %v358
    %v879 = vmul.f32 %v875, %v359
    %v880 = vsub.f32 %v80, %v366
    %v881 = vsub.f32 %v81, %v370
    %v882 = vsub.f32 %v82, %v374
    %v883 = vsub.f32 %v83, %v378
    %884 = vset.pattern.permute.xlu0 16
    %885 = vperm.xlu0 %884, %v504
    %v886 = vpop.permute.xlu0 %885
    %888 = vset.pattern.permute.xlu0 16
    %889 = vperm.xlu0 %888, %v505
    %v890 = vpop.permute.xlu0 %889
    %892 = vset.pattern.permute.xlu0 16
    %893 = vperm.xlu0 %892, %v506
    %v894 = vpop.permute.xlu0 %893
    %896 = vset.pattern.permute.xlu0 16
    %897 = vperm.xlu0 %896, %v507
    %v898 = vpop.permute.xlu0 %897
    %v900 = vmul.f32 %v880, %v886
    %v901 = vmul.f32 %v881, %v890
    %v902 = vmul.f32 %v882, %v894
    %v903 = vmul.f32 %v883, %v898
    %v904 = vmul.f32 %v900, %v392
    %v905 = vmul.f32 %v901, %v393
    %v906 = vmul.f32 %v902, %v394
    %v907 = vmul.f32 %v903, %v395
    %v908 = vadd.f32 %v876, %v904
    %v909 = vadd.f32 %v877, %v905
    %v910 = vadd.f32 %v878, %v906
    %v911 = vadd.f32 %v879, %v907
    %912 = vset.pattern.permute.xlu0 7
    %913 = vperm.xlu0 %912, %v504
    %v914 = vpop.permute.xlu0 %913
    %916 = vset.pattern.permute.xlu0 7
    %917 = vperm.xlu0 %916, %v505
    %v918 = vpop.permute.xlu0 %917
    %920 = vset.pattern.permute.xlu0 7
    %921 = vperm.xlu0 %920, %v506
    %v922 = vpop.permute.xlu0 %921
    %924 = vset.pattern.permute.xlu0 7
    %925 = vperm.xlu0 %924, %v507
    %v926 = vpop.permute.xlu0 %925
    %v928 = vmul.f32 %v824, %v914
    %v929 = vmul.f32 %v825, %v918
    %v930 = vmul.f32 %v826, %v922
    %v931 = vmul.f32 %v827, %v926
    %v932 = vmul.f32 %v928, %v392
    %v933 = vmul.f32 %v929, %v393
    %v934 = vmul.f32 %v930, %v394
    %v935 = vmul.f32 %v931, %v395
    %v936 = vsub.f32 %v80, %v402
    %v937 = vsub.f32 %v81, %v406
    %v938 = vsub.f32 %v82, %v410
    %v939 = vsub.f32 %v83, %v414
    %940 = vset.pattern.permute.xlu0 17
    %941 = vperm.xlu0 %940, %v504
    %v942 = vpop.permute.xlu0 %941
    %944 = vset.pattern.permute.xlu0 17
    %945 = vperm.xlu0 %944, %v505
    %v946 = vpop.permute.xlu0 %945
    %948 = vset.pattern.permute.xlu0 17
    %949 = vperm.xlu0 %948, %v506
    %v950 = vpop.permute.xlu0 %949
    %952 = vset.pattern.permute.xlu0 17
    %953 = vperm.xlu0 %952, %v507
    %v954 = vpop.permute.xlu0 %953
    %v956 = vmul.f32 %v936, %v942
    %v957 = vmul.f32 %v937, %v946
    %v958 = vmul.f32 %v938, %v950
    %v959 = vmul.f32 %v939, %v954
    %v960 = vmul.f32 %v956, %v428
    %v961 = vmul.f32 %v957, %v429
    %v962 = vmul.f32 %v958, %v430
    %v963 = vmul.f32 %v959, %v431
    %v964 = vadd.f32 %v932, %v960
    %v965 = vadd.f32 %v933, %v961
    %v966 = vadd.f32 %v934, %v962
    %v967 = vadd.f32 %v935, %v963
    %968 = vset.pattern.permute.xlu0 8
    %969 = vperm.xlu0 %968, %v504
    %v970 = vpop.permute.xlu0 %969
    %972 = vset.pattern.permute.xlu0 8
    %973 = vperm.xlu0 %972, %v505
    %v974 = vpop.permute.xlu0 %973
    %976 = vset.pattern.permute.xlu0 8
    %977 = vperm.xlu0 %976, %v506
    %v978 = vpop.permute.xlu0 %977
    %980 = vset.pattern.permute.xlu0 8
    %981 = vperm.xlu0 %980, %v507
    %v982 = vpop.permute.xlu0 %981
    %v984 = vmul.f32 %v880, %v970
    %v985 = vmul.f32 %v881, %v974
    %v986 = vmul.f32 %v882, %v978
    %v987 = vmul.f32 %v883, %v982
    %v988 = vmul.f32 %v984, %v428
    %v989 = vmul.f32 %v985, %v429
    %v990 = vmul.f32 %v986, %v430
    %v991 = vmul.f32 %v987, %v431
    %v992 = vsub.f32 %v80, %v438
    %v993 = vsub.f32 %v81, %v442
    %v994 = vsub.f32 %v82, %v446
    %v995 = vsub.f32 %v83, %v450
    %996 = vset.pattern.permute.xlu0 18
    %997 = vperm.xlu0 %996, %v504
    %v998 = vpop.permute.xlu0 %997
    %1000 = vset.pattern.permute.xlu0 18
    %1001 = vperm.xlu0 %1000, %v505
    %v1002 = vpop.permute.xlu0 %1001
    %1004 = vset.pattern.permute.xlu0 18
    %1005 = vperm.xlu0 %1004, %v506
    %v1006 = vpop.permute.xlu0 %1005
    %1008 = vset.pattern.permute.xlu0 18
    %1009 = vperm.xlu0 %1008, %v507
    %v1010 = vpop.permute.xlu0 %1009
    %v1012 = vmul.f32 %v992, %v998
    %v1013 = vmul.f32 %v993, %v1002
    %v1014 = vmul.f32 %v994, %v1006
    %v1015 = vmul.f32 %v995, %v1010
    %v1016 = vmul.f32 %v1012, %v464
    %v1017 = vmul.f32 %v1013, %v465
    %v1018 = vmul.f32 %v1014, %v466
    %v1019 = vmul.f32 %v1015, %v467
    %v1020 = vadd.f32 %v988, %v1016
    %v1021 = vadd.f32 %v989, %v1017
    %v1022 = vadd.f32 %v990, %v1018
    %v1023 = vadd.f32 %v991, %v1019
    %1024 = vset.pattern.permute.xlu0 9
    %1025 = vperm.xlu0 %1024, %v504
    %v1026 = vpop.permute.xlu0 %1025
    %1028 = vset.pattern.permute.xlu0 9
    %1029 = vperm.xlu0 %1028, %v505
    %v1030 = vpop.permute.xlu0 %1029
    %1032 = vset.pattern.permute.xlu0 9
    %1033 = vperm.xlu0 %1032, %v506
    %v1034 = vpop.permute.xlu0 %1033
    %1036 = vset.pattern.permute.xlu0 9
    %1037 = vperm.xlu0 %1036, %v507
    %v1038 = vpop.permute.xlu0 %1037
    %v1040 = vmul.f32 %v936, %v1026
    %v1041 = vmul.f32 %v937, %v1030
    %v1042 = vmul.f32 %v938, %v1034
    %v1043 = vmul.f32 %v939, %v1038
    %v1044 = vmul.f32 %v1040, %v464
    %v1045 = vmul.f32 %v1041, %v465
    %v1046 = vmul.f32 %v1042, %v466
    %v1047 = vmul.f32 %v1043, %v467
    %v1048 = vsub.f32 %v80, %v474
    %v1049 = vsub.f32 %v81, %v478
    %v1050 = vsub.f32 %v82, %v482
    %v1051 = vsub.f32 %v83, %v486
    %1052 = vset.pattern.permute.xlu0 19
    %1053 = vperm.xlu0 %1052, %v504
    %v1054 = vpop.permute.xlu0 %1053
    %1056 = vset.pattern.permute.xlu0 19
    %1057 = vperm.xlu0 %1056, %v505
    %v1058 = vpop.permute.xlu0 %1057
    %1060 = vset.pattern.permute.xlu0 19
    %1061 = vperm.xlu0 %1060, %v506
    %v1062 = vpop.permute.xlu0 %1061
    %1064 = vset.pattern.permute.xlu0 19
    %1065 = vperm.xlu0 %1064, %v507
    %v1066 = vpop.permute.xlu0 %1065
    %v1068 = vmul.f32 %v1048, %v1054
    %v1069 = vmul.f32 %v1049, %v1058
    %v1070 = vmul.f32 %v1050, %v1062
    %v1071 = vmul.f32 %v1051, %v1066
    %v1072 = vmul.f32 %v1068, %v500
    %v1073 = vmul.f32 %v1069, %v501
    %v1074 = vmul.f32 %v1070, %v502
    %v1075 = vmul.f32 %v1071, %v503
    %v1076 = vadd.f32 %v1044, %v1072
    %v1077 = vadd.f32 %v1045, %v1073
    %v1078 = vadd.f32 %v1046, %v1074
    %v1079 = vadd.f32 %v1047, %v1075
    %1080 = vset.pattern.permute.xlu0 20
    %1081 = vperm.xlu0 %1080, %v504
    %v1082 = vpop.permute.xlu0 %1081
    %1084 = vset.pattern.permute.xlu0 20
    %1085 = vperm.xlu0 %1084, %v505
    %v1086 = vpop.permute.xlu0 %1085
    %1088 = vset.pattern.permute.xlu0 20
    %1089 = vperm.xlu0 %1088, %v506
    %v1090 = vpop.permute.xlu0 %1089
    %1092 = vset.pattern.permute.xlu0 20
    %1093 = vperm.xlu0 %1092, %v507
    %v1094 = vpop.permute.xlu0 %1093
    %v1096 = vmul.f32 %v508, %v1082
    %v1097 = vmul.f32 %v509, %v1086
    %v1098 = vmul.f32 %v510, %v1090
    %v1099 = vmul.f32 %v511, %v1094
    %v1100 = vmul.f32 %v1096, %v568
    %v1101 = vmul.f32 %v1097, %v569
    %v1102 = vmul.f32 %v1098, %v570
    %v1103 = vmul.f32 %v1099, %v571
    %1104 = vset.pattern.permute.xlu0 29
    %1105 = vperm.xlu0 %1104, %v504
    %v1106 = vpop.permute.xlu0 %1105
    %1108 = vset.pattern.permute.xlu0 29
    %1109 = vperm.xlu0 %1108, %v505
    %v1110 = vpop.permute.xlu0 %1109
    %1112 = vset.pattern.permute.xlu0 29
    %1113 = vperm.xlu0 %1112, %v506
    %v1114 = vpop.permute.xlu0 %1113
    %1116 = vset.pattern.permute.xlu0 29
    %1117 = vperm.xlu0 %1116, %v507
    %v1118 = vpop.permute.xlu0 %1117
    %v1120 = vmul.f32 %v600, %v1106
    %v1121 = vmul.f32 %v601, %v1110
    %v1122 = vmul.f32 %v602, %v1114
    %v1123 = vmul.f32 %v603, %v1118
    %v1124 = vmul.f32 %v1120, %v628
    %v1125 = vmul.f32 %v1121, %v629
    %v1126 = vmul.f32 %v1122, %v630
    %v1127 = vmul.f32 %v1123, %v631
    %v1128 = vadd.f32 %v1100, %v1124
    %v1129 = vadd.f32 %v1101, %v1125
    %v1130 = vadd.f32 %v1102, %v1126
    %v1131 = vadd.f32 %v1103, %v1127
    %1132 = vset.pattern.permute.xlu0 21
    %1133 = vperm.xlu0 %1132, %v504
    %v1134 = vpop.permute.xlu0 %1133
    %1136 = vset.pattern.permute.xlu0 21
    %1137 = vperm.xlu0 %1136, %v505
    %v1138 = vpop.permute.xlu0 %1137
    %1140 = vset.pattern.permute.xlu0 21
    %1141 = vperm.xlu0 %1140, %v506
    %v1142 = vpop.permute.xlu0 %1141
    %1144 = vset.pattern.permute.xlu0 21
    %1145 = vperm.xlu0 %1144, %v507
    %v1146 = vpop.permute.xlu0 %1145
    %v1148 = vmul.f32 %v572, %v1134
    %v1149 = vmul.f32 %v573, %v1138
    %v1150 = vmul.f32 %v574, %v1142
    %v1151 = vmul.f32 %v575, %v1146
    %v1152 = vmul.f32 %v1148, %v628
    %v1153 = vmul.f32 %v1149, %v629
    %v1154 = vmul.f32 %v1150, %v630
    %v1155 = vmul.f32 %v1151, %v631
    %1156 = vset.pattern.permute.xlu0 30
    %1157 = vperm.xlu0 %1156, %v504
    %v1158 = vpop.permute.xlu0 %1157
    %1160 = vset.pattern.permute.xlu0 30
    %1161 = vperm.xlu0 %1160, %v505
    %v1162 = vpop.permute.xlu0 %1161
    %1164 = vset.pattern.permute.xlu0 30
    %1165 = vperm.xlu0 %1164, %v506
    %v1166 = vpop.permute.xlu0 %1165
    %1168 = vset.pattern.permute.xlu0 30
    %1169 = vperm.xlu0 %1168, %v507
    %v1170 = vpop.permute.xlu0 %1169
    %v1172 = vmul.f32 %v656, %v1158
    %v1173 = vmul.f32 %v657, %v1162
    %v1174 = vmul.f32 %v658, %v1166
    %v1175 = vmul.f32 %v659, %v1170
    %v1176 = vmul.f32 %v1172, %v684
    %v1177 = vmul.f32 %v1173, %v685
    %v1178 = vmul.f32 %v1174, %v686
    %v1179 = vmul.f32 %v1175, %v687
    %v1180 = vadd.f32 %v1152, %v1176
    %v1181 = vadd.f32 %v1153, %v1177
    %v1182 = vadd.f32 %v1154, %v1178
    %v1183 = vadd.f32 %v1155, %v1179
    %1184 = vset.pattern.permute.xlu0 22
    %1185 = vperm.xlu0 %1184, %v504
    %v1186 = vpop.permute.xlu0 %1185
    %1188 = vset.pattern.permute.xlu0 22
    %1189 = vperm.xlu0 %1188, %v505
    %v1190 = vpop.permute.xlu0 %1189
    %1192 = vset.pattern.permute.xlu0 22
    %1193 = vperm.xlu0 %1192, %v506
    %v1194 = vpop.permute.xlu0 %1193
    %1196 = vset.pattern.permute.xlu0 22
    %1197 = vperm.xlu0 %1196, %v507
    %v1198 = vpop.permute.xlu0 %1197
    %v1200 = vmul.f32 %v540, %v1186
    %v1201 = vmul.f32 %v541, %v1190
    %v1202 = vmul.f32 %v542, %v1194
    %v1203 = vmul.f32 %v543, %v1198
    %v1204 = vmul.f32 %v1200, %v684
    %v1205 = vmul.f32 %v1201, %v685
    %v1206 = vmul.f32 %v1202, %v686
    %v1207 = vmul.f32 %v1203, %v687
    %1208 = vset.pattern.permute.xlu0 31
    %1209 = vperm.xlu0 %1208, %v504
    %v1210 = vpop.permute.xlu0 %1209
    %1212 = vset.pattern.permute.xlu0 31
    %1213 = vperm.xlu0 %1212, %v505
    %v1214 = vpop.permute.xlu0 %1213
    %1216 = vset.pattern.permute.xlu0 31
    %1217 = vperm.xlu0 %1216, %v506
    %v1218 = vpop.permute.xlu0 %1217
    %1220 = vset.pattern.permute.xlu0 31
    %1221 = vperm.xlu0 %1220, %v507
    %v1222 = vpop.permute.xlu0 %1221
    %v1224 = vmul.f32 %v712, %v1210
    %v1225 = vmul.f32 %v713, %v1214
    %v1226 = vmul.f32 %v714, %v1218
    %v1227 = vmul.f32 %v715, %v1222
    %v1228 = vmul.f32 %v1224, %v740
    %v1229 = vmul.f32 %v1225, %v741
    %v1230 = vmul.f32 %v1226, %v742
    %v1231 = vmul.f32 %v1227, %v743
    %v1232 = vadd.f32 %v1204, %v1228
    %v1233 = vadd.f32 %v1205, %v1229
    %v1234 = vadd.f32 %v1206, %v1230
    %v1235 = vadd.f32 %v1207, %v1231
    %1236 = vset.pattern.permute.xlu0 23
    %1237 = vperm.xlu0 %1236, %v504
    %v1238 = vpop.permute.xlu0 %1237
    %1240 = vset.pattern.permute.xlu0 23
    %1241 = vperm.xlu0 %1240, %v505
    %v1242 = vpop.permute.xlu0 %1241
    %1244 = vset.pattern.permute.xlu0 23
    %1245 = vperm.xlu0 %1244, %v506
    %v1246 = vpop.permute.xlu0 %1245
    %1248 = vset.pattern.permute.xlu0 23
    %1249 = vperm.xlu0 %1248, %v507
    %v1250 = vpop.permute.xlu0 %1249
    %v1252 = vmul.f32 %v600, %v1238
    %v1253 = vmul.f32 %v601, %v1242
    %v1254 = vmul.f32 %v602, %v1246
    %v1255 = vmul.f32 %v603, %v1250
    %v1256 = vmul.f32 %v1252, %v740
    %v1257 = vmul.f32 %v1253, %v741
    %v1258 = vmul.f32 %v1254, %v742
    %v1259 = vmul.f32 %v1255, %v743
    %1260 = vset.pattern.permute.xlu0 32
    %1261 = vperm.xlu0 %1260, %v504
    %v1262 = vpop.permute.xlu0 %1261
    %1264 = vset.pattern.permute.xlu0 32
    %1265 = vperm.xlu0 %1264, %v505
    %v1266 = vpop.permute.xlu0 %1265
    %1268 = vset.pattern.permute.xlu0 32
    %1269 = vperm.xlu0 %1268, %v506
    %v1270 = vpop.permute.xlu0 %1269
    %1272 = vset.pattern.permute.xlu0 32
    %1273 = vperm.xlu0 %1272, %v507
    %v1274 = vpop.permute.xlu0 %1273
    %v1276 = vmul.f32 %v768, %v1262
    %v1277 = vmul.f32 %v769, %v1266
    %v1278 = vmul.f32 %v770, %v1270
    %v1279 = vmul.f32 %v771, %v1274
    %v1280 = vmul.f32 %v1276, %v796
    %v1281 = vmul.f32 %v1277, %v797
    %v1282 = vmul.f32 %v1278, %v798
    %v1283 = vmul.f32 %v1279, %v799
    %v1284 = vadd.f32 %v1256, %v1280
    %v1285 = vadd.f32 %v1257, %v1281
    %v1286 = vadd.f32 %v1258, %v1282
    %v1287 = vadd.f32 %v1259, %v1283
    %1288 = vset.pattern.permute.xlu0 24
    %1289 = vperm.xlu0 %1288, %v504
    %v1290 = vpop.permute.xlu0 %1289
    %1292 = vset.pattern.permute.xlu0 24
    %1293 = vperm.xlu0 %1292, %v505
    %v1294 = vpop.permute.xlu0 %1293
    %1296 = vset.pattern.permute.xlu0 24
    %1297 = vperm.xlu0 %1296, %v506
    %v1298 = vpop.permute.xlu0 %1297
    %1300 = vset.pattern.permute.xlu0 24
    %1301 = vperm.xlu0 %1300, %v507
    %v1302 = vpop.permute.xlu0 %1301
    %v1304 = vmul.f32 %v656, %v1290
    %v1305 = vmul.f32 %v657, %v1294
    %v1306 = vmul.f32 %v658, %v1298
    %v1307 = vmul.f32 %v659, %v1302
    %v1308 = vmul.f32 %v1304, %v796
    %v1309 = vmul.f32 %v1305, %v797
    %v1310 = vmul.f32 %v1306, %v798
    %v1311 = vmul.f32 %v1307, %v799
    %1312 = vset.pattern.permute.xlu0 33
    %1313 = vperm.xlu0 %1312, %v504
    %v1314 = vpop.permute.xlu0 %1313
    %1316 = vset.pattern.permute.xlu0 33
    %1317 = vperm.xlu0 %1316, %v505
    %v1318 = vpop.permute.xlu0 %1317
    %1320 = vset.pattern.permute.xlu0 33
    %1321 = vperm.xlu0 %1320, %v506
    %v1322 = vpop.permute.xlu0 %1321
    %1324 = vset.pattern.permute.xlu0 33
    %1325 = vperm.xlu0 %1324, %v507
    %v1326 = vpop.permute.xlu0 %1325
    %v1328 = vmul.f32 %v824, %v1314
    %v1329 = vmul.f32 %v825, %v1318
    %v1330 = vmul.f32 %v826, %v1322
    %v1331 = vmul.f32 %v827, %v1326
    %v1332 = vmul.f32 %v1328, %v852
    %v1333 = vmul.f32 %v1329, %v853
    %v1334 = vmul.f32 %v1330, %v854
    %v1335 = vmul.f32 %v1331, %v855
    %v1336 = vadd.f32 %v1308, %v1332
    %v1337 = vadd.f32 %v1309, %v1333
    %v1338 = vadd.f32 %v1310, %v1334
    %v1339 = vadd.f32 %v1311, %v1335
    %1340 = vset.pattern.permute.xlu0 25
    %1341 = vperm.xlu0 %1340, %v504
    %v1342 = vpop.permute.xlu0 %1341
    %1344 = vset.pattern.permute.xlu0 25
    %1345 = vperm.xlu0 %1344, %v505
    %v1346 = vpop.permute.xlu0 %1345
    %1348 = vset.pattern.permute.xlu0 25
    %1349 = vperm.xlu0 %1348, %v506
    %v1350 = vpop.permute.xlu0 %1349
    %1352 = vset.pattern.permute.xlu0 25
    %1353 = vperm.xlu0 %1352, %v507
    %v1354 = vpop.permute.xlu0 %1353
    %v1356 = vmul.f32 %v712, %v1342
    %v1357 = vmul.f32 %v713, %v1346
    %v1358 = vmul.f32 %v714, %v1350
    %v1359 = vmul.f32 %v715, %v1354
    %v1360 = vmul.f32 %v1356, %v852
    %v1361 = vmul.f32 %v1357, %v853
    %v1362 = vmul.f32 %v1358, %v854
    %v1363 = vmul.f32 %v1359, %v855
    %1364 = vset.pattern.permute.xlu0 34
    %1365 = vperm.xlu0 %1364, %v504
    %v1366 = vpop.permute.xlu0 %1365
    %1368 = vset.pattern.permute.xlu0 34
    %1369 = vperm.xlu0 %1368, %v505
    %v1370 = vpop.permute.xlu0 %1369
    %1372 = vset.pattern.permute.xlu0 34
    %1373 = vperm.xlu0 %1372, %v506
    %v1374 = vpop.permute.xlu0 %1373
    %1376 = vset.pattern.permute.xlu0 34
    %1377 = vperm.xlu0 %1376, %v507
    %v1378 = vpop.permute.xlu0 %1377
    %v1380 = vmul.f32 %v880, %v1366
    %v1381 = vmul.f32 %v881, %v1370
    %v1382 = vmul.f32 %v882, %v1374
    %v1383 = vmul.f32 %v883, %v1378
    %v1384 = vmul.f32 %v1380, %v908
    %v1385 = vmul.f32 %v1381, %v909
    %v1386 = vmul.f32 %v1382, %v910
    %v1387 = vmul.f32 %v1383, %v911
    %v1388 = vadd.f32 %v1360, %v1384
    %v1389 = vadd.f32 %v1361, %v1385
    %v1390 = vadd.f32 %v1362, %v1386
    %v1391 = vadd.f32 %v1363, %v1387
    %1392 = vset.pattern.permute.xlu0 26
    %1393 = vperm.xlu0 %1392, %v504
    %v1394 = vpop.permute.xlu0 %1393
    %1396 = vset.pattern.permute.xlu0 26
    %1397 = vperm.xlu0 %1396, %v505
    %v1398 = vpop.permute.xlu0 %1397
    %1400 = vset.pattern.permute.xlu0 26
    %1401 = vperm.xlu0 %1400, %v506
    %v1402 = vpop.permute.xlu0 %1401
    %1404 = vset.pattern.permute.xlu0 26
    %1405 = vperm.xlu0 %1404, %v507
    %v1406 = vpop.permute.xlu0 %1405
    %v1408 = vmul.f32 %v768, %v1394
    %v1409 = vmul.f32 %v769, %v1398
    %v1410 = vmul.f32 %v770, %v1402
    %v1411 = vmul.f32 %v771, %v1406
    %v1412 = vmul.f32 %v1408, %v908
    %v1413 = vmul.f32 %v1409, %v909
    %v1414 = vmul.f32 %v1410, %v910
    %v1415 = vmul.f32 %v1411, %v911
    %1416 = vset.pattern.permute.xlu0 35
    %1417 = vperm.xlu0 %1416, %v504
    %v1418 = vpop.permute.xlu0 %1417
    %1420 = vset.pattern.permute.xlu0 35
    %1421 = vperm.xlu0 %1420, %v505
    %v1422 = vpop.permute.xlu0 %1421
    %1424 = vset.pattern.permute.xlu0 35
    %1425 = vperm.xlu0 %1424, %v506
    %v1426 = vpop.permute.xlu0 %1425
    %1428 = vset.pattern.permute.xlu0 35
    %1429 = vperm.xlu0 %1428, %v507
    %v1430 = vpop.permute.xlu0 %1429
    %v1432 = vmul.f32 %v936, %v1418
    %v1433 = vmul.f32 %v937, %v1422
    %v1434 = vmul.f32 %v938, %v1426
    %v1435 = vmul.f32 %v939, %v1430
    %v1436 = vmul.f32 %v1432, %v964
    %v1437 = vmul.f32 %v1433, %v965
    %v1438 = vmul.f32 %v1434, %v966
    %v1439 = vmul.f32 %v1435, %v967
    %v1440 = vadd.f32 %v1412, %v1436
    %v1441 = vadd.f32 %v1413, %v1437
    %v1442 = vadd.f32 %v1414, %v1438
    %v1443 = vadd.f32 %v1415, %v1439
    %1444 = vset.pattern.permute.xlu0 27
    %1445 = vperm.xlu0 %1444, %v504
    %v1446 = vpop.permute.xlu0 %1445
    %1448 = vset.pattern.permute.xlu0 27
    %1449 = vperm.xlu0 %1448, %v505
    %v1450 = vpop.permute.xlu0 %1449
    %1452 = vset.pattern.permute.xlu0 27
    %1453 = vperm.xlu0 %1452, %v506
    %v1454 = vpop.permute.xlu0 %1453
    %1456 = vset.pattern.permute.xlu0 27
    %1457 = vperm.xlu0 %1456, %v507
    %v1458 = vpop.permute.xlu0 %1457
    %v1460 = vmul.f32 %v824, %v1446
    %v1461 = vmul.f32 %v825, %v1450
    %v1462 = vmul.f32 %v826, %v1454
    %v1463 = vmul.f32 %v827, %v1458
    %v1464 = vmul.f32 %v1460, %v964
    %v1465 = vmul.f32 %v1461, %v965
    %v1466 = vmul.f32 %v1462, %v966
    %v1467 = vmul.f32 %v1463, %v967
    %1468 = vset.pattern.permute.xlu0 36
    %1469 = vperm.xlu0 %1468, %v504
    %v1470 = vpop.permute.xlu0 %1469
    %1472 = vset.pattern.permute.xlu0 36
    %1473 = vperm.xlu0 %1472, %v505
    %v1474 = vpop.permute.xlu0 %1473
    %1476 = vset.pattern.permute.xlu0 36
    %1477 = vperm.xlu0 %1476, %v506
    %v1478 = vpop.permute.xlu0 %1477
    %1480 = vset.pattern.permute.xlu0 36
    %1481 = vperm.xlu0 %1480, %v507
    %v1482 = vpop.permute.xlu0 %1481
    %v1484 = vmul.f32 %v992, %v1470
    %v1485 = vmul.f32 %v993, %v1474
    %v1486 = vmul.f32 %v994, %v1478
    %v1487 = vmul.f32 %v995, %v1482
    %v1488 = vmul.f32 %v1484, %v1020
    %v1489 = vmul.f32 %v1485, %v1021
    %v1490 = vmul.f32 %v1486, %v1022
    %v1491 = vmul.f32 %v1487, %v1023
    %v1492 = vadd.f32 %v1464, %v1488
    %v1493 = vadd.f32 %v1465, %v1489
    %v1494 = vadd.f32 %v1466, %v1490
    %v1495 = vadd.f32 %v1467, %v1491
    %1496 = vset.pattern.permute.xlu0 28
    %1497 = vperm.xlu0 %1496, %v504
    %v1498 = vpop.permute.xlu0 %1497
    %1500 = vset.pattern.permute.xlu0 28
    %1501 = vperm.xlu0 %1500, %v505
    %v1502 = vpop.permute.xlu0 %1501
    %1504 = vset.pattern.permute.xlu0 28
    %1505 = vperm.xlu0 %1504, %v506
    %v1506 = vpop.permute.xlu0 %1505
    %1508 = vset.pattern.permute.xlu0 28
    %1509 = vperm.xlu0 %1508, %v507
    %v1510 = vpop.permute.xlu0 %1509
    %v1512 = vmul.f32 %v880, %v1498
    %v1513 = vmul.f32 %v881, %v1502
    %v1514 = vmul.f32 %v882, %v1506
    %v1515 = vmul.f32 %v883, %v1510
    %v1516 = vmul.f32 %v1512, %v1020
    %v1517 = vmul.f32 %v1513, %v1021
    %v1518 = vmul.f32 %v1514, %v1022
    %v1519 = vmul.f32 %v1515, %v1023
    %1520 = vset.pattern.permute.xlu0 37
    %1521 = vperm.xlu0 %1520, %v504
    %v1522 = vpop.permute.xlu0 %1521
    %1524 = vset.pattern.permute.xlu0 37
    %1525 = vperm.xlu0 %1524, %v505
    %v1526 = vpop.permute.xlu0 %1525
    %1528 = vset.pattern.permute.xlu0 37
    %1529 = vperm.xlu0 %1528, %v506
    %v1530 = vpop.permute.xlu0 %1529
    %1532 = vset.pattern.permute.xlu0 37
    %1533 = vperm.xlu0 %1532, %v507
    %v1534 = vpop.permute.xlu0 %1533
    %v1536 = vmul.f32 %v1048, %v1522
    %v1537 = vmul.f32 %v1049, %v1526
    %v1538 = vmul.f32 %v1050, %v1530
    %v1539 = vmul.f32 %v1051, %v1534
    %v1540 = vmul.f32 %v1536, %v1076
    %v1541 = vmul.f32 %v1537, %v1077
    %v1542 = vmul.f32 %v1538, %v1078
    %v1543 = vmul.f32 %v1539, %v1079
    %v1544 = vadd.f32 %v1516, %v1540
    %v1545 = vadd.f32 %v1517, %v1541
    %v1546 = vadd.f32 %v1518, %v1542
    %v1547 = vadd.f32 %v1519, %v1543
    %1548 = vset.pattern.permute.xlu0 38
    %1549 = vperm.xlu0 %1548, %v504
    %v1550 = vpop.permute.xlu0 %1549
    %1552 = vset.pattern.permute.xlu0 38
    %1553 = vperm.xlu0 %1552, %v505
    %v1554 = vpop.permute.xlu0 %1553
    %1556 = vset.pattern.permute.xlu0 38
    %1557 = vperm.xlu0 %1556, %v506
    %v1558 = vpop.permute.xlu0 %1557
    %1560 = vset.pattern.permute.xlu0 38
    %1561 = vperm.xlu0 %1560, %v507
    %v1562 = vpop.permute.xlu0 %1561
    %v1564 = vmul.f32 %v508, %v1550
    %v1565 = vmul.f32 %v509, %v1554
    %v1566 = vmul.f32 %v510, %v1558
    %v1567 = vmul.f32 %v511, %v1562
    %v1568 = vmul.f32 %v1564, %v1128
    %v1569 = vmul.f32 %v1565, %v1129
    %v1570 = vmul.f32 %v1566, %v1130
    %v1571 = vmul.f32 %v1567, %v1131
    %1572 = vset.pattern.permute.xlu0 46
    %1573 = vperm.xlu0 %1572, %v504
    %v1574 = vpop.permute.xlu0 %1573
    %1576 = vset.pattern.permute.xlu0 46
    %1577 = vperm.xlu0 %1576, %v505
    %v1578 = vpop.permute.xlu0 %1577
    %1580 = vset.pattern.permute.xlu0 46
    %1581 = vperm.xlu0 %1580, %v506
    %v1582 = vpop.permute.xlu0 %1581
    %1584 = vset.pattern.permute.xlu0 46
    %1585 = vperm.xlu0 %1584, %v507
    %v1586 = vpop.permute.xlu0 %1585
    %v1588 = vmul.f32 %v656, %v1574
    %v1589 = vmul.f32 %v657, %v1578
    %v1590 = vmul.f32 %v658, %v1582
    %v1591 = vmul.f32 %v659, %v1586
    %v1592 = vmul.f32 %v1588, %v1180
    %v1593 = vmul.f32 %v1589, %v1181
    %v1594 = vmul.f32 %v1590, %v1182
    %v1595 = vmul.f32 %v1591, %v1183
    %v1596 = vadd.f32 %v1568, %v1592
    %v1597 = vadd.f32 %v1569, %v1593
    %v1598 = vadd.f32 %v1570, %v1594
    %v1599 = vadd.f32 %v1571, %v1595
    %1600 = vset.pattern.permute.xlu0 39
    %1601 = vperm.xlu0 %1600, %v504
    %v1602 = vpop.permute.xlu0 %1601
    %1604 = vset.pattern.permute.xlu0 39
    %1605 = vperm.xlu0 %1604, %v505
    %v1606 = vpop.permute.xlu0 %1605
    %1608 = vset.pattern.permute.xlu0 39
    %1609 = vperm.xlu0 %1608, %v506
    %v1610 = vpop.permute.xlu0 %1609
    %1612 = vset.pattern.permute.xlu0 39
    %1613 = vperm.xlu0 %1612, %v507
    %v1614 = vpop.permute.xlu0 %1613
    %v1616 = vmul.f32 %v572, %v1602
    %v1617 = vmul.f32 %v573, %v1606
    %v1618 = vmul.f32 %v574, %v1610
    %v1619 = vmul.f32 %v575, %v1614
    %v1620 = vmul.f32 %v1616, %v1180
    %v1621 = vmul.f32 %v1617, %v1181
    %v1622 = vmul.f32 %v1618, %v1182
    %v1623 = vmul.f32 %v1619, %v1183
    %1624 = vset.pattern.permute.xlu0 47
    %1625 = vperm.xlu0 %1624, %v504
    %v1626 = vpop.permute.xlu0 %1625
    %1628 = vset.pattern.permute.xlu0 47
    %1629 = vperm.xlu0 %1628, %v505
    %v1630 = vpop.permute.xlu0 %1629
    %1632 = vset.pattern.permute.xlu0 47
    %1633 = vperm.xlu0 %1632, %v506
    %v1634 = vpop.permute.xlu0 %1633
    %1636 = vset.pattern.permute.xlu0 47
    %1637 = vperm.xlu0 %1636, %v507
    %v1638 = vpop.permute.xlu0 %1637
    %v1640 = vmul.f32 %v712, %v1626
    %v1641 = vmul.f32 %v713, %v1630
    %v1642 = vmul.f32 %v714, %v1634
    %v1643 = vmul.f32 %v715, %v1638
    %v1644 = vmul.f32 %v1640, %v1232
    %v1645 = vmul.f32 %v1641, %v1233
    %v1646 = vmul.f32 %v1642, %v1234
    %v1647 = vmul.f32 %v1643, %v1235
    %v1648 = vadd.f32 %v1620, %v1644
    %v1649 = vadd.f32 %v1621, %v1645
    %v1650 = vadd.f32 %v1622, %v1646
    %v1651 = vadd.f32 %v1623, %v1647
    %1652 = vset.pattern.permute.xlu0 40
    %1653 = vperm.xlu0 %1652, %v504
    %v1654 = vpop.permute.xlu0 %1653
    %1656 = vset.pattern.permute.xlu0 40
    %1657 = vperm.xlu0 %1656, %v505
    %v1658 = vpop.permute.xlu0 %1657
    %1660 = vset.pattern.permute.xlu0 40
    %1661 = vperm.xlu0 %1660, %v506
    %v1662 = vpop.permute.xlu0 %1661
    %1664 = vset.pattern.permute.xlu0 40
    %1665 = vperm.xlu0 %1664, %v507
    %v1666 = vpop.permute.xlu0 %1665
    %v1668 = vmul.f32 %v540, %v1654
    %v1669 = vmul.f32 %v541, %v1658
    %v1670 = vmul.f32 %v542, %v1662
    %v1671 = vmul.f32 %v543, %v1666
    %v1672 = vmul.f32 %v1668, %v1232
    %v1673 = vmul.f32 %v1669, %v1233
    %v1674 = vmul.f32 %v1670, %v1234
    %v1675 = vmul.f32 %v1671, %v1235
    %1676 = vset.pattern.permute.xlu0 48
    %1677 = vperm.xlu0 %1676, %v504
    %v1678 = vpop.permute.xlu0 %1677
    %1680 = vset.pattern.permute.xlu0 48
    %1681 = vperm.xlu0 %1680, %v505
    %v1682 = vpop.permute.xlu0 %1681
    %1684 = vset.pattern.permute.xlu0 48
    %1685 = vperm.xlu0 %1684, %v506
    %v1686 = vpop.permute.xlu0 %1685
    %1688 = vset.pattern.permute.xlu0 48
    %1689 = vperm.xlu0 %1688, %v507
    %v1690 = vpop.permute.xlu0 %1689
    %v1692 = vmul.f32 %v768, %v1678
    %v1693 = vmul.f32 %v769, %v1682
    %v1694 = vmul.f32 %v770, %v1686
    %v1695 = vmul.f32 %v771, %v1690
    %v1696 = vmul.f32 %v1692, %v1284
    %v1697 = vmul.f32 %v1693, %v1285
    %v1698 = vmul.f32 %v1694, %v1286
    %v1699 = vmul.f32 %v1695, %v1287
    %v1700 = vadd.f32 %v1672, %v1696
    %v1701 = vadd.f32 %v1673, %v1697
    %v1702 = vadd.f32 %v1674, %v1698
    %v1703 = vadd.f32 %v1675, %v1699
    %1704 = vset.pattern.permute.xlu0 41
    %1705 = vperm.xlu0 %1704, %v504
    %v1706 = vpop.permute.xlu0 %1705
    %1708 = vset.pattern.permute.xlu0 41
    %1709 = vperm.xlu0 %1708, %v505
    %v1710 = vpop.permute.xlu0 %1709
    %1712 = vset.pattern.permute.xlu0 41
    %1713 = vperm.xlu0 %1712, %v506
    %v1714 = vpop.permute.xlu0 %1713
    %1716 = vset.pattern.permute.xlu0 41
    %1717 = vperm.xlu0 %1716, %v507
    %v1718 = vpop.permute.xlu0 %1717
    %v1720 = vmul.f32 %v600, %v1706
    %v1721 = vmul.f32 %v601, %v1710
    %v1722 = vmul.f32 %v602, %v1714
    %v1723 = vmul.f32 %v603, %v1718
    %v1724 = vmul.f32 %v1720, %v1284
    %v1725 = vmul.f32 %v1721, %v1285
    %v1726 = vmul.f32 %v1722, %v1286
    %v1727 = vmul.f32 %v1723, %v1287
    %1728 = vset.pattern.permute.xlu0 49
    %1729 = vperm.xlu0 %1728, %v504
    %v1730 = vpop.permute.xlu0 %1729
    %1732 = vset.pattern.permute.xlu0 49
    %1733 = vperm.xlu0 %1732, %v505
    %v1734 = vpop.permute.xlu0 %1733
    %1736 = vset.pattern.permute.xlu0 49
    %1737 = vperm.xlu0 %1736, %v506
    %v1738 = vpop.permute.xlu0 %1737
    %1740 = vset.pattern.permute.xlu0 49
    %1741 = vperm.xlu0 %1740, %v507
    %v1742 = vpop.permute.xlu0 %1741
    %v1744 = vmul.f32 %v824, %v1730
    %v1745 = vmul.f32 %v825, %v1734
    %v1746 = vmul.f32 %v826, %v1738
    %v1747 = vmul.f32 %v827, %v1742
    %v1748 = vmul.f32 %v1744, %v1336
    %v1749 = vmul.f32 %v1745, %v1337
    %v1750 = vmul.f32 %v1746, %v1338
    %v1751 = vmul.f32 %v1747, %v1339
    %v1752 = vadd.f32 %v1724, %v1748
    %v1753 = vadd.f32 %v1725, %v1749
    %v1754 = vadd.f32 %v1726, %v1750
    %v1755 = vadd.f32 %v1727, %v1751
    %1756 = vset.pattern.permute.xlu0 42
    %1757 = vperm.xlu0 %1756, %v504
    %v1758 = vpop.permute.xlu0 %1757
    %1760 = vset.pattern.permute.xlu0 42
    %1761 = vperm.xlu0 %1760, %v505
    %v1762 = vpop.permute.xlu0 %1761
    %1764 = vset.pattern.permute.xlu0 42
    %1765 = vperm.xlu0 %1764, %v506
    %v1766 = vpop.permute.xlu0 %1765
    %1768 = vset.pattern.permute.xlu0 42
    %1769 = vperm.xlu0 %1768, %v507
    %v1770 = vpop.permute.xlu0 %1769
    %v1772 = vmul.f32 %v656, %v1758
    %v1773 = vmul.f32 %v657, %v1762
    %v1774 = vmul.f32 %v658, %v1766
    %v1775 = vmul.f32 %v659, %v1770
    %v1776 = vmul.f32 %v1772, %v1336
    %v1777 = vmul.f32 %v1773, %v1337
    %v1778 = vmul.f32 %v1774, %v1338
    %v1779 = vmul.f32 %v1775, %v1339
    %1780 = vset.pattern.permute.xlu0 50
    %1781 = vperm.xlu0 %1780, %v504
    %v1782 = vpop.permute.xlu0 %1781
    %1784 = vset.pattern.permute.xlu0 50
    %1785 = vperm.xlu0 %1784, %v505
    %v1786 = vpop.permute.xlu0 %1785
    %1788 = vset.pattern.permute.xlu0 50
    %1789 = vperm.xlu0 %1788, %v506
    %v1790 = vpop.permute.xlu0 %1789
    %1792 = vset.pattern.permute.xlu0 50
    %1793 = vperm.xlu0 %1792, %v507
    %v1794 = vpop.permute.xlu0 %1793
    %v1796 = vmul.f32 %v880, %v1782
    %v1797 = vmul.f32 %v881, %v1786
    %v1798 = vmul.f32 %v882, %v1790
    %v1799 = vmul.f32 %v883, %v1794
    %v1800 = vmul.f32 %v1796, %v1388
    %v1801 = vmul.f32 %v1797, %v1389
    %v1802 = vmul.f32 %v1798, %v1390
    %v1803 = vmul.f32 %v1799, %v1391
    %v1804 = vadd.f32 %v1776, %v1800
    %v1805 = vadd.f32 %v1777, %v1801
    %v1806 = vadd.f32 %v1778, %v1802
    %v1807 = vadd.f32 %v1779, %v1803
    %1808 = vset.pattern.permute.xlu0 43
    %1809 = vperm.xlu0 %1808, %v504
    %v1810 = vpop.permute.xlu0 %1809
    %1812 = vset.pattern.permute.xlu0 43
    %1813 = vperm.xlu0 %1812, %v505
    %v1814 = vpop.permute.xlu0 %1813
    %1816 = vset.pattern.permute.xlu0 43
    %1817 = vperm.xlu0 %1816, %v506
    %v1818 = vpop.permute.xlu0 %1817
    %1820 = vset.pattern.permute.xlu0 43
    %1821 = vperm.xlu0 %1820, %v507
    %v1822 = vpop.permute.xlu0 %1821
    %v1824 = vmul.f32 %v712, %v1810
    %v1825 = vmul.f32 %v713, %v1814
    %v1826 = vmul.f32 %v714, %v1818
    %v1827 = vmul.f32 %v715, %v1822
    %v1828 = vmul.f32 %v1824, %v1388
    %v1829 = vmul.f32 %v1825, %v1389
    %v1830 = vmul.f32 %v1826, %v1390
    %v1831 = vmul.f32 %v1827, %v1391
    %1832 = vset.pattern.permute.xlu0 51
    %1833 = vperm.xlu0 %1832, %v504
    %v1834 = vpop.permute.xlu0 %1833
    %1836 = vset.pattern.permute.xlu0 51
    %1837 = vperm.xlu0 %1836, %v505
    %v1838 = vpop.permute.xlu0 %1837
    %1840 = vset.pattern.permute.xlu0 51
    %1841 = vperm.xlu0 %1840, %v506
    %v1842 = vpop.permute.xlu0 %1841
    %1844 = vset.pattern.permute.xlu0 51
    %1845 = vperm.xlu0 %1844, %v507
    %v1846 = vpop.permute.xlu0 %1845
    %v1848 = vmul.f32 %v936, %v1834
    %v1849 = vmul.f32 %v937, %v1838
    %v1850 = vmul.f32 %v938, %v1842
    %v1851 = vmul.f32 %v939, %v1846
    %v1852 = vmul.f32 %v1848, %v1440
    %v1853 = vmul.f32 %v1849, %v1441
    %v1854 = vmul.f32 %v1850, %v1442
    %v1855 = vmul.f32 %v1851, %v1443
    %v1856 = vadd.f32 %v1828, %v1852
    %v1857 = vadd.f32 %v1829, %v1853
    %v1858 = vadd.f32 %v1830, %v1854
    %v1859 = vadd.f32 %v1831, %v1855
    %1860 = vset.pattern.permute.xlu0 44
    %1861 = vperm.xlu0 %1860, %v504
    %v1862 = vpop.permute.xlu0 %1861
    %1864 = vset.pattern.permute.xlu0 44
    %1865 = vperm.xlu0 %1864, %v505
    %v1866 = vpop.permute.xlu0 %1865
    %1868 = vset.pattern.permute.xlu0 44
    %1869 = vperm.xlu0 %1868, %v506
    %v1870 = vpop.permute.xlu0 %1869
    %1872 = vset.pattern.permute.xlu0 44
    %1873 = vperm.xlu0 %1872, %v507
    %v1874 = vpop.permute.xlu0 %1873
    %v1876 = vmul.f32 %v768, %v1862
    %v1877 = vmul.f32 %v769, %v1866
    %v1878 = vmul.f32 %v770, %v1870
    %v1879 = vmul.f32 %v771, %v1874
    %v1880 = vmul.f32 %v1876, %v1440
    %v1881 = vmul.f32 %v1877, %v1441
    %v1882 = vmul.f32 %v1878, %v1442
    %v1883 = vmul.f32 %v1879, %v1443
    %1884 = vset.pattern.permute.xlu0 52
    %1885 = vperm.xlu0 %1884, %v504
    %v1886 = vpop.permute.xlu0 %1885
    %1888 = vset.pattern.permute.xlu0 52
    %1889 = vperm.xlu0 %1888, %v505
    %v1890 = vpop.permute.xlu0 %1889
    %1892 = vset.pattern.permute.xlu0 52
    %1893 = vperm.xlu0 %1892, %v506
    %v1894 = vpop.permute.xlu0 %1893
    %1896 = vset.pattern.permute.xlu0 52
    %1897 = vperm.xlu0 %1896, %v507
    %v1898 = vpop.permute.xlu0 %1897
    %v1900 = vmul.f32 %v992, %v1886
    %v1901 = vmul.f32 %v993, %v1890
    %v1902 = vmul.f32 %v994, %v1894
    %v1903 = vmul.f32 %v995, %v1898
    %v1904 = vmul.f32 %v1900, %v1492
    %v1905 = vmul.f32 %v1901, %v1493
    %v1906 = vmul.f32 %v1902, %v1494
    %v1907 = vmul.f32 %v1903, %v1495
    %v1908 = vadd.f32 %v1880, %v1904
    %v1909 = vadd.f32 %v1881, %v1905
    %v1910 = vadd.f32 %v1882, %v1906
    %v1911 = vadd.f32 %v1883, %v1907
    %1912 = vset.pattern.permute.xlu0 45
    %1913 = vperm.xlu0 %1912, %v504
    %v1914 = vpop.permute.xlu0 %1913
    %1916 = vset.pattern.permute.xlu0 45
    %1917 = vperm.xlu0 %1916, %v505
    %v1918 = vpop.permute.xlu0 %1917
    %1920 = vset.pattern.permute.xlu0 45
    %1921 = vperm.xlu0 %1920, %v506
    %v1922 = vpop.permute.xlu0 %1921
    %1924 = vset.pattern.permute.xlu0 45
    %1925 = vperm.xlu0 %1924, %v507
    %v1926 = vpop.permute.xlu0 %1925
    %v1928 = vmul.f32 %v824, %v1914
    %v1929 = vmul.f32 %v825, %v1918
    %v1930 = vmul.f32 %v826, %v1922
    %v1931 = vmul.f32 %v827, %v1926
    %v1932 = vmul.f32 %v1928, %v1492
    %v1933 = vmul.f32 %v1929, %v1493
    %v1934 = vmul.f32 %v1930, %v1494
    %v1935 = vmul.f32 %v1931, %v1495
    %1936 = vset.pattern.permute.xlu0 53
    %1937 = vperm.xlu0 %1936, %v504
    %v1938 = vpop.permute.xlu0 %1937
    %1940 = vset.pattern.permute.xlu0 53
    %1941 = vperm.xlu0 %1940, %v505
    %v1942 = vpop.permute.xlu0 %1941
    %1944 = vset.pattern.permute.xlu0 53
    %1945 = vperm.xlu0 %1944, %v506
    %v1946 = vpop.permute.xlu0 %1945
    %1948 = vset.pattern.permute.xlu0 53
    %1949 = vperm.xlu0 %1948, %v507
    %v1950 = vpop.permute.xlu0 %1949
    %v1952 = vmul.f32 %v1048, %v1938
    %v1953 = vmul.f32 %v1049, %v1942
    %v1954 = vmul.f32 %v1050, %v1946
    %v1955 = vmul.f32 %v1051, %v1950
    %v1956 = vmul.f32 %v1952, %v1544
    %v1957 = vmul.f32 %v1953, %v1545
    %v1958 = vmul.f32 %v1954, %v1546
    %v1959 = vmul.f32 %v1955, %v1547
    %v1960 = vadd.f32 %v1932, %v1956
    %v1961 = vadd.f32 %v1933, %v1957
    %v1962 = vadd.f32 %v1934, %v1958
    %v1963 = vadd.f32 %v1935, %v1959
    %v1964 = vxor.u32 %v80, 2147483648
    %v1965 = vxor.u32 %v81, 2147483648
    %v1966 = vxor.u32 %v82, 2147483648
    %v1967 = vxor.u32 %v83, 2147483648
    %v1968 = vmul.f32 %v1964, 1.442695
    %v1969 = vpow.pop %v1968
    %v1970 = vmul.f32 %v1965, 1.442695
    %v1971 = vpow.pop %v1970
    %v1972 = vmul.f32 %v1966, 1.442695
    %v1973 = vpow.pop %v1972
    %v1974 = vmul.f32 %v1967, 1.442695
    %v1975 = vpow.pop %v1974
    %v1976 = vadd.f32 %v1969, 1.0
    %v1977 = vadd.f32 %v1971, 1.0
    %v1978 = vadd.f32 %v1973, 1.0
    %v1979 = vadd.f32 %v1975, 1.0
    %v1980 = vrcp.pop %v1976
    %v1981 = vmul.f32 1.0, %v1980
    %v1982 = vrcp.pop %v1977
    %v1983 = vmul.f32 1.0, %v1982
    %v1984 = vrcp.pop %v1978
    %v1985 = vmul.f32 1.0, %v1984
    %v1986 = vrcp.pop %v1979
    %v1987 = vmul.f32 1.0, %v1986
    %v1988 = vmul.f32 %v80, %v1981
    %v1989 = vmul.f32 %v81, %v1983
    %v1990 = vmul.f32 %v82, %v1985
    %v1991 = vmul.f32 %v83, %v1987
    %v1992 = vld [vmem:[%s3] sm:$0xff]
    %v1993 = vld [vmem:[%s3 + $0x8] sm:$0xff]
    %v1994 = vld [vmem:[%s3 + $0x10] sm:$0xff]
    %v1995 = vld [vmem:[%s3 + $0x18] sm:$0xff]
    %v1996 = vld [vmem:[%s3 + $0x20] sm:$0xff]
    %v1997 = vld [vmem:[%s3 + $0x28] sm:$0xff]
    %vm1998 = vcmask 261120
    %v2000 = vsel %vm1998, %v1994, 0
    %v2003 = vsel %vm1998, %v1997, 0
    %2005 = vmatprep.subr.mxu0 0.0
    %2006 = vmatpush1.msra.mxu0 %v1988
    %2007 = vmatprep.subr.mxu0 0.0
    %2008 = vmatpush1.msra.mxu0 %v1989
    %2009 = vmatprep.subr.mxu0 0.0
    %2010 = vmatpush1.msra.mxu0 %v1990
    %2011 = vmatprep.subr.mxu0 0.0
    %2012 = vmatpush1.msra.mxu0 %v1991
    %2013 = vmatprep.subr.mxu0 0.0
    %2014 = vmatpush1.msra.mxu0 %v1596
    %2015 = vmatprep.subr.mxu0 0.0
    %2016 = vmatpush1.msra.mxu0 %v1597
    %2017 = vmatprep.subr.mxu0 0.0
    %2018 = vmatpush1.msra.mxu0 %v1598
    %2019 = vmatprep.subr.mxu0 0.0
    %2020 = vmatpush1.msra.mxu0 %v1599
    %2021 = vmatprep.subr.mxu0 0.0
    %2022 = vmatpush1.msra.mxu0 %v1648
    %2023 = vmatprep.subr.mxu0 0.0
    %2024 = vmatpush1.msra.mxu0 %v1649
    %2025 = vmatprep.subr.mxu0 0.0
    %2026 = vmatpush1.msra.mxu0 %v1650
    %2027 = vmatprep.subr.mxu0 0.0
    %2028 = vmatpush1.msra.mxu0 %v1651
    %2029 = vmatprep.subr.mxu0 0.0
    %2030 = vmatpush1.msra.mxu0 %v1700
    %2031 = vmatprep.subr.mxu0 0.0
    %2032 = vmatpush1.msra.mxu0 %v1701
    %2033 = vmatprep.subr.mxu0 0.0
    %2034 = vmatpush1.msra.mxu0 %v1702
    %2035 = vmatprep.subr.mxu0 0.0
    %2036 = vmatpush1.msra.mxu0 %v1703
    %2037 = vmatprep.subr.mxu0 0.0
    %2038 = vmatpush1.msra.mxu0 %v1752
    %2039 = vmatprep.subr.mxu0 0.0
    %2040 = vmatpush1.msra.mxu0 %v1753
    %2041 = vmatprep.subr.mxu0 0.0
    %2042 = vmatpush1.msra.mxu0 %v1754
    %2043 = vmatprep.subr.mxu0 0.0
    %2044 = vmatpush1.msra.mxu0 %v1755
    %2045 = vmatprep.subr.mxu0 0.0
    %2046 = vmatpush1.msra.mxu0 %v1804
    %2047 = vmatprep.subr.mxu0 0.0
    %2048 = vmatpush1.msra.mxu0 %v1805
    %2049 = vmatprep.subr.mxu0 0.0
    %2050 = vmatpush1.msra.mxu0 %v1806
    %2051 = vmatprep.subr.mxu0 0.0
    %2052 = vmatpush1.msra.mxu0 %v1807
    %2053 = vmatprep.subr.mxu0 0.0
    %2054 = vmatpush1.msra.mxu0 %v1856
    %2055 = vmatprep.subr.mxu0 0.0
    %2056 = vmatpush1.msra.mxu0 %v1857
    %2057 = vmatprep.subr.mxu0 0.0
    %2058 = vmatpush1.msra.mxu0 %v1858
    %2059 = vmatprep.subr.mxu0 0.0
    %2060 = vmatpush1.msra.mxu0 %v1859
    %2061 = vmatprep.subr.mxu0 0.0
    %2062 = vmatpush1.msra.mxu0 %v1908
    %2063 = vmatprep.subr.mxu0 0.0
    %2064 = vmatpush1.msra.mxu0 %v1909
    %2065 = vmatprep.subr.mxu0 0.0
    %2066 = vmatpush1.msra.mxu0 %v1910
    %2067 = vmatprep.subr.mxu0 0.0
    %2068 = vmatpush1.msra.mxu0 %v1911
    %2069 = vmatprep.mubr.f32.mxu0 %v1993
    %2070 = vmatmul.mubr.f32.gmra.mrb[0].mxu0 %v1992
    %v2071 = vpop.f32.mrb[0].mxu0
    %v2072 = vadd.f32 0.0, %v2071
    %v2073 = vpop.f32.mrb[0].mxu0
    %2074 = vmatprep.mubr.f32.mxu0 %v1996
    %2075 = vmatmul.mubr.f32.gmra.mrb[0].mxu0 %v1995
    %v2076 = vpop.f32.mrb[0].mxu0
    %v2077 = vadd.f32 0.0, %v2076
    %v2078 = vpop.f32.mrb[0].mxu0
    %2079 = vdwg.mxu0
    %2080 = vmatprep.subr.mxu0 0.0
    %2081 = vmatpush1.msra.mxu0 %v1960
    %2082 = vmatprep.subr.mxu0 0.0
    %2083 = vmatpush1.msra.mxu0 %v1961
    %2084 = vmatprep.subr.mxu0 0.0
    %2085 = vmatpush1.msra.mxu0 %v1962
    %2086 = vmatprep.subr.mxu0 0.0
    %2087 = vmatpush1.msra.mxu0 %v1963
    %2088 = vmatprep.subr.mxu0 0.0
    %2089 = vmatpush1.msra.mxu0 0.0
    %2090 = vmatprep.subr.mxu0 0.0
    %2091 = vmatpush1.msra.mxu0 0.0
    %2092 = vmatprep.subr.mxu0 0.0
    %2093 = vmatpush1.msra.mxu0 0.0
    %2094 = vmatprep.subr.mxu0 0.0
    %2095 = vmatpush1.msra.mxu0 0.0
    %2096 = vmatprep.subr.mxu0 0.0
    %2097 = vmatpush1.msra.mxu0 0.0
    %2098 = vmatprep.subr.mxu0 0.0
    %2099 = vmatpush1.msra.mxu0 0.0
    %2100 = vmatprep.subr.mxu0 0.0
    %2101 = vmatpush1.msra.mxu0 0.0
    %2102 = vmatprep.subr.mxu0 0.0
    %2103 = vmatpush1.msra.mxu0 0.0
    %2104 = vmatprep.subr.mxu0 0.0
    %2105 = vmatpush1.msra.mxu0 0.0
    %2106 = vmatprep.subr.mxu0 0.0
    %2107 = vmatpush1.msra.mxu0 0.0
    %2108 = vmatprep.subr.mxu0 0.0
    %2109 = vmatpush1.msra.mxu0 0.0
    %2110 = vmatprep.subr.mxu0 0.0
    %2111 = vmatpush1.msra.mxu0 0.0
    %2112 = vmatprep.subr.mxu0 0.0
    %2113 = vmatpush1.msra.mxu0 0.0
    %2114 = vmatprep.subr.mxu0 0.0
    %2115 = vmatpush1.msra.mxu0 0.0
    %2116 = vmatprep.subr.mxu0 0.0
    %2117 = vmatpush1.msra.mxu0 0.0
    %2118 = vmatprep.subr.mxu0 0.0
    %2119 = vmatpush1.msra.mxu0 0.0
    %2120 = vmatprep.subr.mxu0 0.0
    %2121 = vmatpush1.msra.mxu0 0.0
    %2122 = vmatprep.subr.mxu0 0.0
    %2123 = vmatpush1.msra.mxu0 0.0
    %2124 = vmatprep.subr.mxu0 0.0
    %2125 = vmatpush1.msra.mxu0 0.0
    %2126 = vmatprep.subr.mxu0 0.0
    %2127 = vmatpush1.msra.mxu0 0.0
    %2128 = vmatprep.subr.mxu0 0.0
    %2129 = vmatpush1.msra.mxu0 0.0
    %2130 = vmatprep.subr.mxu0 0.0
    %2131 = vmatpush1.msra.mxu0 0.0
    %2132 = vmatprep.subr.mxu0 0.0
    %2133 = vmatpush1.msra.mxu0 0.0
    %2134 = vmatprep.subr.mxu0 0.0
    %2135 = vmatpush1.msra.mxu0 0.0
    %2136 = vmatprep.subr.mxu0 0.0
    %2137 = vmatpush1.msra.mxu0 0.0
    %2138 = vmatprep.subr.mxu0 0.0
    %2139 = vmatpush1.msra.mxu0 0.0
    %2140 = vmatprep.subr.mxu0 0.0
    %2141 = vmatpush1.msra.mxu0 0.0
    %2142 = vmatprep.subr.mxu0 0.0
    %2143 = vmatpush1.msra.mxu0 0.0
    %2144 = vmatprep.mubr.f32.mxu0 0.0
    %2145 = vmatmul.mubr.f32.gmra.mrb[0].mxu0 %v2000
    %v2146 = vpop.f32.mrb[0].mxu0
    %v2147 = vadd.f32 %v2072, %v2146
    %v2148 = vpop.f32.mrb[0].mxu0
    %2149 = vmatprep.mubr.f32.mxu0 0.0
    %2150 = vmatmul.mubr.f32.gmra.mrb[0].mxu0 %v2003
    %v2151 = vpop.f32.mrb[0].mxu0
    %v2152 = vadd.f32 %v2077, %v2151
    %v2153 = vpop.f32.mrb[0].mxu0
    %2154 = vdwg.mxu0
    %v2155 = vld [vmem:[#allocation7] sm:$0xff]
    %v2156 = vld [vmem:[#allocation7 + $0x8] sm:$0xff]
    %2158 = vset.pattern.permute.xlu0 0
    %2159 = vperm.xlu0 %2158, %v2155
    %v2160 = vpop.permute.xlu0 %2159
    %2163 = vset.pattern.permute.xlu0 0
    %2164 = vperm.xlu0 %2163, %v2156
    %v2165 = vpop.permute.xlu0 %2164
    %vm2167 = vcmp.ge.f32.partialorder %v2147, %v2160
    %vm2168 = vcmp.ge.f32.partialorder %v2152, %v2165
    %2169 = vset.pattern.permute.xlu0 1
    %2170 = vperm.xlu0 %2169, %v2155
    %v2171 = vpop.permute.xlu0 %2170
    %2173 = vset.pattern.permute.xlu0 1
    %2174 = vperm.xlu0 %2173, %v2156
    %v2175 = vpop.permute.xlu0 %2174
    %vm2177 = vcmp.lt.f32.partialorder %v2147, %v2171
    %vm2178 = vcmp.lt.f32.partialorder %v2152, %v2175
    %vm2179 = vmand %vm2167, %vm2177
    %vm2180 = vmand %vm2168, %vm2178
    %v2181 = vsel %vm2179, 1, 0
    %v2182 = vsel %vm2180, 1, 0
    %v2183 = vcvt.s32.f32 %v2181
    %v2184 = vcvt.s32.f32 %v2182
    %vm2185 = vcmp.ge.f32.partialorder %v2147, %v2171
    %vm2186 = vcmp.ge.f32.partialorder %v2152, %v2175
    %2187 = vset.pattern.permute.xlu0 2
    %2188 = vperm.xlu0 %2187, %v2155
    %v2189 = vpop.permute.xlu0 %2188
    %2191 = vset.pattern.permute.xlu0 2
    %2192 = vperm.xlu0 %2191, %v2156
    %v2193 = vpop.permute.xlu0 %2192
    %vm2195 = vcmp.lt.f32.partialorder %v2147, %v2189
    %vm2196 = vcmp.lt.f32.partialorder %v2152, %v2193
    %vm2197 = vmand %vm2185, %vm2195
    %vm2198 = vmand %vm2186, %vm2196
    %v2199 = vsel %vm2197, 1, 0
    %v2200 = vsel %vm2198, 1, 0
    %v2201 = vcvt.s32.f32 %v2199
    %v2202 = vcvt.s32.f32 %v2200
    %vm2203 = vcmp.ge.f32.partialorder %v2147, %v2189
    %vm2204 = vcmp.ge.f32.partialorder %v2152, %v2193
    %2205 = vset.pattern.permute.xlu0 3
    %2206 = vperm.xlu0 %2205, %v2155
    %v2207 = vpop.permute.xlu0 %2206
    %2209 = vset.pattern.permute.xlu0 3
    %2210 = vperm.xlu0 %2209, %v2156
    %v2211 = vpop.permute.xlu0 %2210
    %vm2213 = vcmp.lt.f32.partialorder %v2147, %v2207
    %vm2214 = vcmp.lt.f32.partialorder %v2152, %v2211
    %vm2215 = vmand %vm2203, %vm2213
    %vm2216 = vmand %vm2204, %vm2214
    %v2217 = vsel %vm2215, 1, 0
    %v2218 = vsel %vm2216, 1, 0
    %v2219 = vcvt.s32.f32 %v2217
    %v2220 = vcvt.s32.f32 %v2218
    %vm2221 = vcmp.ge.f32.partialorder %v2147, %v2207
    %vm2222 = vcmp.ge.f32.partialorder %v2152, %v2211
    %2223 = vset.pattern.permute.xlu0 4
    %2224 = vperm.xlu0 %2223, %v2155
    %v2225 = vpop.permute.xlu0 %2224
    %2227 = vset.pattern.permute.xlu0 4
    %2228 = vperm.xlu0 %2227, %v2156
    %v2229 = vpop.permute.xlu0 %2228
    %vm2231 = vcmp.lt.f32.partialorder %v2147, %v2225
    %vm2232 = vcmp.lt.f32.partialorder %v2152, %v2229
    %vm2233 = vmand %vm2221, %vm2231
    %vm2234 = vmand %vm2222, %vm2232
    %v2235 = vsel %vm2233, 1, 0
    %v2236 = vsel %vm2234, 1, 0
    %v2237 = vcvt.s32.f32 %v2235
    %v2238 = vcvt.s32.f32 %v2236
    %vm2239 = vcmp.ge.f32.partialorder %v2147, %v2225
    %vm2240 = vcmp.ge.f32.partialorder %v2152, %v2229
    %2241 = vset.pattern.permute.xlu0 5
    %2242 = vperm.xlu0 %2241, %v2155
    %v2243 = vpop.permute.xlu0 %2242
    %2245 = vset.pattern.permute.xlu0 5
    %2246 = vperm.xlu0 %2245, %v2156
    %v2247 = vpop.permute.xlu0 %2246
    %vm2249 = vcmp.lt.f32.partialorder %v2147, %v2243
    %vm2250 = vcmp.lt.f32.partialorder %v2152, %v2247
    %vm2251 = vmand %vm2239, %vm2249
    %vm2252 = vmand %vm2240, %vm2250
    %v2253 = vsel %vm2251, 1, 0
    %v2254 = vsel %vm2252, 1, 0
    %v2255 = vcvt.s32.f32 %v2253
    %v2256 = vcvt.s32.f32 %v2254
    %vm2257 = vcmp.ge.f32.partialorder %v2147, %v2243
    %vm2258 = vcmp.ge.f32.partialorder %v2152, %v2247
    %2259 = vset.pattern.permute.xlu0 6
    %2260 = vperm.xlu0 %2259, %v2155
    %v2261 = vpop.permute.xlu0 %2260
    %2263 = vset.pattern.permute.xlu0 6
    %2264 = vperm.xlu0 %2263, %v2156
    %v2265 = vpop.permute.xlu0 %2264
    %vm2267 = vcmp.lt.f32.partialorder %v2147, %v2261
    %vm2268 = vcmp.lt.f32.partialorder %v2152, %v2265
    %vm2269 = vmand %vm2257, %vm2267
    %vm2270 = vmand %vm2258, %vm2268
    %v2271 = vsel %vm2269, 1, 0
    %v2272 = vsel %vm2270, 1, 0
    %v2273 = vcvt.s32.f32 %v2271
    %v2274 = vcvt.s32.f32 %v2272
    %vm2275 = vcmp.ge.f32.partialorder %v2147, %v2261
    %vm2276 = vcmp.ge.f32.partialorder %v2152, %v2265
    %2277 = vset.pattern.permute.xlu0 7
    %2278 = vperm.xlu0 %2277, %v2155
    %v2279 = vpop.permute.xlu0 %2278
    %2281 = vset.pattern.permute.xlu0 7
    %2282 = vperm.xlu0 %2281, %v2156
    %v2283 = vpop.permute.xlu0 %2282
    %vm2285 = vcmp.lt.f32.partialorder %v2147, %v2279
    %vm2286 = vcmp.lt.f32.partialorder %v2152, %v2283
    %vm2287 = vmand %vm2275, %vm2285
    %vm2288 = vmand %vm2276, %vm2286
    %v2289 = vsel %vm2287, 1, 0
    %v2290 = vsel %vm2288, 1, 0
    %v2291 = vcvt.s32.f32 %v2289
    %v2292 = vcvt.s32.f32 %v2290
    %vm2293 = vcmp.ge.f32.partialorder %v2147, %v2279
    %vm2294 = vcmp.ge.f32.partialorder %v2152, %v2283
    %2295 = vset.pattern.permute.xlu0 8
    %2296 = vperm.xlu0 %2295, %v2155
    %v2297 = vpop.permute.xlu0 %2296
    %2299 = vset.pattern.permute.xlu0 8
    %2300 = vperm.xlu0 %2299, %v2156
    %v2301 = vpop.permute.xlu0 %2300
    %vm2303 = vcmp.lt.f32.partialorder %v2147, %v2297
    %vm2304 = vcmp.lt.f32.partialorder %v2152, %v2301
    %vm2305 = vmand %vm2293, %vm2303
    %vm2306 = vmand %vm2294, %vm2304
    %v2307 = vsel %vm2305, 1, 0
    %v2308 = vsel %vm2306, 1, 0
    %v2309 = vcvt.s32.f32 %v2307
    %v2310 = vcvt.s32.f32 %v2308
    %vm2311 = vcmp.ge.f32.partialorder %v2147, %v2297
    %vm2312 = vcmp.ge.f32.partialorder %v2152, %v2301
    %2313 = vset.pattern.permute.xlu0 9
    %2314 = vperm.xlu0 %2313, %v2155
    %v2315 = vpop.permute.xlu0 %2314
    %2317 = vset.pattern.permute.xlu0 9
    %2318 = vperm.xlu0 %2317, %v2156
    %v2319 = vpop.permute.xlu0 %2318
    %vm2321 = vcmp.lt.f32.partialorder %v2147, %v2315
    %vm2322 = vcmp.lt.f32.partialorder %v2152, %v2319
    %vm2323 = vmand %vm2311, %vm2321
    %vm2324 = vmand %vm2312, %vm2322
    %v2325 = vsel %vm2323, 1, 0
    %v2326 = vsel %vm2324, 1, 0
    %v2327 = vcvt.s32.f32 %v2325
    %v2328 = vcvt.s32.f32 %v2326
    %vm2329 = vcmp.ge.f32.partialorder %v2147, %v2315
    %vm2330 = vcmp.ge.f32.partialorder %v2152, %v2319
    %2331 = vset.pattern.permute.xlu0 10
    %2332 = vperm.xlu0 %2331, %v2155
    %v2333 = vpop.permute.xlu0 %2332
    %2335 = vset.pattern.permute.xlu0 10
    %2336 = vperm.xlu0 %2335, %v2156
    %v2337 = vpop.permute.xlu0 %2336
    %vm2339 = vcmp.lt.f32.partialorder %v2147, %v2333
    %vm2340 = vcmp.lt.f32.partialorder %v2152, %v2337
    %vm2341 = vmand %vm2329, %vm2339
    %vm2342 = vmand %vm2330, %vm2340
    %v2343 = vsel %vm2341, 1, 0
    %v2344 = vsel %vm2342, 1, 0
    %v2345 = vcvt.s32.f32 %v2343
    %v2346 = vcvt.s32.f32 %v2344
    %vm2347 = vcmp.ge.f32.partialorder %v2147, %v2333
    %vm2348 = vcmp.ge.f32.partialorder %v2152, %v2337
    %2349 = vset.pattern.permute.xlu0 11
    %2350 = vperm.xlu0 %2349, %v2155
    %v2351 = vpop.permute.xlu0 %2350
    %2353 = vset.pattern.permute.xlu0 11
    %2354 = vperm.xlu0 %2353, %v2156
    %v2355 = vpop.permute.xlu0 %2354
    %vm2357 = vcmp.lt.f32.partialorder %v2147, %v2351
    %vm2358 = vcmp.lt.f32.partialorder %v2152, %v2355
    %vm2359 = vmand %vm2347, %vm2357
    %vm2360 = vmand %vm2348, %vm2358
    %v2361 = vsel %vm2359, 1, 0
    %v2362 = vsel %vm2360, 1, 0
    %v2363 = vcvt.s32.f32 %v2361
    %v2364 = vcvt.s32.f32 %v2362
    %v2365 = vld [vmem:[%s5] sm:$0xff]
    %v2366 = vld [vmem:[%s5 + $0x8] sm:$0xff]
    %v2367 = vsub.f32 %v2147, %v2160
    %v2368 = vsub.f32 %v2152, %v2165
    %2370 = vset.pattern.permute.xlu0 0
    %2371 = vperm.xlu0 %2370, %v2365
    %v2372 = vpop.permute.xlu0 %2371
    %2375 = vset.pattern.permute.xlu0 0
    %2376 = vperm.xlu0 %2375, %v2366
    %v2377 = vpop.permute.xlu0 %2376
    %v2379 = vmul.f32 %v2367, %v2372
    %v2380 = vmul.f32 %v2368, %v2377
    %v2381 = vmul.f32 %v2379, %v2183
    %v2382 = vmul.f32 %v2380, %v2184
    %v2383 = vsub.f32 %v2147, %v2189
    %v2384 = vsub.f32 %v2152, %v2193
    %2385 = vset.pattern.permute.xlu0 10
    %2386 = vperm.xlu0 %2385, %v2365
    %v2387 = vpop.permute.xlu0 %2386
    %2389 = vset.pattern.permute.xlu0 10
    %2390 = vperm.xlu0 %2389, %v2366
    %v2391 = vpop.permute.xlu0 %2390
    %v2393 = vmul.f32 %v2383, %v2387
    %v2394 = vmul.f32 %v2384, %v2391
    %v2395 = vmul.f32 %v2393, %v2201
    %v2396 = vmul.f32 %v2394, %v2202
    %v2397 = vadd.f32 %v2381, %v2395
    %v2398 = vadd.f32 %v2382, %v2396
    %v2399 = vsub.f32 %v2147, %v2171
    %v2400 = vsub.f32 %v2152, %v2175
    %2401 = vset.pattern.permute.xlu0 1
    %2402 = vperm.xlu0 %2401, %v2365
    %v2403 = vpop.permute.xlu0 %2402
    %2405 = vset.pattern.permute.xlu0 1
    %2406 = vperm.xlu0 %2405, %v2366
    %v2407 = vpop.permute.xlu0 %2406
    %v2409 = vmul.f32 %v2399, %v2403
    %v2410 = vmul.f32 %v2400, %v2407
    %v2411 = vmul.f32 %v2409, %v2201
    %v2412 = vmul.f32 %v2410, %v2202
    %v2413 = vsub.f32 %v2147, %v2207
    %v2414 = vsub.f32 %v2152, %v2211
    %2415 = vset.pattern.permute.xlu0 11
    %2416 = vperm.xlu0 %2415, %v2365
    %v2417 = vpop.permute.xlu0 %2416
    %2419 = vset.pattern.permute.xlu0 11
    %2420 = vperm.xlu0 %2419, %v2366
    %v2421 = vpop.permute.xlu0 %2420
    %v2423 = vmul.f32 %v2413, %v2417
    %v2424 = vmul.f32 %v2414, %v2421
    %v2425 = vmul.f32 %v2423, %v2219
    %v2426 = vmul.f32 %v2424, %v2220
    %v2427 = vadd.f32 %v2411, %v2425
    %v2428 = vadd.f32 %v2412, %v2426
    %2429 = vset.pattern.permute.xlu0 2
    %2430 = vperm.xlu0 %2429, %v2365
    %v2431 = vpop.permute.xlu0 %2430
    %2433 = vset.pattern.permute.xlu0 2
    %2434 = vperm.xlu0 %2433, %v2366
    %v2435 = vpop.permute.xlu0 %2434
    %v2437 = vmul.f32 %v2383, %v2431
    %v2438 = vmul.f32 %v2384, %v2435
    %v2439 = vmul.f32 %v2437, %v2219
    %v2440 = vmul.f32 %v2438, %v2220
    %v2441 = vsub.f32 %v2147, %v2225
    %v2442 = vsub.f32 %v2152, %v2229
    %2443 = vset.pattern.permute.xlu0 12
    %2444 = vperm.xlu0 %2443, %v2365
    %v2445 = vpop.permute.xlu0 %2444
    %2447 = vset.pattern.permute.xlu0 12
    %2448 = vperm.xlu0 %2447, %v2366
    %v2449 = vpop.permute.xlu0 %2448
    %v2451 = vmul.f32 %v2441, %v2445
    %v2452 = vmul.f32 %v2442, %v2449
    %v2453 = vmul.f32 %v2451, %v2237
    %v2454 = vmul.f32 %v2452, %v2238
    %v2455 = vadd.f32 %v2439, %v2453
    %v2456 = vadd.f32 %v2440, %v2454
    %2457 = vset.pattern.permute.xlu0 3
    %2458 = vperm.xlu0 %2457, %v2365
    %v2459 = vpop.permute.xlu0 %2458
    %2461 = vset.pattern.permute.xlu0 3
    %2462 = vperm.xlu0 %2461, %v2366
    %v2463 = vpop.permute.xlu0 %2462
    %v2465 = vmul.f32 %v2413, %v2459
    %v2466 = vmul.f32 %v2414, %v2463
    %v2467 = vmul.f32 %v2465, %v2237
    %v2468 = vmul.f32 %v2466, %v2238
    %v2469 = vsub.f32 %v2147, %v2243
    %v2470 = vsub.f32 %v2152, %v2247
    %2471 = vset.pattern.permute.xlu0 13
    %2472 = vperm.xlu0 %2471, %v2365
    %v2473 = vpop.permute.xlu0 %2472
    %2475 = vset.pattern.permute.xlu0 13
    %2476 = vperm.xlu0 %2475, %v2366
    %v2477 = vpop.permute.xlu0 %2476
    %v2479 = vmul.f32 %v2469, %v2473
    %v2480 = vmul.f32 %v2470, %v2477
    %v2481 = vmul.f32 %v2479, %v2255
    %v2482 = vmul.f32 %v2480, %v2256
    %v2483 = vadd.f32 %v2467, %v2481
    %v2484 = vadd.f32 %v2468, %v2482
    %2485 = vset.pattern.permute.xlu0 4
    %2486 = vperm.xlu0 %2485, %v2365
    %v2487 = vpop.permute.xlu0 %2486
    %2489 = vset.pattern.permute.xlu0 4
    %2490 = vperm.xlu0 %2489, %v2366
    %v2491 = vpop.permute.xlu0 %2490
    %v2493 = vmul.f32 %v2441, %v2487
    %v2494 = vmul.f32 %v2442, %v2491
    %v2495 = vmul.f32 %v2493, %v2255
    %v2496 = vmul.f32 %v2494, %v2256
    %v2497 = vsub.f32 %v2147, %v2261
    %v2498 = vsub.f32 %v2152, %v2265
    %2499 = vset.pattern.permute.xlu0 14
    %2500 = vperm.xlu0 %2499, %v2365
    %v2501 = vpop.permute.xlu0 %2500
    %2503 = vset.pattern.permute.xlu0 14
    %2504 = vperm.xlu0 %2503, %v2366
    %v2505 = vpop.permute.xlu0 %2504
    %v2507 = vmul.f32 %v2497, %v2501
    %v2508 = vmul.f32 %v2498, %v2505
    %v2509 = vmul.f32 %v2507, %v2273
    %v2510 = vmul.f32 %v2508, %v2274
    %v2511 = vadd.f32 %v2495, %v2509
    %v2512 = vadd.f32 %v2496, %v2510
    %2513 = vset.pattern.permute.xlu0 5
    %2514 = vperm.xlu0 %2513, %v2365
    %v2515 = vpop.permute.xlu0 %2514
    %2517 = vset.pattern.permute.xlu0 5
    %2518 = vperm.xlu0 %2517, %v2366
    %v2519 = vpop.permute.xlu0 %2518
    %v2521 = vmul.f32 %v2469, %v2515
    %v2522 = vmul.f32 %v2470, %v2519
    %v2523 = vmul.f32 %v2521, %v2273
    %v2524 = vmul.f32 %v2522, %v2274
    %v2525 = vsub.f32 %v2147, %v2279
    %v2526 = vsub.f32 %v2152, %v2283
    %2527 = vset.pattern.permute.xlu0 15
    %2528 = vperm.xlu0 %2527, %v2365
    %v2529 = vpop.permute.xlu0 %2528
    %2531 = vset.pattern.permute.xlu0 15
    %2532 = vperm.xlu0 %2531, %v2366
    %v2533 = vpop.permute.xlu0 %2532
    %v2535 = vmul.f32 %v2525, %v2529
    %v2536 = vmul.f32 %v2526, %v2533
    %v2537 = vmul.f32 %v2535, %v2291
    %v2538 = vmul.f32 %v2536, %v2292
    %v2539 = vadd.f32 %v2523, %v2537
    %v2540 = vadd.f32 %v2524, %v2538
    %2541 = vset.pattern.permute.xlu0 6
    %2542 = vperm.xlu0 %2541, %v2365
    %v2543 = vpop.permute.xlu0 %2542
    %2545 = vset.pattern.permute.xlu0 6
    %2546 = vperm.xlu0 %2545, %v2366
    %v2547 = vpop.permute.xlu0 %2546
    %v2549 = vmul.f32 %v2497, %v2543
    %v2550 = vmul.f32 %v2498, %v2547
    %v2551 = vmul.f32 %v2549, %v2291
    %v2552 = vmul.f32 %v2550, %v2292
    %v2553 = vsub.f32 %v2147, %v2297
    %v2554 = vsub.f32 %v2152, %v2301
    %2555 = vset.pattern.permute.xlu0 16
    %2556 = vperm.xlu0 %2555, %v2365
    %v2557 = vpop.permute.xlu0 %2556
    %2559 = vset.pattern.permute.xlu0 16
    %2560 = vperm.xlu0 %2559, %v2366
    %v2561 = vpop.permute.xlu0 %2560
    %v2563 = vmul.f32 %v2553, %v2557
    %v2564 = vmul.f32 %v2554, %v2561
    %v2565 = vmul.f32 %v2563, %v2309
    %v2566 = vmul.f32 %v2564, %v2310
    %v2567 = vadd.f32 %v2551, %v2565
    %v2568 = vadd.f32 %v2552, %v2566
    %2569 = vset.pattern.permute.xlu0 7
    %2570 = vperm.xlu0 %2569, %v2365
    %v2571 = vpop.permute.xlu0 %2570
    %2573 = vset.pattern.permute.xlu0 7
    %2574 = vperm.xlu0 %2573, %v2366
    %v2575 = vpop.permute.xlu0 %2574
    %v2577 = vmul.f32 %v2525, %v2571
    %v2578 = vmul.f32 %v2526, %v2575
    %v2579 = vmul.f32 %v2577, %v2309
    %v2580 = vmul.f32 %v2578, %v2310
    %v2581 = vsub.f32 %v2147, %v2315
    %v2582 = vsub.f32 %v2152, %v2319
    %2583 = vset.pattern.permute.xlu0 17
    %2584 = vperm.xlu0 %2583, %v2365
    %v2585 = vpop.permute.xlu0 %2584
    %2587 = vset.pattern.permute.xlu0 17
    %2588 = vperm.xlu0 %2587, %v2366
    %v2589 = vpop.permute.xlu0 %2588
    %v2591 = vmul.f32 %v2581, %v2585
    %v2592 = vmul.f32 %v2582, %v2589
    %v2593 = vmul.f32 %v2591, %v2327
    %v2594 = vmul.f32 %v2592, %v2328
    %v2595 = vadd.f32 %v2579, %v2593
    %v2596 = vadd.f32 %v2580, %v2594
    %2597 = vset.pattern.permute.xlu0 8
    %2598 = vperm.xlu0 %2597, %v2365
    %v2599 = vpop.permute.xlu0 %2598
    %2601 = vset.pattern.permute.xlu0 8
    %2602 = vperm.xlu0 %2601, %v2366
    %v2603 = vpop.permute.xlu0 %2602
    %v2605 = vmul.f32 %v2553, %v2599
    %v2606 = vmul.f32 %v2554, %v2603
    %v2607 = vmul.f32 %v2605, %v2327
    %v2608 = vmul.f32 %v2606, %v2328
    %v2609 = vsub.f32 %v2147, %v2333
    %v2610 = vsub.f32 %v2152, %v2337
    %2611 = vset.pattern.permute.xlu0 18
    %2612 = vperm.xlu0 %2611, %v2365
    %v2613 = vpop.permute.xlu0 %2612
    %2615 = vset.pattern.permute.xlu0 18
    %2616 = vperm.xlu0 %2615, %v2366
    %v2617 = vpop.permute.xlu0 %2616
    %v2619 = vmul.f32 %v2609, %v2613
    %v2620 = vmul.f32 %v2610, %v2617
    %v2621 = vmul.f32 %v2619, %v2345
    %v2622 = vmul.f32 %v2620, %v2346
    %v2623 = vadd.f32 %v2607, %v2621
    %v2624 = vadd.f32 %v2608, %v2622
    %2625 = vset.pattern.permute.xlu0 9
    %2626 = vperm.xlu0 %2625, %v2365
    %v2627 = vpop.permute.xlu0 %2626
    %2629 = vset.pattern.permute.xlu0 9
    %2630 = vperm.xlu0 %2629, %v2366
    %v2631 = vpop.permute.xlu0 %2630
    %v2633 = vmul.f32 %v2581, %v2627
    %v2634 = vmul.f32 %v2582, %v2631
    %v2635 = vmul.f32 %v2633, %v2345
    %v2636 = vmul.f32 %v2634, %v2346
    %v2637 = vsub.f32 %v2147, %v2351
    %v2638 = vsub.f32 %v2152, %v2355
    %2639 = vset.pattern.permute.xlu0 19
    %2640 = vperm.xlu0 %2639, %v2365
    %v2641 = vpop.permute.xlu0 %2640
    %2643 = vset.pattern.permute.xlu0 19
    %2644 = vperm.xlu0 %2643, %v2366
    %v2645 = vpop.permute.xlu0 %2644
    %v2647 = vmul.f32 %v2637, %v2641
    %v2648 = vmul.f32 %v2638, %v2645
    %v2649 = vmul.f32 %v2647, %v2363
    %v2650 = vmul.f32 %v2648, %v2364
    %v2651 = vadd.f32 %v2635, %v2649
    %v2652 = vadd.f32 %v2636, %v2650
    %2653 = vset.pattern.permute.xlu0 20
    %2654 = vperm.xlu0 %2653, %v2365
    %v2655 = vpop.permute.xlu0 %2654
    %2657 = vset.pattern.permute.xlu0 20
    %2658 = vperm.xlu0 %2657, %v2366
    %v2659 = vpop.permute.xlu0 %2658
    %v2661 = vmul.f32 %v2367, %v2655
    %v2662 = vmul.f32 %v2368, %v2659
    %v2663 = vmul.f32 %v2661, %v2397
    %v2664 = vmul.f32 %v2662, %v2398
    %2665 = vset.pattern.permute.xlu0 29
    %2666 = vperm.xlu0 %2665, %v2365
    %v2667 = vpop.permute.xlu0 %2666
    %2669 = vset.pattern.permute.xlu0 29
    %2670 = vperm.xlu0 %2669, %v2366
    %v2671 = vpop.permute.xlu0 %2670
    %v2673 = vmul.f32 %v2413, %v2667
    %v2674 = vmul.f32 %v2414, %v2671
    %v2675 = vmul.f32 %v2673, %v2427
    %v2676 = vmul.f32 %v2674, %v2428
    %v2677 = vadd.f32 %v2663, %v2675
    %v2678 = vadd.f32 %v2664, %v2676
    %2679 = vset.pattern.permute.xlu0 21
    %2680 = vperm.xlu0 %2679, %v2365
    %v2681 = vpop.permute.xlu0 %2680
    %2683 = vset.pattern.permute.xlu0 21
    %2684 = vperm.xlu0 %2683, %v2366
    %v2685 = vpop.permute.xlu0 %2684
    %v2687 = vmul.f32 %v2399, %v2681
    %v2688 = vmul.f32 %v2400, %v2685
    %v2689 = vmul.f32 %v2687, %v2427
    %v2690 = vmul.f32 %v2688, %v2428
    %2691 = vset.pattern.permute.xlu0 30
    %2692 = vperm.xlu0 %2691, %v2365
    %v2693 = vpop.permute.xlu0 %2692
    %2695 = vset.pattern.permute.xlu0 30
    %2696 = vperm.xlu0 %2695, %v2366
    %v2697 = vpop.permute.xlu0 %2696
    %v2699 = vmul.f32 %v2441, %v2693
    %v2700 = vmul.f32 %v2442, %v2697
    %v2701 = vmul.f32 %v2699, %v2455
    %v2702 = vmul.f32 %v2700, %v2456
    %v2703 = vadd.f32 %v2689, %v2701
    %v2704 = vadd.f32 %v2690, %v2702
    %2705 = vset.pattern.permute.xlu0 22
    %2706 = vperm.xlu0 %2705, %v2365
    %v2707 = vpop.permute.xlu0 %2706
    %2709 = vset.pattern.permute.xlu0 22
    %2710 = vperm.xlu0 %2709, %v2366
    %v2711 = vpop.permute.xlu0 %2710
    %v2713 = vmul.f32 %v2383, %v2707
    %v2714 = vmul.f32 %v2384, %v2711
    %v2715 = vmul.f32 %v2713, %v2455
    %v2716 = vmul.f32 %v2714, %v2456
    %2717 = vset.pattern.permute.xlu0 31
    %2718 = vperm.xlu0 %2717, %v2365
    %v2719 = vpop.permute.xlu0 %2718
    %2721 = vset.pattern.permute.xlu0 31
    %2722 = vperm.xlu0 %2721, %v2366
    %v2723 = vpop.permute.xlu0 %2722
    %v2725 = vmul.f32 %v2469, %v2719
    %v2726 = vmul.f32 %v2470, %v2723
    %v2727 = vmul.f32 %v2725, %v2483
    %v2728 = vmul.f32 %v2726, %v2484
    %v2729 = vadd.f32 %v2715, %v2727
    %v2730 = vadd.f32 %v2716, %v2728
    %2731 = vset.pattern.permute.xlu0 23
    %2732 = vperm.xlu0 %2731, %v2365
    %v2733 = vpop.permute.xlu0 %2732
    %2735 = vset.pattern.permute.xlu0 23
    %2736 = vperm.xlu0 %2735, %v2366
    %v2737 = vpop.permute.xlu0 %2736
    %v2739 = vmul.f32 %v2413, %v2733
    %v2740 = vmul.f32 %v2414, %v2737
    %v2741 = vmul.f32 %v2739, %v2483
    %v2742 = vmul.f32 %v2740, %v2484
    %2743 = vset.pattern.permute.xlu0 32
    %2744 = vperm.xlu0 %2743, %v2365
    %v2745 = vpop.permute.xlu0 %2744
    %2747 = vset.pattern.permute.xlu0 32
    %2748 = vperm.xlu0 %2747, %v2366
    %v2749 = vpop.permute.xlu0 %2748
    %v2751 = vmul.f32 %v2497, %v2745
    %v2752 = vmul.f32 %v2498, %v2749
    %v2753 = vmul.f32 %v2751, %v2511
    %v2754 = vmul.f32 %v2752, %v2512
    %v2755 = vadd.f32 %v2741, %v2753
    %v2756 = vadd.f32 %v2742, %v2754
    %2757 = vset.pattern.permute.xlu0 24
    %2758 = vperm.xlu0 %2757, %v2365
    %v2759 = vpop.permute.xlu0 %2758
    %2761 = vset.pattern.permute.xlu0 24
    %2762 = vperm.xlu0 %2761, %v2366
    %v2763 = vpop.permute.xlu0 %2762
    %v2765 = vmul.f32 %v2441, %v2759
    %v2766 = vmul.f32 %v2442, %v2763
    %v2767 = vmul.f32 %v2765, %v2511
    %v2768 = vmul.f32 %v2766, %v2512
    %2769 = vset.pattern.permute.xlu0 33
    %2770 = vperm.xlu0 %2769, %v2365
    %v2771 = vpop.permute.xlu0 %2770
    %2773 = vset.pattern.permute.xlu0 33
    %2774 = vperm.xlu0 %2773, %v2366
    %v2775 = vpop.permute.xlu0 %2774
    %v2777 = vmul.f32 %v2525, %v2771
    %v2778 = vmul.f32 %v2526, %v2775
    %v2779 = vmul.f32 %v2777, %v2539
    %v2780 = vmul.f32 %v2778, %v2540
    %v2781 = vadd.f32 %v2767, %v2779
    %v2782 = vadd.f32 %v2768, %v2780
    %2783 = vset.pattern.permute.xlu0 25
    %2784 = vperm.xlu0 %2783, %v2365
    %v2785 = vpop.permute.xlu0 %2784
    %2787 = vset.pattern.permute.xlu0 25
    %2788 = vperm.xlu0 %2787, %v2366
    %v2789 = vpop.permute.xlu0 %2788
    %v2791 = vmul.f32 %v2469, %v2785
    %v2792 = vmul.f32 %v2470, %v2789
    %v2793 = vmul.f32 %v2791, %v2539
    %v2794 = vmul.f32 %v2792, %v2540
    %2795 = vset.pattern.permute.xlu0 34
    %2796 = vperm.xlu0 %2795, %v2365
    %v2797 = vpop.permute.xlu0 %2796
    %2799 = vset.pattern.permute.xlu0 34
    %2800 = vperm.xlu0 %2799, %v2366
    %v2801 = vpop.permute.xlu0 %2800
    %v2803 = vmul.f32 %v2553, %v2797
    %v2804 = vmul.f32 %v2554, %v2801
    %v2805 = vmul.f32 %v2803, %v2567
    %v2806 = vmul.f32 %v2804, %v2568
    %v2807 = vadd.f32 %v2793, %v2805
    %v2808 = vadd.f32 %v2794, %v2806
    %2809 = vset.pattern.permute.xlu0 26
    %2810 = vperm.xlu0 %2809, %v2365
    %v2811 = vpop.permute.xlu0 %2810
    %2813 = vset.pattern.permute.xlu0 26
    %2814 = vperm.xlu0 %2813, %v2366
    %v2815 = vpop.permute.xlu0 %2814
    %v2817 = vmul.f32 %v2497, %v2811
    %v2818 = vmul.f32 %v2498, %v2815
    %v2819 = vmul.f32 %v2817, %v2567
    %v2820 = vmul.f32 %v2818, %v2568
    %2821 = vset.pattern.permute.xlu0 35
    %2822 = vperm.xlu0 %2821, %v2365
    %v2823 = vpop.permute.xlu0 %2822
    %2825 = vset.pattern.permute.xlu0 35
    %2826 = vperm.xlu0 %2825, %v2366
    %v2827 = vpop.permute.xlu0 %2826
    %v2829 = vmul.f32 %v2581, %v2823
    %v2830 = vmul.f32 %v2582, %v2827
    %v2831 = vmul.f32 %v2829, %v2595
    %v2832 = vmul.f32 %v2830, %v2596
    %v2833 = vadd.f32 %v2819, %v2831
    %v2834 = vadd.f32 %v2820, %v2832
    %2835 = vset.pattern.permute.xlu0 27
    %2836 = vperm.xlu0 %2835, %v2365
    %v2837 = vpop.permute.xlu0 %2836
    %2839 = vset.pattern.permute.xlu0 27
    %2840 = vperm.xlu0 %2839, %v2366
    %v2841 = vpop.permute.xlu0 %2840
    %v2843 = vmul.f32 %v2525, %v2837
    %v2844 = vmul.f32 %v2526, %v2841
    %v2845 = vmul.f32 %v2843, %v2595
    %v2846 = vmul.f32 %v2844, %v2596
    %2847 = vset.pattern.permute.xlu0 36
    %2848 = vperm.xlu0 %2847, %v2365
    %v2849 = vpop.permute.xlu0 %2848
    %2851 = vset.pattern.permute.xlu0 36
    %2852 = vperm.xlu0 %2851, %v2366
    %v2853 = vpop.permute.xlu0 %2852
    %v2855 = vmul.f32 %v2609, %v2849
    %v2856 = vmul.f32 %v2610, %v2853
    %v2857 = vmul.f32 %v2855, %v2623
    %v2858 = vmul.f32 %v2856, %v2624
    %v2859 = vadd.f32 %v2845, %v2857
    %v2860 = vadd.f32 %v2846, %v2858
    %2861 = vset.pattern.permute.xlu0 28
    %2862 = vperm.xlu0 %2861, %v2365
    %v2863 = vpop.permute.xlu0 %2862
    %2865 = vset.pattern.permute.xlu0 28
    %2866 = vperm.xlu0 %2865, %v2366
    %v2867 = vpop.permute.xlu0 %2866
    %v2869 = vmul.f32 %v2553, %v2863
    %v2870 = vmul.f32 %v2554, %v2867
    %v2871 = vmul.f32 %v2869, %v2623
    %v2872 = vmul.f32 %v2870, %v2624
    %2873 = vset.pattern.permute.xlu0 37
    %2874 = vperm.xlu0 %2873, %v2365
    %v2875 = vpop.permute.xlu0 %2874
    %2877 = vset.pattern.permute.xlu0 37
    %2878 = vperm.xlu0 %2877, %v2366
    %v2879 = vpop.permute.xlu0 %2878
    %v2881 = vmul.f32 %v2637, %v2875
    %v2882 = vmul.f32 %v2638, %v2879
    %v2883 = vmul.f32 %v2881, %v2651
    %v2884 = vmul.f32 %v2882, %v2652
    %v2885 = vadd.f32 %v2871, %v2883
    %v2886 = vadd.f32 %v2872, %v2884
    %2887 = vset.pattern.permute.xlu0 38
    %2888 = vperm.xlu0 %2887, %v2365
    %v2889 = vpop.permute.xlu0 %2888
    %2891 = vset.pattern.permute.xlu0 38
    %2892 = vperm.xlu0 %2891, %v2366
    %v2893 = vpop.permute.xlu0 %2892
    %v2895 = vmul.f32 %v2367, %v2889
    %v2896 = vmul.f32 %v2368, %v2893
    %v2897 = vmul.f32 %v2895, %v2677
    %v2898 = vmul.f32 %v2896, %v2678
    %2899 = vset.pattern.permute.xlu0 46
    %2900 = vperm.xlu0 %2899, %v2365
    %v2901 = vpop.permute.xlu0 %2900
    %2903 = vset.pattern.permute.xlu0 46
    %2904 = vperm.xlu0 %2903, %v2366
    %v2905 = vpop.permute.xlu0 %2904
    %v2907 = vmul.f32 %v2441, %v2901
    %v2908 = vmul.f32 %v2442, %v2905
    %v2909 = vmul.f32 %v2907, %v2703
    %v2910 = vmul.f32 %v2908, %v2704
    %v2911 = vadd.f32 %v2897, %v2909
    %v2912 = vadd.f32 %v2898, %v2910
    %2913 = vset.pattern.permute.xlu0 39
    %2914 = vperm.xlu0 %2913, %v2365
    %v2915 = vpop.permute.xlu0 %2914
    %2917 = vset.pattern.permute.xlu0 39
    %2918 = vperm.xlu0 %2917, %v2366
    %v2919 = vpop.permute.xlu0 %2918
    %v2921 = vmul.f32 %v2399, %v2915
    %v2922 = vmul.f32 %v2400, %v2919
    %v2923 = vmul.f32 %v2921, %v2703
    %v2924 = vmul.f32 %v2922, %v2704
    %2925 = vset.pattern.permute.xlu0 47
    %2926 = vperm.xlu0 %2925, %v2365
    %v2927 = vpop.permute.xlu0 %2926
    %2929 = vset.pattern.permute.xlu0 47
    %2930 = vperm.xlu0 %2929, %v2366
    %v2931 = vpop.permute.xlu0 %2930
    %v2933 = vmul.f32 %v2469, %v2927
    %v2934 = vmul.f32 %v2470, %v2931
    %v2935 = vmul.f32 %v2933, %v2729
    %v2936 = vmul.f32 %v2934, %v2730
    %v2937 = vadd.f32 %v2923, %v2935
    %v2938 = vadd.f32 %v2924, %v2936
    %2939 = vset.pattern.permute.xlu0 40
    %2940 = vperm.xlu0 %2939, %v2365
    %v2941 = vpop.permute.xlu0 %2940
    %2943 = vset.pattern.permute.xlu0 40
    %2944 = vperm.xlu0 %2943, %v2366
    %v2945 = vpop.permute.xlu0 %2944
    %v2947 = vmul.f32 %v2383, %v2941
    %v2948 = vmul.f32 %v2384, %v2945
    %v2949 = vmul.f32 %v2947, %v2729
    %v2950 = vmul.f32 %v2948, %v2730
    %2951 = vset.pattern.permute.xlu0 48
    %2952 = vperm.xlu0 %2951, %v2365
    %v2953 = vpop.permute.xlu0 %2952
    %2955 = vset.pattern.permute.xlu0 48
    %2956 = vperm.xlu0 %2955, %v2366
    %v2957 = vpop.permute.xlu0 %2956
    %v2959 = vmul.f32 %v2497, %v2953
    %v2960 = vmul.f32 %v2498, %v2957
    %v2961 = vmul.f32 %v2959, %v2755
    %v2962 = vmul.f32 %v2960, %v2756
    %v2963 = vadd.f32 %v2949, %v2961
    %v2964 = vadd.f32 %v2950, %v2962
    %2965 = vset.pattern.permute.xlu0 41
    %2966 = vperm.xlu0 %2965, %v2365
    %v2967 = vpop.permute.xlu0 %2966
    %2969 = vset.pattern.permute.xlu0 41
    %2970 = vperm.xlu0 %2969, %v2366
    %v2971 = vpop.permute.xlu0 %2970
    %v2973 = vmul.f32 %v2413, %v2967
    %v2974 = vmul.f32 %v2414, %v2971
    %v2975 = vmul.f32 %v2973, %v2755
    %v2976 = vmul.f32 %v2974, %v2756
    %2977 = vset.pattern.permute.xlu0 49
    %2978 = vperm.xlu0 %2977, %v2365
    %v2979 = vpop.permute.xlu0 %2978
    %2981 = vset.pattern.permute.xlu0 49
    %2982 = vperm.xlu0 %2981, %v2366
    %v2983 = vpop.permute.xlu0 %2982
    %v2985 = vmul.f32 %v2525, %v2979
    %v2986 = vmul.f32 %v2526, %v2983
    %v2987 = vmul.f32 %v2985, %v2781
    %v2988 = vmul.f32 %v2986, %v2782
    %v2989 = vadd.f32 %v2975, %v2987
    %v2990 = vadd.f32 %v2976, %v2988
    %2991 = vset.pattern.permute.xlu0 42
    %2992 = vperm.xlu0 %2991, %v2365
    %v2993 = vpop.permute.xlu0 %2992
    %2995 = vset.pattern.permute.xlu0 42
    %2996 = vperm.xlu0 %2995, %v2366
    %v2997 = vpop.permute.xlu0 %2996
    %v2999 = vmul.f32 %v2441, %v2993
    %v3000 = vmul.f32 %v2442, %v2997
    %v3001 = vmul.f32 %v2999, %v2781
    %v3002 = vmul.f32 %v3000, %v2782
    %3003 = vset.pattern.permute.xlu0 50
    %3004 = vperm.xlu0 %3003, %v2365
    %v3005 = vpop.permute.xlu0 %3004
    %3007 = vset.pattern.permute.xlu0 50
    %3008 = vperm.xlu0 %3007, %v2366
    %v3009 = vpop.permute.xlu0 %3008
    %v3011 = vmul.f32 %v2553, %v3005
    %v3012 = vmul.f32 %v2554, %v3009
    %v3013 = vmul.f32 %v3011, %v2807
    %v3014 = vmul.f32 %v3012, %v2808
    %v3015 = vadd.f32 %v3001, %v3013
    %v3016 = vadd.f32 %v3002, %v3014
    %3017 = vset.pattern.permute.xlu0 43
    %3018 = vperm.xlu0 %3017, %v2365
    %v3019 = vpop.permute.xlu0 %3018
    %3021 = vset.pattern.permute.xlu0 43
    %3022 = vperm.xlu0 %3021, %v2366
    %v3023 = vpop.permute.xlu0 %3022
    %v3025 = vmul.f32 %v2469, %v3019
    %v3026 = vmul.f32 %v2470, %v3023
    %v3027 = vmul.f32 %v3025, %v2807
    %v3028 = vmul.f32 %v3026, %v2808
    %3029 = vset.pattern.permute.xlu0 51
    %3030 = vperm.xlu0 %3029, %v2365
    %v3031 = vpop.permute.xlu0 %3030
    %3033 = vset.pattern.permute.xlu0 51
    %3034 = vperm.xlu0 %3033, %v2366
    %v3035 = vpop.permute.xlu0 %3034
    %v3037 = vmul.f32 %v2581, %v3031
    %v3038 = vmul.f32 %v2582, %v3035
    %v3039 = vmul.f32 %v3037, %v2833
    %v3040 = vmul.f32 %v3038, %v2834
    %v3041 = vadd.f32 %v3027, %v3039
    %v3042 = vadd.f32 %v3028, %v3040
    %3043 = vset.pattern.permute.xlu0 44
    %3044 = vperm.xlu0 %3043, %v2365
    %v3045 = vpop.permute.xlu0 %3044
    %3047 = vset.pattern.permute.xlu0 44
    %3048 = vperm.xlu0 %3047, %v2366
    %v3049 = vpop.permute.xlu0 %3048
    %v3051 = vmul.f32 %v2497, %v3045
    %v3052 = vmul.f32 %v2498, %v3049
    %v3053 = vmul.f32 %v3051, %v2833
    %v3054 = vmul.f32 %v3052, %v2834
    %3055 = vset.pattern.permute.xlu0 52
    %3056 = vperm.xlu0 %3055, %v2365
    %v3057 = vpop.permute.xlu0 %3056
    %3059 = vset.pattern.permute.xlu0 52
    %3060 = vperm.xlu0 %3059, %v2366
    %v3061 = vpop.permute.xlu0 %3060
    %v3063 = vmul.f32 %v2609, %v3057
    %v3064 = vmul.f32 %v2610, %v3061
    %v3065 = vmul.f32 %v3063, %v2859
    %v3066 = vmul.f32 %v3064, %v2860
    %v3067 = vadd.f32 %v3053, %v3065
    %v3068 = vadd.f32 %v3054, %v3066
    %3069 = vset.pattern.permute.xlu0 45
    %3070 = vperm.xlu0 %3069, %v2365
    %v3071 = vpop.permute.xlu0 %3070
    %3073 = vset.pattern.permute.xlu0 45
    %3074 = vperm.xlu0 %3073, %v2366
    %v3075 = vpop.permute.xlu0 %3074
    %v3077 = vmul.f32 %v2525, %v3071
    %v3078 = vmul.f32 %v2526, %v3075
    %v3079 = vmul.f32 %v3077, %v2859
    %v3080 = vmul.f32 %v3078, %v2860
    %3081 = vset.pattern.permute.xlu0 53
    %3082 = vperm.xlu0 %3081, %v2365
    %v3083 = vpop.permute.xlu0 %3082
    %3085 = vset.pattern.permute.xlu0 53
    %3086 = vperm.xlu0 %3085, %v2366
    %v3087 = vpop.permute.xlu0 %3086
    %v3089 = vmul.f32 %v2637, %v3083
    %v3090 = vmul.f32 %v2638, %v3087
    %v3091 = vmul.f32 %v3089, %v2885
    %v3092 = vmul.f32 %v3090, %v2886
    %v3093 = vadd.f32 %v3079, %v3091
    %v3094 = vadd.f32 %v3080, %v3092
    %v3095 = vxor.u32 %v2147, 2147483648
    %v3096 = vxor.u32 %v2152, 2147483648
    %v3097 = vmul.f32 %v3095, 1.442695
    %v3098 = vpow.pop %v3097
    %v3099 = vmul.f32 %v3096, 1.442695
    %v3100 = vpow.pop %v3099
    %v3101 = vadd.f32 %v3098, 1.0
    %v3102 = vadd.f32 %v3100, 1.0
    %v3103 = vrcp.pop %v3101
    %v3104 = vmul.f32 1.0, %v3103
    %v3105 = vrcp.pop %v3102
    %v3106 = vmul.f32 1.0, %v3105
    %v3107 = vmul.f32 %v2147, %v3104
    %v3108 = vmul.f32 %v2152, %v3106
    %v3109 = vld [vmem:[#allocation8] sm:$0xff]
    %v3110 = vld [vmem:[#allocation8 + $0x8] sm:$0xff]
    %vm3111 = vcmask 130048
    %v3113 = vsel %vm3111, %v3110, 0
    %3115 = vmatprep.subr.mxu0 0.0
    %3116 = vmatpush1.msra.mxu0 %v3107
    %3117 = vmatprep.subr.mxu0 0.0
    %3118 = vmatpush1.msra.mxu0 %v3108
    %3119 = vmatprep.subr.mxu0 0.0
    %3120 = vmatpush1.msra.mxu0 %v2911
    %3121 = vmatprep.subr.mxu0 0.0
    %3122 = vmatpush1.msra.mxu0 %v2912
    %3123 = vmatprep.subr.mxu0 0.0
    %3124 = vmatpush1.msra.mxu0 %v2937
    %3125 = vmatprep.subr.mxu0 0.0
    %3126 = vmatpush1.msra.mxu0 %v2938
    %3127 = vmatprep.subr.mxu0 0.0
    %3128 = vmatpush1.msra.mxu0 %v2963
    %3129 = vmatprep.subr.mxu0 0.0
    %3130 = vmatpush1.msra.mxu0 %v2964
    %3131 = vmatprep.subr.mxu0 0.0
    %3132 = vmatpush1.msra.mxu0 %v2989
    %3133 = vmatprep.subr.mxu0 0.0
    %3134 = vmatpush1.msra.mxu0 %v2990
    %3135 = vmatprep.subr.mxu0 0.0
    %3136 = vmatpush1.msra.mxu0 %v3015
    %3137 = vmatprep.subr.mxu0 0.0
    %3138 = vmatpush1.msra.mxu0 %v3016
    %3139 = vmatprep.subr.mxu0 0.0
    %3140 = vmatpush1.msra.mxu0 %v3041
    %3141 = vmatprep.subr.mxu0 0.0
    %3142 = vmatpush1.msra.mxu0 %v3042
    %3143 = vmatprep.subr.mxu0 0.0
    %3144 = vmatpush1.msra.mxu0 %v3067
    %3145 = vmatprep.subr.mxu0 0.0
    %3146 = vmatpush1.msra.mxu0 %v3068
    %3147 = vmatprep.subr.mxu0 0.0
    %3148 = vmatpush1.msra.mxu0 %v3093
    %3149 = vmatprep.subr.mxu0 0.0
    %3150 = vmatpush1.msra.mxu0 %v3094
    %3151 = vmatprep.subr.mxu0 0.0
    %3152 = vmatpush1.msra.mxu0 0.0
    %3153 = vmatprep.subr.mxu0 0.0
    %3154 = vmatpush1.msra.mxu0 0.0
    %3155 = vmatprep.subr.mxu0 0.0
    %3156 = vmatpush1.msra.mxu0 0.0
    %3157 = vmatprep.subr.mxu0 0.0
    %3158 = vmatpush1.msra.mxu0 0.0
    %3159 = vmatprep.subr.mxu0 0.0
    %3160 = vmatpush1.msra.mxu0 0.0
    %3161 = vmatprep.subr.mxu0 0.0
    %3162 = vmatpush1.msra.mxu0 0.0
    %3163 = vmatprep.subr.mxu0 0.0
    %3164 = vmatpush1.msra.mxu0 0.0
    %3165 = vmatprep.subr.mxu0 0.0
    %3166 = vmatpush1.msra.mxu0 0.0
    %3167 = vmatprep.subr.mxu0 0.0
    %3168 = vmatpush1.msra.mxu0 0.0
    %3169 = vmatprep.subr.mxu0 0.0
    %3170 = vmatpush1.msra.mxu0 0.0
    %3171 = vmatprep.subr.mxu0 0.0
    %3172 = vmatpush1.msra.mxu0 0.0
    %3173 = vmatprep.subr.mxu0 0.0
    %3174 = vmatpush1.msra.mxu0 0.0
    %3175 = vmatprep.subr.mxu0 0.0
    %3176 = vmatpush1.msra.mxu0 0.0
    %3177 = vmatprep.subr.mxu0 0.0
    %3178 = vmatpush1.msra.mxu0 0.0
    %3179 = vmatprep.mubr.f32.mxu0 %v3113
    %3180 = vmatmul.mubr.f32.gmra.mrb[0].mxu0 %v3109
    %v3181 = vpop.f32.mrb[0].mxu0
    %v3182 = vadd.f32 0.0, %v3181
    %v3183 = vpop.f32.mrb[0].mxu0
    %3184 = vdwg.mxu0
    %3185 = vst [vmem:[#allocation10] sm:$0xff] %v3182
    // Predicated region
    $region46: #{tpu_custom_call.1} parent=1 // pred_check
      _
    $region47: #{tpu_custom_call.1} parent=1 // pred_check_branch
      %3187 = sbr.rel (0) target = $region49
    $region48: #{tpu_custom_call.1} parent=1 // pred_region
      %s3189 = ssub.s32 128, 128
      %3190 = vsyncadd [#allocation4], %s3189
      %s3192 = sshll.u32 [#allocation10], 4
      %s3193 = int_to_ptr.vmem [resolvable:$true] %s3192
      %3195 = dma.vmem_to_hbm [thread:$0]  %s3193, 128, %s7, [#allocation4]
    $region49: #{tpu_custom_call.1} parent=1 // pred_fallthru
      _
    // Predicated region
    $region50: #{tpu_custom_call.1} parent=1 // pred_check
      _
    $region51: #{tpu_custom_call.1} parent=1 // pred_check_branch
      %3197 = sbr.rel (0) target = $region53
    $region52: #{tpu_custom_call.1} parent=1 // pred_region
      %3198 = dma.done [#allocation4], 128
    $region53: #{tpu_custom_call.1} parent=1 // pred_fallthru
      _
    %3199 = vsyncpa [#allocation3], 1
    %3200 = vsyncpa [#allocation6], 1
    %3201 = vsyncpa [#allocation9], 1
    %3202 = vsyncpa [#allocation4], 1

</llo_original>
